<compile_context>
chip_gen: v7x
topology: tpu7x:2x2x1
jax: 0.10.0
libtpu: 0.0.40
codegen_flags: <defaults>
</compile_context>

<pallas_src>
import functools

import jax
import jax.numpy as jnp
from jax import lax
from jax.experimental import pallas as pl
from jax.experimental.pallas import tpu as pltpu

EPS = 1e-5  # nn.LayerNorm default eps
F32 = jnp.float32
BF16 = jnp.bfloat16


def _ln(z, w, b):
    # LayerNorm in fp32 (matches CLIP LayerNorm which casts to fp32).
    m = jnp.mean(z, axis=-1, keepdims=True)
    v = jnp.mean((z - m) ** 2, axis=-1, keepdims=True)
    return (z - m) * lax.rsqrt(v + EPS) * w + b


# --------------------------------------------------------------------------
# Feature probes (cached): single-buffer pipeline mode + per-chip VMEM limit
# --------------------------------------------------------------------------
@functools.lru_cache(maxsize=None)
def _resident_mode():
    """pl.Buffered(1) for never-changing blocks if this JAX/Mosaic supports it."""
    try:
        mode = pl.Buffered(1)

        def _k(a_ref, b_ref, o_ref):
            o_ref[...] = a_ref[...] + b_ref[...]

        probe = pl.pallas_call(
            _k,
            out_shape=jax.ShapeDtypeStruct((8, 128), F32),
            grid=(2,),
            in_specs=[pl.BlockSpec((8, 128), lambda i: (0, 0), pipeline_mode=mode),
                      pl.BlockSpec((8, 128), lambda i: (0, 0))],
            out_specs=pl.BlockSpec((8, 128), lambda i: (0, 0)),
        )
        jax.block_until_ready(probe(jnp.zeros((8, 128), F32),
                                    jnp.zeros((8, 128), F32)))
        return mode
    except Exception:  # fall back to default double buffering
        return None


@functools.lru_cache(maxsize=None)
def _vmem_limit_bytes():
    """Explicit VMEM budget: physical capacity minus headroom, capped at 100 MiB."""
    try:
        cap = int(pltpu.get_tpu_info().vmem_capacity_bytes)
    except Exception:
        cap = 64 * 1024 * 1024  # conservative (v7x per-core size)
    return int(min(cap - 8 * 1024 * 1024, 100 * 1024 * 1024))


def _const_spec(shape, resident=False):
    """BlockSpec with a constant index_map (block fetched once, stays resident)."""
    n = len(shape)
    imap = lambda b, _n=n: (0,) * _n
    mode = _resident_mode() if resident else None
    if mode is not None:
        return pl.BlockSpec(shape, imap, pipeline_mode=mode)
    return pl.BlockSpec(shape, imap)


# --------------------------------------------------------------------------
# Patch embedding:  per-batch [P, Kp] @ [Kp, D] + positional embedding (fused)
# (conv1 with kernel==stride, no bias)
# --------------------------------------------------------------------------
def _patch_embed_kernel(a_ref, w_ref, pos_ref, o_ref):
    acc = jnp.dot(a_ref[0], w_ref[...], preferred_element_type=F32)   # [P, D] f32
    o_ref[0] = (acc + pos_ref[...]).astype(o_ref.dtype)


def patch_embed(patches_bf16, w_bf16, pos_patches):
    B, P, Kp = patches_bf16.shape
    D = w_bf16.shape[1]
    return pl.pallas_call(
        _patch_embed_kernel,
        out_shape=jax.ShapeDtypeStruct((B, P, D), BF16),
        grid=(B,),
        in_specs=[pl.BlockSpec((1, P, Kp), lambda b: (b, 0, 0)),
                  _const_spec((Kp, D), resident=True),    # weight fetched once
                  _const_spec((P, D), resident=True)],    # pos-emb fetched once
        out_specs=pl.BlockSpec((1, P, D), lambda b: (b, 0, 0)),
        compiler_params=pltpu.CompilerParams(
            dimension_semantics=("parallel",),
            vmem_limit_bytes=_vmem_limit_bytes()),
    )(patches_bf16, w_bf16, pos_patches)


# --------------------------------------------------------------------------
# Residual attention block (IVLP / VPT):  grid = (batch,)
# --------------------------------------------------------------------------
def _block_kernel(x_ref, ln1w, ln1b, wqkv, bqkv, wo, bo,
                  ln2w, ln2b, wfc, bfc, wpr, bpr, *rest,
                  heads, use_pre_ln, use_prompt, prompt_start, mlp_chunk):
    o_ref = rest[-1]                 # output block [1, L, D] bf16
    extras = rest[:-1]
    idx = 0
    if use_pre_ln:
        lnp_w, lnp_b = extras[0], extras[1]
        idx = 2
    if use_prompt:
        prompt_ref = extras[idx]

    L, D = x_ref.shape[1], x_ref.shape[2]
    hd = D // heads
    scale = 1.0 / (hd ** 0.5)

    x = x_ref[0].astype(F32)                                   # [L, D]

    if use_prompt:
        # Deep VPT prompt: replace last n_ctx token rows (topk is None).
        rows = lax.broadcasted_iota(jnp.int32, (L, 1), 0)      # cheap (L,1) iota
        x = jnp.where(rows >= prompt_start, prompt_ref[...].astype(F32), x)
    if use_pre_ln:
        # ln_pre fused into the first block (block 0 never receives a prompt).
        x = _ln(x, lnp_w[...], lnp_b[...])

    # ln_1 computed ONCE per batch element (not per head).
    y = _ln(x, ln1w[...], ln1b[...]).astype(BF16)              # [L, D] bf16

    # Fused QKV projection: one wide MXU matmul  [L, D] @ [D, 3D].
    qkv = jnp.dot(y, wqkv[...], preferred_element_type=F32) + bqkv[...]
    q = qkv[:, :D] * scale          # scale after bias == PyTorch MHA semantics
    k = qkv[:, D:2 * D]
    v = qkv[:, 2 * D:]

    # Per-head attention with static lane slices; all dots are plain 2-D matmuls.
    o_parts = []
    for h in range(heads):
        sl = slice(h * hd, (h + 1) * hd)
        qh = q[:, sl].astype(BF16)
        kh = k[:, sl].astype(BF16)
        vh = v[:, sl].astype(BF16)
        s = lax.dot_general(qh, kh, (((1,), (1,)), ((), ())),
                            preferred_element_type=F32)        # [L, L]
        s = s - jnp.max(s, axis=-1, keepdims=True)
        p = jnp.exp(s)
        p = p * pl.reciprocal(jnp.sum(p, axis=-1, keepdims=True), approx=True)
        o_parts.append(jnp.dot(p.astype(BF16), vh, preferred_element_type=F32))
    o = jnp.concatenate(o_parts, axis=-1).astype(BF16)          # [L, D]

    # Single full-width out-projection, then residual 1.
    x2 = x + jnp.dot(o, wo[...], preferred_element_type=F32) + bo[...]

    y2 = _ln(x2, ln2w[...], ln2b[...]).astype(BF16)

    # MLP with hidden-dim chunking (bounds the live [L, 4D] f32 intermediate).
    hidden = wfc.shape[1]
    h2 = jnp.zeros((L, D), F32)
    for c0 in range(0, hidden, mlp_chunk):
        c1 = min(hidden, c0 + mlp_chunk)
        h1 = jnp.dot(y2, wfc[:, c0:c1], preferred_element_type=F32) + bfc[:, c0:c1]
        h1 = h1 * jax.nn.sigmoid(1.702 * h1)                    # QuickGELU (fp32)
        h2 = h2 + jnp.dot(h1.astype(BF16), wpr[c0:c1, :], preferred_element_type=F32)

    o_ref[0] = (x2 + h2 + bpr[...]).astype(o_ref.dtype)         # residual 2


def residual_block(xb, blk, *, heads, n_ctx, pre_ln=None):
    B, L, D = xb.shape
    use_pre_ln = pre_ln is not None
    use_prompt = blk["prompt_full"] is not None
    mlp_chunk = min(4 * D, 2048)

    args = [xb,
            blk["ln1_w"], blk["ln1_b"],
            blk["wqkv"], blk["bqkv"],
            blk["wo"], blk["bo"],
            blk["ln2_w"], blk["ln2_b"],
            blk["wfc"], blk["bfc"], blk["wpr"], blk["bpr"]]
    specs = [pl.BlockSpec((1, L, D), lambda b: (b, 0, 0)),
             _const_spec((1, D)), _const_spec((1, D)),
             _const_spec((D, 3 * D), resident=True), _const_spec((1, 3 * D)),
             _const_spec((D, D), resident=True), _const_spec((1, D)),
             _const_spec((1, D)), _const_spec((1, D)),
             _const_spec((D, 4 * D), resident=True), _const_spec((1, 4 * D)),
             _const_spec((4 * D, D), resident=True), _const_spec((1, D))]
    if use_pre_ln:
        args += [pre_ln[0], pre_ln[1]]
        specs += [_const_spec((1, D)), _const_spec((1, D))]
    if use_prompt:
        args += [blk["prompt_full"]]
        specs += [_const_spec((L, D), resident=True)]

    kernel = functools.partial(
        _block_kernel, heads=heads, use_pre_ln=use_pre_ln, use_prompt=use_prompt,
        prompt_start=(L - n_ctx) if use_prompt else 0, mlp_chunk=mlp_chunk)

    return pl.pallas_call(
        kernel,
        out_shape=jax.ShapeDtypeStruct((B, L, D), BF16),
        grid=(B,),
        in_specs=specs,
        out_specs=pl.BlockSpec((1, L, D), lambda b: (b, 0, 0)),
        compiler_params=pltpu.CompilerParams(
            dimension_semantics=("parallel",),
            vmem_limit_bytes=_vmem_limit_bytes()),
    )(*args)


# --------------------------------------------------------------------------
# Head: ln_post on CLS tokens + projection
# --------------------------------------------------------------------------
def _head_kernel(x_ref, lnw, lnb, proj_ref, o_ref):
    x = x_ref[...].astype(F32)
    y = _ln(x, lnw[...], lnb[...])
    o_ref[...] = jnp.dot(y.astype(BF16), proj_ref[...], preferred_element_type=F32)


def head_proj(cls_tokens, lnw, lnb, proj):
    B, D = cls_tokens.shape
    O = proj.shape[1]
    return pl.pallas_call(
        _head_kernel,
        out_shape=jax.ShapeDtypeStruct((B, O), F32),
        grid=(1,),
        in_specs=[pl.BlockSpec((B, D), lambda i: (0, 0)),
                  pl.BlockSpec((1, D), lambda i: (0, 0)),
                  pl.BlockSpec((1, D), lambda i: (0, 0)),
                  pl.BlockSpec((D, O), lambda i: (0, 0))],
        out_specs=pl.BlockSpec((B, O), lambda i: (0, 0)),
    )(cls_tokens, lnw, lnb, proj)


# --------------------------------------------------------------------------
# Forward (wrapper / glue)
# --------------------------------------------------------------------------
def vision_transformer_forward(prep, x, *, patch_size, heads, n_ctx):
    B, C, H, W = x.shape
    p = patch_size
    Hp, Wp = H // p, W // p
    P = Hp * Wp
    D = prep["class_embedding"].shape[0]

    # conv1 (kernel==stride==patch_size, no bias) == patch-embedding matmul.
    patches = (x.reshape(B, C, Hp, p, Wp, p)
                 .transpose(0, 2, 4, 1, 3, 5)
                 .reshape(B, P, C * p * p))
    Kp = prep["w_patch"].shape[0]
    patches = jnp.pad(patches, ((0, 0), (0, 0), (0, Kp - C * p * p))).astype(BF16)
    emb = patch_embed(patches, prep["w_patch"], prep["pos_patches"])   # [B,P,D] bf16

    # class token (+ its positional embedding) and shallow VPT prompts.
    cls = jnp.broadcast_to(prep["cls_plus_pos"][None, None, :], (B, 1, D)).astype(BF16)
    vpt = jnp.broadcast_to(prep["VPT"][None], (B, n_ctx, D)).astype(BF16)
    # topk is None -> no topk tokens, no visual_mask
    xb = jnp.concatenate([cls, emb, vpt], axis=1)                      # [B, L, D] bf16

    # ln_pre fused into block 0; activations carried in bf16 between layers.
    # TODO(synk): original code casts prompts with .half(); bf16 carry here.
    for li, blk in enumerate(prep["blocks"]):
        pre_ln = (prep["ln_pre_w"], prep["ln_pre_b"]) if li == 0 else None
        xb = residual_block(xb, blk, heads=heads, n_ctx=n_ctx, pre_ln=pre_ln)

    cls_out = xb[:, 0, :]                                              # [B, D] bf16
    out = head_proj(cls_out, prep["ln_post_w"], prep["ln_post_b"], prep["proj"])
    # TODO(synk): nn.Dropout(p=0.3) is identity in eval mode; not applied here.
    return out


# --------------------------------------------------------------------------
# Parameter preparation: transpose / fuse QKV / cast to bf16 ONCE
# --------------------------------------------------------------------------
def prepare_params(raw, *, patch_size, heads, n_ctx):
    D = raw["class_embedding"].shape[0]
    C = raw["conv1_w"].shape[1]
    n_patches = raw["positional_embedding"].shape[0] - 1
    L = n_patches + 1 + n_ctx
    K = C * patch_size * patch_size
    Kp = ((K + 127) // 128) * 128                        # pad contraction to 128

    w_patch = raw["conv1_w"].reshape(D, K).T             # [K, D]
    w_patch = jnp.pad(w_patch, ((0, Kp - K), (0, 0))).astype(BF16)

    prep = {
        "w_patch": w_patch,
        "class_embedding": raw["class_embedding"],
        "cls_plus_pos": raw["class_embedding"] + raw["positional_embedding"][0],
        "pos_patches": raw["positional_embedding"][1:],   # [P, D] f32
        "VPT": raw["VPT"],
        "ln_pre_w": raw["ln_pre_w"][None, :], "ln_pre_b": raw["ln_pre_b"][None, :],
        "ln_post_w": raw["ln_post_w"][None, :], "ln_post_b": raw["ln_post_b"][None, :],
        "proj": raw["proj"].astype(BF16),
        "blocks": [],
    }
    for rb in raw["blocks"]:
        blk = {
            "ln1_w": rb["ln1_w"][None, :], "ln1_b": rb["ln1_b"][None, :],
            "wqkv": rb["in_proj_w"].T.astype(BF16),       # [D, 3D]  (q|k|v columns)
            "bqkv": rb["in_proj_b"][None, :],             # [1, 3D]  f32
            "wo": rb["out_proj_w"].T.astype(BF16),        # [D, D]
            "bo": rb["out_proj_b"][None, :],
            "ln2_w": rb["ln2_w"][None, :], "ln2_b": rb["ln2_b"][None, :],
            "wfc": rb["fc_w"].T.astype(BF16), "bfc": rb["fc_b"][None, :],
            "wpr": rb["cproj_w"].T.astype(BF16), "bpr": rb["cproj_b"][None, :],
            "prompt_full": None,
        }
        if rb["VPT_shallow"] is not None:
            pf = jnp.zeros((L, D), F32).at[L - n_ctx:].set(rb["VPT_shallow"])
            blk["prompt_full"] = pf.astype(BF16)
        prep["blocks"].append(blk)
    return prep


# --------------------------------------------------------------------------
# Deterministic synthetic raw parameters (shapes from __init__)
# --------------------------------------------------------------------------
def init_params(key, *, input_resolution, patch_size, width, layers,
                output_dim, n_ctx, vision_depth):
    keys = iter(jax.random.split(key, 64))
    scale = width ** -0.5
    params = {
        "conv1_w": jax.random.normal(next(keys), (width, 3, patch_size, patch_size),
                                     F32) * 0.02,
        "class_embedding": jax.random.normal(next(keys), (width,), F32) * scale,
        "positional_embedding": jax.random.normal(
            next(keys), ((input_resolution // patch_size) ** 2 + 1, width), F32) * scale,
        "VPT": jax.random.normal(next(keys), (n_ctx, width), F32) * 0.02,
        "ln_pre_w": jnp.ones((width,), F32), "ln_pre_b": jnp.zeros((width,), F32),
        "ln_post_w": jnp.ones((width,), F32), "ln_post_b": jnp.zeros((width,), F32),
        "proj": jax.random.normal(next(keys), (width, output_dim), F32) * scale,
        "blocks": [],
    }
    for i in range(layers):
        blk = {
            "in_proj_w": jax.random.normal(next(keys), (3 * width, width), F32) * 0.02,
            "in_proj_b": jnp.zeros((3 * width,), F32),
            "out_proj_w": jax.random.normal(next(keys), (width, width), F32) * 0.02,
            "out_proj_b": jnp.zeros((width,), F32),
            "ln1_w": jnp.ones((width,), F32), "ln1_b": jnp.zeros((width,), F32),
            "ln2_w": jnp.ones((width,), F32), "ln2_b": jnp.zeros((width,), F32),
            "fc_w": jax.random.normal(next(keys), (4 * width, width), F32) * 0.02,
            "fc_b": jnp.zeros((4 * width,), F32),
            "cproj_w": jax.random.normal(next(keys), (width, 4 * width), F32) * 0.02,
            "cproj_b": jnp.zeros((width,), F32),
            # i == 0 never gets prompts; deeper layers get them if vision_depth > i
            "VPT_shallow": (jax.random.normal(next(keys), (n_ctx, width), F32) * 0.02
                            if (i != 0 and vision_depth > i) else None),
        }
        params["blocks"].append(blk)
    return params


if __name__ == "__main__":
    input_resolution, patch_size = 16, 8
    width, layers, heads, output_dim = 32, 2, 4, 16
    n_ctx, vision_depth = 4, 2          # design_details: vision_ctx=4, vision_depth=2

    # Warm feature probes (outside jit): Buffered(1) support + VMEM limit.
    _ = _resident_mode()
    _ = _vmem_limit_bytes()

    key = jax.random.PRNGKey(0)
    kp, kx = jax.random.split(key)
    raw = init_params(kp, input_resolution=input_resolution, patch_size=patch_size,
                      width=width, layers=layers, output_dim=output_dim,
                      n_ctx=n_ctx, vision_depth=vision_depth)
    prep = prepare_params(raw, patch_size=patch_size, heads=heads, n_ctx=n_ctx)
    x = jax.random.normal(kx, (2, 3, input_resolution, input_resolution), F32)

    fwd = jax.jit(functools.partial(vision_transformer_forward,
                                    patch_size=patch_size, heads=heads, n_ctx=n_ctx))
    out = fwd(prep, x)
    out = jax.block_until_ready(out)
    assert out.shape == (2, output_dim), out.shape
    print("KERNEL_OK")
</pallas_src>

<mosaic_0001>
module attributes {stable_mosaic.version = 11 : i64} {
  func.func @_k(%arg0: i32, %arg1: memref<8x128xf32, #tpu.memory_space<vmem>>, %arg2: memref<8x128xf32, #tpu.memory_space<vmem>>, %arg3: memref<8x128xf32, #tpu.memory_space<vmem>>) attributes {dimension_semantics = [#tpu.dimension_semantics<arbitrary>], iteration_bounds = array<i64: 2>, scalar_prefetch = 0 : i64, scratch_operands = 0 : i64, tpu.core_type = #tpu.core_type<tc>, window_params = [{pipeline_mode = #tpu.pipeline_mode<synchronous>, transform_indices = @transform_0, window_bounds = array<i64: 8, 128>}, {pipeline_mode = #tpu.pipeline_mode<synchronous>, transform_indices = @transform_1, window_bounds = array<i64: 8, 128>}, {pipeline_mode = #tpu.pipeline_mode<synchronous>, transform_indices = @transform_2, window_bounds = array<i64: 8, 128>}]} {
    %c0 = arith.constant 0 : index
    %c0_0 = arith.constant 0 : index
    %0 = vector.load %arg1[%c0, %c0_0] : memref<8x128xf32, #tpu.memory_space<vmem>>, vector<8x128xf32>
    %c0_1 = arith.constant 0 : index
    %c0_2 = arith.constant 0 : index
    %1 = vector.load %arg2[%c0_1, %c0_2] : memref<8x128xf32, #tpu.memory_space<vmem>>, vector<8x128xf32>
    %2 = arith.addf %0, %1 : vector<8x128xf32>
    %c0_3 = arith.constant 0 : index
    %c0_4 = arith.constant 0 : index
    %3 = vector.load %arg3[%c0_3, %c0_4] : memref<8x128xf32, #tpu.memory_space<vmem>>, vector<8x128xf32>
    tpu.vector_store %arg3[%c0_3, %c0_4], %2 {strides = array<i32>} : memref<8x128xf32, #tpu.memory_space<vmem>>, vector<8x128xf32>,
    return
  }
  func.func @transform_0(%arg0: i32) -> (i32, i32) {
    %c0_i32 = arith.constant 0 : i32
    %c0_i32_0 = arith.constant 0 : i32
    %c0_i32_1 = arith.constant 0 : i32
    return %c0_i32, %c0_i32_0 : i32, i32
  }
  func.func @transform_1(%arg0: i32) -> (i32, i32) {
    %c0_i32 = arith.constant 0 : i32
    %c0_i32_0 = arith.constant 0 : i32
    %c0_i32_1 = arith.constant 0 : i32
    return %c0_i32, %c0_i32_0 : i32, i32
  }
  func.func @transform_2(%arg0: i32) -> (i32, i32) {
    %c0_i32 = arith.constant 0 : i32
    %c0_i32_0 = arith.constant 0 : i32
    %c0_i32_1 = arith.constant 0 : i32
    return %c0_i32, %c0_i32_0 : i32, i32
  }
}

module attributes {stable_mosaic.version = 11 : i64} {
  func.func @_block_kernel(%arg0: i32, %arg1: memref<1x9x32xbf16, #tpu.memory_space<vmem>>, %arg2: memref<1x32xf32, #tpu.memory_space<vmem>>, %arg3: memref<1x32xf32, #tpu.memory_space<vmem>>, %arg4: memref<32x96xbf16, #tpu.memory_space<vmem>>, %arg5: memref<1x96xf32, #tpu.memory_space<vmem>>, %arg6: memref<32x32xbf16, #tpu.memory_space<vmem>>, %arg7: memref<1x32xf32, #tpu.memory_space<vmem>>, %arg8: memref<1x32xf32, #tpu.memory_space<vmem>>, %arg9: memref<1x32xf32, #tpu.memory_space<vmem>>, %arg10: memref<32x128xbf16, #tpu.memory_space<vmem>>, %arg11: memref<1x128xf32, #tpu.memory_space<vmem>>, %arg12: memref<128x32xbf16, #tpu.memory_space<vmem>>, %arg13: memref<1x32xf32, #tpu.memory_space<vmem>>, %arg14: memref<9x32xbf16, #tpu.memory_space<vmem>>, %arg15: memref<1x9x32xbf16, #tpu.memory_space<vmem>>) attributes {dimension_semantics = [#tpu.dimension_semantics<parallel>], iteration_bounds = array<i64: 2>, scalar_prefetch = 0 : i64, scratch_operands = 0 : i64, tpu.core_type = #tpu.core_type<tc>, window_params = [{transform_indices = @transform_0, window_bounds = array<i64: 1, 9, 32>}, {pipeline_mode = #tpu.pipeline_mode<synchronous>, transform_indices = @transform_1, window_bounds = array<i64: 1, 32>}, {pipeline_mode = #tpu.pipeline_mode<synchronous>, transform_indices = @transform_2, window_bounds = array<i64: 1, 32>}, {pipeline_mode = #tpu.pipeline_mode<synchronous>, transform_indices = @transform_3, window_bounds = array<i64: 32, 96>}, {pipeline_mode = #tpu.pipeline_mode<synchronous>, transform_indices = @transform_4, window_bounds = array<i64: 1, 96>}, {pipeline_mode = #tpu.pipeline_mode<synchronous>, transform_indices = @transform_5, window_bounds = array<i64: 32, 32>}, {pipeline_mode = #tpu.pipeline_mode<synchronous>, transform_indices = @transform_6, window_bounds = array<i64: 1, 32>}, {pipeline_mode = #tpu.pipeline_mode<synchronous>, transform_indices = @transform_7, window_bounds = array<i64: 1, 32>}, {pipeline_mode = #tpu.pipeline_mode<synchronous>, transform_indices = @transform_8, window_bounds = array<i64: 1, 32>}, {pipeline_mode = #tpu.pipeline_mode<synchronous>, transform_indices = @transform_9, window_bounds = array<i64: 32, 128>}, {pipeline_mode = #tpu.pipeline_mode<synchronous>, transform_indices = @transform_10, window_bounds = array<i64: 1, 128>}, {pipeline_mode = #tpu.pipeline_mode<synchronous>, transform_indices = @transform_11, window_bounds = array<i64: 128, 32>}, {pipeline_mode = #tpu.pipeline_mode<synchronous>, transform_indices = @transform_12, window_bounds = array<i64: 1, 32>}, {pipeline_mode = #tpu.pipeline_mode<synchronous>, transform_indices = @transform_13, window_bounds = array<i64: 9, 32>}, {transform_indices = @transform_14, window_bounds = array<i64: 1, 9, 32>}]} {
    %c0 = arith.constant 0 : index
    %c0_0 = arith.constant 0 : index
    %c0_1 = arith.constant 0 : index
    %0 = vector.load %arg1[%c0, %c0_0, %c0_1] : memref<1x9x32xbf16, #tpu.memory_space<vmem>>, vector<1x9x32xbf16>
    %1 = vector.shape_cast %0 : vector<1x9x32xbf16> to vector<9x32xbf16>
    %2 = arith.extf %1 : vector<9x32xbf16> to vector<9x32xf32>
    %3 = tpu.iota {dimensions = array<i32: 0>} : vector<9x1xi32>
    %c5_i32 = arith.constant 5 : i32
    %4 = vector.broadcast %c5_i32 : i32 to vector<9x1xi32>
    %5 = arith.cmpi sge, %3, %4 : vector<9x1xi32>
    %c0_2 = arith.constant 0 : index
    %c0_3 = arith.constant 0 : index
    %6 = vector.load %arg14[%c0_2, %c0_3] : memref<9x32xbf16, #tpu.memory_space<vmem>>, vector<9x32xbf16>
    %7 = arith.extf %6 : vector<9x32xbf16> to vector<9x32xf32>
    %8 = vector.shape_cast %5 : vector<9x1xi1> to vector<9x1xi1>
    %9 = vector.broadcast %8 : vector<9x1xi1> to vector<9x32xi1>
    %10 = arith.select %9, %7, %2 : vector<9x32xi1>, vector<9x32xf32>
    %c0_4 = arith.constant 0 : index
    %c0_5 = arith.constant 0 : index
    %11 = vector.load %arg2[%c0_4, %c0_5] : memref<1x32xf32, #tpu.memory_space<vmem>>, vector<1x32xf32>
    %c0_6 = arith.constant 0 : index
    %c0_7 = arith.constant 0 : index
    %12 = vector.load %arg3[%c0_6, %c0_7] : memref<1x32xf32, #tpu.memory_space<vmem>>, vector<1x32xf32>
    %cst = arith.constant dense<0.000000e+00> : vector<9xf32>
    %13 = vector.multi_reduction <add>, %10, %cst [1] : vector<9x32xf32> to vector<9xf32>
    %14 = vector.shape_cast %13 : vector<9xf32> to vector<9x1xf32>
    %cst_8 = arith.constant 3.200000e+01 : f32
    %15 = vector.broadcast %cst_8 : f32 to vector<9x1xf32>
    %16 = arith.divf %14, %15 : vector<9x1xf32>
    %17 = vector.broadcast %16 : vector<9x1xf32> to vector<9x32xf32>
    %18 = arith.subf %10, %17 : vector<9x32xf32>
    %19 = arith.mulf %18, %18 : vector<9x32xf32>
    %cst_9 = arith.constant dense<0.000000e+00> : vector<9xf32>
    %20 = vector.multi_reduction <add>, %19, %cst_9 [1] : vector<9x32xf32> to vector<9xf32>
    %21 = vector.shape_cast %20 : vector<9xf32> to vector<9x1xf32>
    %cst_10 = arith.constant 3.200000e+01 : f32
    %22 = vector.broadcast %cst_10 : f32 to vector<9x1xf32>
    %23 = arith.divf %21, %22 : vector<9x1xf32>
    %24 = vector.broadcast %16 : vector<9x1xf32> to vector<9x32xf32>
    %25 = arith.subf %10, %24 : vector<9x32xf32>
    %cst_11 = arith.constant 9.99999974E-6 : f32
    %26 = vector.broadcast %cst_11 : f32 to vector<9x1xf32>
    %27 = arith.addf %23, %26 : vector<9x1xf32>
    %28 = math.rsqrt %27 : vector<9x1xf32>
    %29 = vector.broadcast %28 : vector<9x1xf32> to vector<9x32xf32>
    %30 = arith.mulf %25, %29 : vector<9x32xf32>
    %31 = vector.broadcast %11 : vector<1x32xf32> to vector<9x32xf32>
    %32 = arith.mulf %30, %31 : vector<9x32xf32>
    %33 = vector.broadcast %12 : vector<1x32xf32> to vector<9x32xf32>
    %34 = arith.addf %32, %33 : vector<9x32xf32>
    %35 = arith.truncf %34 : vector<9x32xf32> to vector<9x32xbf16>
    %c0_12 = arith.constant 0 : index
    %c0_13 = arith.constant 0 : index
    %36 = vector.load %arg4[%c0_12, %c0_13] : memref<32x96xbf16, #tpu.memory_space<vmem>>, vector<32x96xbf16>
    %cst_14 = arith.constant dense<0.000000e+00> : vector<9x96xf32>
    %37 = tpu.matmul %35, %36, %cst_14 {dimension_numbers = #tpu.dot_dimension_numbers<[1], [0], [0], [1], [0, 0, 1, 1], [], []>} : vector<9x32xbf16>, vector<32x96xbf16>, vector<9x96xf32> -> vector<9x96xf32>
    %c0_15 = arith.constant 0 : index
    %c0_16 = arith.constant 0 : index
    %38 = vector.load %arg5[%c0_15, %c0_16] : memref<1x96xf32, #tpu.memory_space<vmem>>, vector<1x96xf32>
    %39 = vector.broadcast %38 : vector<1x96xf32> to vector<9x96xf32>
    %40 = arith.addf %37, %39 : vector<9x96xf32>
    %41 = vector.extract_strided_slice %40 {offsets = [0, 0], sizes = [9, 32], strides = [1, 1]} : vector<9x96xf32> to vector<9x32xf32>
    %cst_17 = arith.constant 0.353553385 : f32
    %42 = vector.broadcast %cst_17 : f32 to vector<9x32xf32>
    %43 = arith.mulf %41, %42 : vector<9x32xf32>
    %44 = vector.extract_strided_slice %40 {offsets = [0, 32], sizes = [9, 32], strides = [1, 1]} : vector<9x96xf32> to vector<9x32xf32>
    %45 = vector.extract_strided_slice %40 {offsets = [0, 64], sizes = [9, 32], strides = [1, 1]} : vector<9x96xf32> to vector<9x32xf32>
    %46 = vector.extract_strided_slice %43 {offsets = [0, 0], sizes = [9, 8], strides = [1, 1]} : vector<9x32xf32> to vector<9x8xf32>
    %47 = arith.truncf %46 : vector<9x8xf32> to vector<9x8xbf16>
    %48 = vector.extract_strided_slice %44 {offsets = [0, 0], sizes = [9, 8], strides = [1, 1]} : vector<9x32xf32> to vector<9x8xf32>
    %49 = arith.truncf %48 : vector<9x8xf32> to vector<9x8xbf16>
    %50 = vector.extract_strided_slice %45 {offsets = [0, 0], sizes = [9, 8], strides = [1, 1]} : vector<9x32xf32> to vector<9x8xf32>
    %51 = arith.truncf %50 : vector<9x8xf32> to vector<9x8xbf16>
    %cst_18 = arith.constant dense<0.000000e+00> : vector<9x9xf32>
    %52 = tpu.matmul %47, %49, %cst_18 {dimension_numbers = #tpu.dot_dimension_numbers<[1], [1], [0], [0], [0, 0, 1, 0], [], []>} : vector<9x8xbf16>, vector<9x8xbf16>, vector<9x9xf32> -> vector<9x9xf32>
    %cst_19 = arith.constant dense<0xFF800000> : vector<9xf32>
    %53 = vector.multi_reduction <maximumf>, %52, %cst_19 [1] : vector<9x9xf32> to vector<9xf32>
    %54 = vector.shape_cast %53 : vector<9xf32> to vector<9x1xf32>
    %55 = vector.broadcast %54 : vector<9x1xf32> to vector<9x9xf32>
    %56 = arith.subf %52, %55 : vector<9x9xf32>
    %57 = math.exp %56 : vector<9x9xf32>
    %cst_20 = arith.constant dense<0.000000e+00> : vector<9xf32>
    %58 = vector.multi_reduction <add>, %57, %cst_20 [1] : vector<9x9xf32> to vector<9xf32>
    %59 = vector.shape_cast %58 : vector<9xf32> to vector<9x1xf32>
    %60 = tpu.reciprocal %59 {approx = true} : vector<9x1xf32> -> vector<9x1xf32>
    %61 = vector.broadcast %60 : vector<9x1xf32> to vector<9x9xf32>
    %62 = arith.mulf %57, %61 : vector<9x9xf32>
    %63 = arith.truncf %62 : vector<9x9xf32> to vector<9x9xbf16>
    %cst_21 = arith.constant dense<0.000000e+00> : vector<9x8xf32>
    %64 = tpu.matmul %63, %51, %cst_21 {dimension_numbers = #tpu.dot_dimension_numbers<[1], [0], [0], [1], [0, 0, 1, 1], [], []>} : vector<9x9xbf16>, vector<9x8xbf16>, vector<9x8xf32> -> vector<9x8xf32>
    %65 = vector.extract_strided_slice %43 {offsets = [0, 8], sizes = [9, 8], strides = [1, 1]} : vector<9x32xf32> to vector<9x8xf32>
    %66 = arith.truncf %65 : vector<9x8xf32> to vector<9x8xbf16>
    %67 = vector.extract_strided_slice %44 {offsets = [0, 8], sizes = [9, 8], strides = [1, 1]} : vector<9x32xf32> to vector<9x8xf32>
    %68 = arith.truncf %67 : vector<9x8xf32> to vector<9x8xbf16>
    %69 = vector.extract_strided_slice %45 {offsets = [0, 8], sizes = [9, 8], strides = [1, 1]} : vector<9x32xf32> to vector<9x8xf32>
    %70 = arith.truncf %69 : vector<9x8xf32> to vector<9x8xbf16>
    %cst_22 = arith.constant dense<0.000000e+00> : vector<9x9xf32>
    %71 = tpu.matmul %66, %68, %cst_22 {dimension_numbers = #tpu.dot_dimension_numbers<[1], [1], [0], [0], [0, 0, 1, 0], [], []>} : vector<9x8xbf16>, vector<9x8xbf16>, vector<9x9xf32> -> vector<9x9xf32>
    %cst_23 = arith.constant dense<0xFF800000> : vector<9xf32>
    %72 = vector.multi_reduction <maximumf>, %71, %cst_23 [1] : vector<9x9xf32> to vector<9xf32>
    %73 = vector.shape_cast %72 : vector<9xf32> to vector<9x1xf32>
    %74 = vector.broadcast %73 : vector<9x1xf32> to vector<9x9xf32>
    %75 = arith.subf %71, %74 : vector<9x9xf32>
    %76 = math.exp %75 : vector<9x9xf32>
    %cst_24 = arith.constant dense<0.000000e+00> : vector<9xf32>
    %77 = vector.multi_reduction <add>, %76, %cst_24 [1] : vector<9x9xf32> to vector<9xf32>
    %78 = vector.shape_cast %77 : vector<9xf32> to vector<9x1xf32>
    %79 = tpu.reciprocal %78 {approx = true} : vector<9x1xf32> -> vector<9x1xf32>
    %80 = vector.broadcast %79 : vector<9x1xf32> to vector<9x9xf32>
    %81 = arith.mulf %76, %80 : vector<9x9xf32>
    %82 = arith.truncf %81 : vector<9x9xf32> to vector<9x9xbf16>
    %cst_25 = arith.constant dense<0.000000e+00> : vector<9x8xf32>
    %83 = tpu.matmul %82, %70, %cst_25 {dimension_numbers = #tpu.dot_dimension_numbers<[1], [0], [0], [1], [0, 0, 1, 1], [], []>} : vector<9x9xbf16>, vector<9x8xbf16>, vector<9x8xf32> -> vector<9x8xf32>
    %84 = vector.extract_strided_slice %43 {offsets = [0, 16], sizes = [9, 8], strides = [1, 1]} : vector<9x32xf32> to vector<9x8xf32>
    %85 = arith.truncf %84 : vector<9x8xf32> to vector<9x8xbf16>
    %86 = vector.extract_strided_slice %44 {offsets = [0, 16], sizes = [9, 8], strides = [1, 1]} : vector<9x32xf32> to vector<9x8xf32>
    %87 = arith.truncf %86 : vector<9x8xf32> to vector<9x8xbf16>
    %88 = vector.extract_strided_slice %45 {offsets = [0, 16], sizes = [9, 8], strides = [1, 1]} : vector<9x32xf32> to vector<9x8xf32>
    %89 = arith.truncf %88 : vector<9x8xf32> to vector<9x8xbf16>
    %cst_26 = arith.constant dense<0.000000e+00> : vector<9x9xf32>
    %90 = tpu.matmul %85, %87, %cst_26 {dimension_numbers = #tpu.dot_dimension_numbers<[1], [1], [0], [0], [0, 0, 1, 0], [], []>} : vector<9x8xbf16>, vector<9x8xbf16>, vector<9x9xf32> -> vector<9x9xf32>
    %cst_27 = arith.constant dense<0xFF800000> : vector<9xf32>
    %91 = vector.multi_reduction <maximumf>, %90, %cst_27 [1] : vector<9x9xf32> to vector<9xf32>
    %92 = vector.shape_cast %91 : vector<9xf32> to vector<9x1xf32>
    %93 = vector.broadcast %92 : vector<9x1xf32> to vector<9x9xf32>
    %94 = arith.subf %90, %93 : vector<9x9xf32>
    %95 = math.exp %94 : vector<9x9xf32>
    %cst_28 = arith.constant dense<0.000000e+00> : vector<9xf32>
    %96 = vector.multi_reduction <add>, %95, %cst_28 [1] : vector<9x9xf32> to vector<9xf32>
    %97 = vector.shape_cast %96 : vector<9xf32> to vector<9x1xf32>
    %98 = tpu.reciprocal %97 {approx = true} : vector<9x1xf32> -> vector<9x1xf32>
    %99 = vector.broadcast %98 : vector<9x1xf32> to vector<9x9xf32>
    %100 = arith.mulf %95, %99 : vector<9x9xf32>
    %101 = arith.truncf %100 : vector<9x9xf32> to vector<9x9xbf16>
    %cst_29 = arith.constant dense<0.000000e+00> : vector<9x8xf32>
    %102 = tpu.matmul %101, %89, %cst_29 {dimension_numbers = #tpu.dot_dimension_numbers<[1], [0], [0], [1], [0, 0, 1, 1], [], []>} : vector<9x9xbf16>, vector<9x8xbf16>, vector<9x8xf32> -> vector<9x8xf32>
    %103 = vector.extract_strided_slice %43 {offsets = [0, 24], sizes = [9, 8], strides = [1, 1]} : vector<9x32xf32> to vector<9x8xf32>
    %104 = arith.truncf %103 : vector<9x8xf32> to vector<9x8xbf16>
    %105 = vector.extract_strided_slice %44 {offsets = [0, 24], sizes = [9, 8], strides = [1, 1]} : vector<9x32xf32> to vector<9x8xf32>
    %106 = arith.truncf %105 : vector<9x8xf32> to vector<9x8xbf16>
    %107 = vector.extract_strided_slice %45 {offsets = [0, 24], sizes = [9, 8], strides = [1, 1]} : vector<9x32xf32> to vector<9x8xf32>
    %108 = arith.truncf %107 : vector<9x8xf32> to vector<9x8xbf16>
    %cst_30 = arith.constant dense<0.000000e+00> : vector<9x9xf32>
    %109 = tpu.matmul %104, %106, %cst_30 {dimension_numbers = #tpu.dot_dimension_numbers<[1], [1], [0], [0], [0, 0, 1, 0], [], []>} : vector<9x8xbf16>, vector<9x8xbf16>, vector<9x9xf32> -> vector<9x9xf32>
    %cst_31 = arith.constant dense<0xFF800000> : vector<9xf32>
    %110 = vector.multi_reduction <maximumf>, %109, %cst_31 [1] : vector<9x9xf32> to vector<9xf32>
    %111 = vector.shape_cast %110 : vector<9xf32> to vector<9x1xf32>
    %112 = vector.broadcast %111 : vector<9x1xf32> to vector<9x9xf32>
    %113 = arith.subf %109, %112 : vector<9x9xf32>
    %114 = math.exp %113 : vector<9x9xf32>
    %cst_32 = arith.constant dense<0.000000e+00> : vector<9xf32>
    %115 = vector.multi_reduction <add>, %114, %cst_32 [1] : vector<9x9xf32> to vector<9xf32>
    %116 = vector.shape_cast %115 : vector<9xf32> to vector<9x1xf32>
    %117 = tpu.reciprocal %116 {approx = true} : vector<9x1xf32> -> vector<9x1xf32>
    %118 = vector.broadcast %117 : vector<9x1xf32> to vector<9x9xf32>
    %119 = arith.mulf %114, %118 : vector<9x9xf32>
    %120 = arith.truncf %119 : vector<9x9xf32> to vector<9x9xbf16>
    %cst_33 = arith.constant dense<0.000000e+00> : vector<9x8xf32>
    %121 = tpu.matmul %120, %108, %cst_33 {dimension_numbers = #tpu.dot_dimension_numbers<[1], [0], [0], [1], [0, 0, 1, 1], [], []>} : vector<9x9xbf16>, vector<9x8xbf16>, vector<9x8xf32> -> vector<9x8xf32>
    %122 = tpu.concatenate %64, %83, %102, %121 in 1 : vector<9x8xf32>, vector<9x8xf32>, vector<9x8xf32>, vector<9x8xf32> -> vector<9x32xf32>
    %123 = arith.truncf %122 : vector<9x32xf32> to vector<9x32xbf16>
    %c0_34 = arith.constant 0 : index
    %c0_35 = arith.constant 0 : index
    %124 = vector.load %arg6[%c0_34, %c0_35] : memref<32x32xbf16, #tpu.memory_space<vmem>>, vector<32x32xbf16>
    %cst_36 = arith.constant dense<0.000000e+00> : vector<9x32xf32>
    %125 = tpu.matmul %123, %124, %cst_36 {dimension_numbers = #tpu.dot_dimension_numbers<[1], [0], [0], [1], [0, 0, 1, 1], [], []>} : vector<9x32xbf16>, vector<32x32xbf16>, vector<9x32xf32> -> vector<9x32xf32>
    %126 = arith.addf %10, %125 : vector<9x32xf32>
    %c0_37 = arith.constant 0 : index
    %c0_38 = arith.constant 0 : index
    %127 = vector.load %arg7[%c0_37, %c0_38] : memref<1x32xf32, #tpu.memory_space<vmem>>, vector<1x32xf32>
    %128 = vector.broadcast %127 : vector<1x32xf32> to vector<9x32xf32>
    %129 = arith.addf %126, %128 : vector<9x32xf32>
    %c0_39 = arith.constant 0 : index
    %c0_40 = arith.constant 0 : index
    %130 = vector.load %arg8[%c0_39, %c0_40] : memref<1x32xf32, #tpu.memory_space<vmem>>, vector<1x32xf32>
    %c0_41 = arith.constant 0 : index
    %c0_42 = arith.constant 0 : index
    %131 = vector.load %arg9[%c0_41, %c0_42] : memref<1x32xf32, #tpu.memory_space<vmem>>, vector<1x32xf32>
    %cst_43 = arith.constant dense<0.000000e+00> : vector<9xf32>
    %132 = vector.multi_reduction <add>, %129, %cst_43 [1] : vector<9x32xf32> to vector<9xf32>
    %133 = vector.shape_cast %132 : vector<9xf32> to vector<9x1xf32>
    %cst_44 = arith.constant 3.200000e+01 : f32
    %134 = vector.broadcast %cst_44 : f32 to vector<9x1xf32>
    %135 = arith.divf %133, %134 : vector<9x1xf32>
    %136 = vector.broadcast %135 : vector<9x1xf32> to vector<9x32xf32>
    %137 = arith.subf %129, %136 : vector<9x32xf32>
    %138 = arith.mulf %137, %137 : vector<9x32xf32>
    %cst_45 = arith.constant dense<0.000000e+00> : vector<9xf32>
    %139 = vector.multi_reduction <add>, %138, %cst_45 [1] : vector<9x32xf32> to vector<9xf32>
    %140 = vector.shape_cast %139 : vector<9xf32> to vector<9x1xf32>
    %cst_46 = arith.constant 3.200000e+01 : f32
    %141 = vector.broadcast %cst_46 : f32 to vector<9x1xf32>
    %142 = arith.divf %140, %141 : vector<9x1xf32>
    %143 = vector.broadcast %135 : vector<9x1xf32> to vector<9x32xf32>
    %144 = arith.subf %129, %143 : vector<9x32xf32>
    %cst_47 = arith.constant 9.99999974E-6 : f32
    %145 = vector.broadcast %cst_47 : f32 to vector<9x1xf32>
    %146 = arith.addf %142, %145 : vector<9x1xf32>
    %147 = math.rsqrt %146 : vector<9x1xf32>
    %148 = vector.broadcast %147 : vector<9x1xf32> to vector<9x32xf32>
    %149 = arith.mulf %144, %148 : vector<9x32xf32>
    %150 = vector.broadcast %130 : vector<1x32xf32> to vector<9x32xf32>
    %151 = arith.mulf %149, %150 : vector<9x32xf32>
    %152 = vector.broadcast %131 : vector<1x32xf32> to vector<9x32xf32>
    %153 = arith.addf %151, %152 : vector<9x32xf32>
    %154 = arith.truncf %153 : vector<9x32xf32> to vector<9x32xbf16>
    %cst_48 = arith.constant 0.000000e+00 : f32
    %155 = vector.broadcast %cst_48 : f32 to vector<9x32xf32>
    %c0_49 = arith.constant 0 : index
    %c0_50 = arith.constant 0 : index
    %156 = vector.load %arg10[%c0_49, %c0_50] : memref<32x128xbf16, #tpu.memory_space<vmem>>, vector<32x128xbf16>
    %cst_51 = arith.constant dense<0.000000e+00> : vector<9x128xf32>
    %157 = tpu.matmul %154, %156, %cst_51 {dimension_numbers = #tpu.dot_dimension_numbers<[1], [0], [0], [1], [0, 0, 1, 1], [], []>} : vector<9x32xbf16>, vector<32x128xbf16>, vector<9x128xf32> -> vector<9x128xf32>
    %c0_52 = arith.constant 0 : index
    %c0_53 = arith.constant 0 : index
    %158 = vector.load %arg11[%c0_52, %c0_53] : memref<1x128xf32, #tpu.memory_space<vmem>>, vector<1x128xf32>
    %159 = vector.broadcast %158 : vector<1x128xf32> to vector<9x128xf32>
    %160 = arith.addf %157, %159 : vector<9x128xf32>
    %cst_54 = arith.constant 1.702000e+00 : f32
    %161 = vector.broadcast %cst_54 : f32 to vector<9x128xf32>
    %162 = arith.mulf %161, %160 : vector<9x128xf32>
    %163 = arith.negf %162 : vector<9x128xf32>
    %164 = math.exp %163 : vector<9x128xf32>
    %cst_55 = arith.constant 1.000000e+00 : f32
    %165 = vector.broadcast %cst_55 : f32 to vector<9x128xf32>
    %166 = arith.addf %165, %164 : vector<9x128xf32>
    %167 = arith.divf %165, %166 : vector<9x128xf32>
    %168 = arith.mulf %160, %167 : vector<9x128xf32>
    %169 = arith.truncf %168 : vector<9x128xf32> to vector<9x128xbf16>
    %c0_56 = arith.constant 0 : index
    %c0_57 = arith.constant 0 : index
    %170 = vector.load %arg12[%c0_56, %c0_57] : memref<128x32xbf16, #tpu.memory_space<vmem>>, vector<128x32xbf16>
    %cst_58 = arith.constant dense<0.000000e+00> : vector<9x32xf32>
    %171 = tpu.matmul %169, %170, %cst_58 {dimension_numbers = #tpu.dot_dimension_numbers<[1], [0], [0], [1], [0, 0, 1, 1], [], []>} : vector<9x128xbf16>, vector<128x32xbf16>, vector<9x32xf32> -> vector<9x32xf32>
    %172 = arith.addf %155, %171 : vector<9x32xf32>
    %173 = arith.addf %129, %172 : vector<9x32xf32>
    %c0_59 = arith.constant 0 : index
    %c0_60 = arith.constant 0 : index
    %174 = vector.load %arg13[%c0_59, %c0_60] : memref<1x32xf32, #tpu.memory_space<vmem>>, vector<1x32xf32>
    %175 = vector.broadcast %174 : vector<1x32xf32> to vector<9x32xf32>
    %176 = arith.addf %173, %175 : vector<9x32xf32>
    %177 = arith.truncf %176 : vector<9x32xf32> to vector<9x32xbf16>
    %c0_61 = arith.constant 0 : index
    %c0_62 = arith.constant 0 : index
    %c0_63 = arith.constant 0 : index
    %178 = vector.load %arg15[%c0_61, %c0_62, %c0_63] : memref<1x9x32xbf16, #tpu.memory_space<vmem>>, vector<1x9x32xbf16>
    %179 = vector.shape_cast %178 : vector<1x9x32xbf16> to vector<9x32xbf16>
    %180 = vector.shape_cast %177 : vector<9x32xbf16> to vector<1x9x32xbf16>
    tpu.vector_store %arg15[%c0_61, %c0_62, %c0_63], %180 {strides = array<i32>} : memref<1x9x32xbf16, #tpu.memory_space<vmem>>, vector<1x9x32xbf16>,
    return
  }
  func.func @transform_0(%arg0: i32) -> (i32, i32, i32) {
    %c0_i32 = arith.constant 0 : i32
    %c0_i32_0 = arith.constant 0 : i32
    %c0_i32_1 = arith.constant 0 : i32
    return %arg0, %c0_i32, %c0_i32_0 : i32, i32, i32
  }
  func.func @transform_1(%arg0: i32) -> (i32, i32) {
    %c0_i32 = arith.constant 0 : i32
    %c0_i32_0 = arith.constant 0 : i32
    %c0_i32_1 = arith.constant 0 : i32
    return %c0_i32, %c0_i32_0 : i32, i32
  }
  func.func @transform_2(%arg0: i32) -> (i32, i32) {
    %c0_i32 = arith.constant 0 : i32
    %c0_i32_0 = arith.constant 0 : i32
    %c0_i32_1 = arith.constant 0 : i32
    return %c0_i32, %c0_i32_0 : i32, i32
  }
  func.func @transform_3(%arg0: i32) -> (i32, i32) {
    %c0_i32 = arith.constant 0 : i32
    %c0_i32_0 = arith.constant 0 : i32
    %c0_i32_1 = arith.constant 0 : i32
    return %c0_i32, %c0_i32_0 : i32, i32
  }
  func.func @transform_4(%arg0: i32) -> (i32, i32) {
    %c0_i32 = arith.constant 0 : i32
    %c0_i32_0 = arith.constant 0 : i32
    %c0_i32_1 = arith.constant 0 : i32
    return %c0_i32, %c0_i32_0 : i32, i32
  }
  func.func @transform_5(%arg0: i32) -> (i32, i32) {
    %c0_i32 = arith.constant 0 : i32
    %c0_i32_0 = arith.constant 0 : i32
    %c0_i32_1 = arith.constant 0 : i32
    return %c0_i32, %c0_i32_0 : i32, i32
  }
  func.func @transform_6(%arg0: i32) -> (i32, i32) {
    %c0_i32 = arith.constant 0 : i32
    %c0_i32_0 = arith.constant 0 : i32
    %c0_i32_1 = arith.constant 0 : i32
    return %c0_i32, %c0_i32_0 : i32, i32
  }
  func.func @transform_7(%arg0: i32) -> (i32, i32) {
    %c0_i32 = arith.constant 0 : i32
    %c0_i32_0 = arith.constant 0 : i32
    %c0_i32_1 = arith.constant 0 : i32
    return %c0_i32, %c0_i32_0 : i32, i32
  }
  func.func @transform_8(%arg0: i32) -> (i32, i32) {
    %c0_i32 = arith.constant 0 : i32
    %c0_i32_0 = arith.constant 0 : i32
    %c0_i32_1 = arith.constant 0 : i32
    return %c0_i32, %c0_i32_0 : i32, i32
  }
  func.func @transform_9(%arg0: i32) -> (i32, i32) {
    %c0_i32 = arith.constant 0 : i32
    %c0_i32_0 = arith.constant 0 : i32
    %c0_i32_1 = arith.constant 0 : i32
    return %c0_i32, %c0_i32_0 : i32, i32
  }
  func.func @transform_10(%arg0: i32) -> (i32, i32) {
    %c0_i32 = arith.constant 0 : i32
    %c0_i32_0 = arith.constant 0 : i32
    %c0_i32_1 = arith.constant 0 : i32
    return %c0_i32, %c0_i32_0 : i32, i32
  }
  func.func @transform_11(%arg0: i32) -> (i32, i32) {
    %c0_i32 = arith.constant 0 : i32
    %c0_i32_0 = arith.constant 0 : i32
    %c0_i32_1 = arith.constant 0 : i32
    return %c0_i32, %c0_i32_0 : i32, i32
  }
  func.func @transform_12(%arg0: i32) -> (i32, i32) {
    %c0_i32 = arith.constant 0 : i32
    %c0_i32_0 = arith.constant 0 : i32
    %c0_i32_1 = arith.constant 0 : i32
    return %c0_i32, %c0_i32_0 : i32, i32
  }
  func.func @transform_13(%arg0: i32) -> (i32, i32) {
    %c0_i32 = arith.constant 0 : i32
    %c0_i32_0 = arith.constant 0 : i32
    %c0_i32_1 = arith.constant 0 : i32
    return %c0_i32, %c0_i32_0 : i32, i32
  }
  func.func @transform_14(%arg0: i32) -> (i32, i32, i32) {
    %c0_i32 = arith.constant 0 : i32
    %c0_i32_0 = arith.constant 0 : i32
    %c0_i32_1 = arith.constant 0 : i32
    return %arg0, %c0_i32, %c0_i32_0 : i32, i32, i32
  }
}

module attributes {stable_mosaic.version = 11 : i64} {
  func.func @_patch_embed_kernel(%arg0: i32, %arg1: memref<1x4x256xbf16, #tpu.memory_space<vmem>>, %arg2: memref<256x32xbf16, #tpu.memory_space<vmem>>, %arg3: memref<4x32xf32, #tpu.memory_space<vmem>>, %arg4: memref<1x4x32xbf16, #tpu.memory_space<vmem>>) attributes {dimension_semantics = [#tpu.dimension_semantics<parallel>], iteration_bounds = array<i64: 2>, scalar_prefetch = 0 : i64, scratch_operands = 0 : i64, tpu.core_type = #tpu.core_type<tc>, window_params = [{transform_indices = @transform_0, window_bounds = array<i64: 1, 4, 256>}, {pipeline_mode = #tpu.pipeline_mode<synchronous>, transform_indices = @transform_1, window_bounds = array<i64: 256, 32>}, {pipeline_mode = #tpu.pipeline_mode<synchronous>, transform_indices = @transform_2, window_bounds = array<i64: 4, 32>}, {transform_indices = @transform_3, window_bounds = array<i64: 1, 4, 32>}]} {
    %c0 = arith.constant 0 : index
    %c0_0 = arith.constant 0 : index
    %c0_1 = arith.constant 0 : index
    %0 = vector.load %arg1[%c0, %c0_0, %c0_1] : memref<1x4x256xbf16, #tpu.memory_space<vmem>>, vector<1x4x256xbf16>
    %1 = vector.shape_cast %0 : vector<1x4x256xbf16> to vector<4x256xbf16>
    %c0_2 = arith.constant 0 : index
    %c0_3 = arith.constant 0 : index
    %2 = vector.load %arg2[%c0_2, %c0_3] : memref<256x32xbf16, #tpu.memory_space<vmem>>, vector<256x32xbf16>
    %cst = arith.constant dense<0.000000e+00> : vector<4x32xf32>
    %3 = tpu.matmul %1, %2, %cst {dimension_numbers = #tpu.dot_dimension_numbers<[1], [0], [0], [1], [0, 0, 1, 1], [], []>} : vector<4x256xbf16>, vector<256x32xbf16>, vector<4x32xf32> -> vector<4x32xf32>
    %c0_4 = arith.constant 0 : index
    %c0_5 = arith.constant 0 : index
    %4 = vector.load %arg3[%c0_4, %c0_5] : memref<4x32xf32, #tpu.memory_space<vmem>>, vector<4x32xf32>
    %5 = arith.addf %3, %4 : vector<4x32xf32>
    %6 = arith.truncf %5 : vector<4x32xf32> to vector<4x32xbf16>
    %c0_6 = arith.constant 0 : index
    %c0_7 = arith.constant 0 : index
    %c0_8 = arith.constant 0 : index
    %7 = vector.load %arg4[%c0_6, %c0_7, %c0_8] : memref<1x4x32xbf16, #tpu.memory_space<vmem>>, vector<1x4x32xbf16>
    %8 = vector.shape_cast %7 : vector<1x4x32xbf16> to vector<4x32xbf16>
    %9 = vector.shape_cast %6 : vector<4x32xbf16> to vector<1x4x32xbf16>
    tpu.vector_store %arg4[%c0_6, %c0_7, %c0_8], %9 {strides = array<i32>} : memref<1x4x32xbf16, #tpu.memory_space<vmem>>, vector<1x4x32xbf16>,
    return
  }
  func.func @transform_0(%arg0: i32) -> (i32, i32, i32) {
    %c0_i32 = arith.constant 0 : i32
    %c0_i32_0 = arith.constant 0 : i32
    %c0_i32_1 = arith.constant 0 : i32
    return %arg0, %c0_i32, %c0_i32_0 : i32, i32, i32
  }
  func.func @transform_1(%arg0: i32) -> (i32, i32) {
    %c0_i32 = arith.constant 0 : i32
    %c0_i32_0 = arith.constant 0 : i32
    %c0_i32_1 = arith.constant 0 : i32
    return %c0_i32, %c0_i32_0 : i32, i32
  }
  func.func @transform_2(%arg0: i32) -> (i32, i32) {
    %c0_i32 = arith.constant 0 : i32
    %c0_i32_0 = arith.constant 0 : i32
    %c0_i32_1 = arith.constant 0 : i32
    return %c0_i32, %c0_i32_0 : i32, i32
  }
  func.func @transform_3(%arg0: i32) -> (i32, i32, i32) {
    %c0_i32 = arith.constant 0 : i32
    %c0_i32_0 = arith.constant 0 : i32
    %c0_i32_1 = arith.constant 0 : i32
    return %arg0, %c0_i32, %c0_i32_0 : i32, i32, i32
  }
}

module attributes {stable_mosaic.version = 11 : i64} {
  func.func @_head_kernel(%arg0: i32, %arg1: memref<2x32xbf16, #tpu.memory_space<vmem>>, %arg2: memref<1x32xf32, #tpu.memory_space<vmem>>, %arg3: memref<1x32xf32, #tpu.memory_space<vmem>>, %arg4: memref<32x16xbf16, #tpu.memory_space<vmem>>, %arg5: memref<2x16xf32, #tpu.memory_space<vmem>>) attributes {dimension_semantics = [#tpu.dimension_semantics<arbitrary>], iteration_bounds = array<i64: 1>, scalar_prefetch = 0 : i64, scratch_operands = 0 : i64, tpu.core_type = #tpu.core_type<tc>, window_params = [{pipeline_mode = #tpu.pipeline_mode<synchronous>, transform_indices = @transform_0, window_bounds = array<i64: 2, 32>}, {pipeline_mode = #tpu.pipeline_mode<synchronous>, transform_indices = @transform_1, window_bounds = array<i64: 1, 32>}, {pipeline_mode = #tpu.pipeline_mode<synchronous>, transform_indices = @transform_2, window_bounds = array<i64: 1, 32>}, {pipeline_mode = #tpu.pipeline_mode<synchronous>, transform_indices = @transform_3, window_bounds = array<i64: 32, 16>}, {pipeline_mode = #tpu.pipeline_mode<synchronous>, transform_indices = @transform_4, window_bounds = array<i64: 2, 16>}]} {
    %c0 = arith.constant 0 : index
    %c0_0 = arith.constant 0 : index
    %0 = vector.load %arg1[%c0, %c0_0] : memref<2x32xbf16, #tpu.memory_space<vmem>>, vector<2x32xbf16>
    %1 = arith.extf %0 : vector<2x32xbf16> to vector<2x32xf32>
    %c0_1 = arith.constant 0 : index
    %c0_2 = arith.constant 0 : index
    %2 = vector.load %arg2[%c0_1, %c0_2] : memref<1x32xf32, #tpu.memory_space<vmem>>, vector<1x32xf32>
    %c0_3 = arith.constant 0 : index
    %c0_4 = arith.constant 0 : index
    %3 = vector.load %arg3[%c0_3, %c0_4] : memref<1x32xf32, #tpu.memory_space<vmem>>, vector<1x32xf32>
    %cst = arith.constant dense<0.000000e+00> : vector<2xf32>
    %4 = vector.multi_reduction <add>, %1, %cst [1] : vector<2x32xf32> to vector<2xf32>
    %5 = vector.shape_cast %4 : vector<2xf32> to vector<2x1xf32>
    %cst_5 = arith.constant 3.200000e+01 : f32
    %6 = vector.broadcast %cst_5 : f32 to vector<2x1xf32>
    %7 = arith.divf %5, %6 : vector<2x1xf32>
    %8 = vector.broadcast %7 : vector<2x1xf32> to vector<2x32xf32>
    %9 = arith.subf %1, %8 : vector<2x32xf32>
    %10 = arith.mulf %9, %9 : vector<2x32xf32>
    %cst_6 = arith.constant dense<0.000000e+00> : vector<2xf32>
    %11 = vector.multi_reduction <add>, %10, %cst_6 [1] : vector<2x32xf32> to vector<2xf32>
    %12 = vector.shape_cast %11 : vector<2xf32> to vector<2x1xf32>
    %cst_7 = arith.constant 3.200000e+01 : f32
    %13 = vector.broadcast %cst_7 : f32 to vector<2x1xf32>
    %14 = arith.divf %12, %13 : vector<2x1xf32>
    %15 = vector.broadcast %7 : vector<2x1xf32> to vector<2x32xf32>
    %16 = arith.subf %1, %15 : vector<2x32xf32>
    %cst_8 = arith.constant 9.99999974E-6 : f32
    %17 = vector.broadcast %cst_8 : f32 to vector<2x1xf32>
    %18 = arith.addf %14, %17 : vector<2x1xf32>
    %19 = math.rsqrt %18 : vector<2x1xf32>
    %20 = vector.broadcast %19 : vector<2x1xf32> to vector<2x32xf32>
    %21 = arith.mulf %16, %20 : vector<2x32xf32>
    %22 = vector.broadcast %2 : vector<1x32xf32> to vector<2x32xf32>
    %23 = arith.mulf %21, %22 : vector<2x32xf32>
    %24 = vector.broadcast %3 : vector<1x32xf32> to vector<2x32xf32>
    %25 = arith.addf %23, %24 : vector<2x32xf32>
    %26 = arith.truncf %25 : vector<2x32xf32> to vector<2x32xbf16>
    %c0_9 = arith.constant 0 : index
    %c0_10 = arith.constant 0 : index
    %27 = vector.load %arg4[%c0_9, %c0_10] : memref<32x16xbf16, #tpu.memory_space<vmem>>, vector<32x16xbf16>
    %cst_11 = arith.constant dense<0.000000e+00> : vector<2x16xf32>
    %28 = tpu.matmul %26, %27, %cst_11 {dimension_numbers = #tpu.dot_dimension_numbers<[1], [0], [0], [1], [0, 0, 1, 1], [], []>} : vector<2x32xbf16>, vector<32x16xbf16>, vector<2x16xf32> -> vector<2x16xf32>
    %c0_12 = arith.constant 0 : index
    %c0_13 = arith.constant 0 : index
    %29 = vector.load %arg5[%c0_12, %c0_13] : memref<2x16xf32, #tpu.memory_space<vmem>>, vector<2x16xf32>
    tpu.vector_store %arg5[%c0_12, %c0_13], %28 {strides = array<i32>} : memref<2x16xf32, #tpu.memory_space<vmem>>, vector<2x16xf32>,
    return
  }
  func.func @transform_0(%arg0: i32) -> (i32, i32) {
    %c0_i32 = arith.constant 0 : i32
    %c0_i32_0 = arith.constant 0 : i32
    %c0_i32_1 = arith.constant 0 : i32
    return %c0_i32, %c0_i32_0 : i32, i32
  }
  func.func @transform_1(%arg0: i32) -> (i32, i32) {
    %c0_i32 = arith.constant 0 : i32
    %c0_i32_0 = arith.constant 0 : i32
    %c0_i32_1 = arith.constant 0 : i32
    return %c0_i32, %c0_i32_0 : i32, i32
  }
  func.func @transform_2(%arg0: i32) -> (i32, i32) {
    %c0_i32 = arith.constant 0 : i32
    %c0_i32_0 = arith.constant 0 : i32
    %c0_i32_1 = arith.constant 0 : i32
    return %c0_i32, %c0_i32_0 : i32, i32
  }
  func.func @transform_3(%arg0: i32) -> (i32, i32) {
    %c0_i32 = arith.constant 0 : i32
    %c0_i32_0 = arith.constant 0 : i32
    %c0_i32_1 = arith.constant 0 : i32
    return %c0_i32, %c0_i32_0 : i32, i32
  }
  func.func @transform_4(%arg0: i32) -> (i32, i32) {
    %c0_i32 = arith.constant 0 : i32
    %c0_i32_0 = arith.constant 0 : i32
    %c0_i32_1 = arith.constant 0 : i32
    return %c0_i32, %c0_i32_0 : i32, i32
  }
}

module attributes {stable_mosaic.version = 11 : i64} {
  func.func @_block_kernel(%arg0: i32, %arg1: memref<1x9x32xbf16, #tpu.memory_space<vmem>>, %arg2: memref<1x32xf32, #tpu.memory_space<vmem>>, %arg3: memref<1x32xf32, #tpu.memory_space<vmem>>, %arg4: memref<32x96xbf16, #tpu.memory_space<vmem>>, %arg5: memref<1x96xf32, #tpu.memory_space<vmem>>, %arg6: memref<32x32xbf16, #tpu.memory_space<vmem>>, %arg7: memref<1x32xf32, #tpu.memory_space<vmem>>, %arg8: memref<1x32xf32, #tpu.memory_space<vmem>>, %arg9: memref<1x32xf32, #tpu.memory_space<vmem>>, %arg10: memref<32x128xbf16, #tpu.memory_space<vmem>>, %arg11: memref<1x128xf32, #tpu.memory_space<vmem>>, %arg12: memref<128x32xbf16, #tpu.memory_space<vmem>>, %arg13: memref<1x32xf32, #tpu.memory_space<vmem>>, %arg14: memref<1x32xf32, #tpu.memory_space<vmem>>, %arg15: memref<1x32xf32, #tpu.memory_space<vmem>>, %arg16: memref<1x9x32xbf16, #tpu.memory_space<vmem>>) attributes {dimension_semantics = [#tpu.dimension_semantics<parallel>], iteration_bounds = array<i64: 2>, scalar_prefetch = 0 : i64, scratch_operands = 0 : i64, tpu.core_type = #tpu.core_type<tc>, window_params = [{transform_indices = @transform_0, window_bounds = array<i64: 1, 9, 32>}, {pipeline_mode = #tpu.pipeline_mode<synchronous>, transform_indices = @transform_1, window_bounds = array<i64: 1, 32>}, {pipeline_mode = #tpu.pipeline_mode<synchronous>, transform_indices = @transform_2, window_bounds = array<i64: 1, 32>}, {pipeline_mode = #tpu.pipeline_mode<synchronous>, transform_indices = @transform_3, window_bounds = array<i64: 32, 96>}, {pipeline_mode = #tpu.pipeline_mode<synchronous>, transform_indices = @transform_4, window_bounds = array<i64: 1, 96>}, {pipeline_mode = #tpu.pipeline_mode<synchronous>, transform_indices = @transform_5, window_bounds = array<i64: 32, 32>}, {pipeline_mode = #tpu.pipeline_mode<synchronous>, transform_indices = @transform_6, window_bounds = array<i64: 1, 32>}, {pipeline_mode = #tpu.pipeline_mode<synchronous>, transform_indices = @transform_7, window_bounds = array<i64: 1, 32>}, {pipeline_mode = #tpu.pipeline_mode<synchronous>, transform_indices = @transform_8, window_bounds = array<i64: 1, 32>}, {pipeline_mode = #tpu.pipeline_mode<synchronous>, transform_indices = @transform_9, window_bounds = array<i64: 32, 128>}, {pipeline_mode = #tpu.pipeline_mode<synchronous>, transform_indices = @transform_10, window_bounds = array<i64: 1, 128>}, {pipeline_mode = #tpu.pipeline_mode<synchronous>, transform_indices = @transform_11, window_bounds = array<i64: 128, 32>}, {pipeline_mode = #tpu.pipeline_mode<synchronous>, transform_indices = @transform_12, window_bounds = array<i64: 1, 32>}, {pipeline_mode = #tpu.pipeline_mode<synchronous>, transform_indices = @transform_13, window_bounds = array<i64: 1, 32>}, {pipeline_mode = #tpu.pipeline_mode<synchronous>, transform_indices = @transform_14, window_bounds = array<i64: 1, 32>}, {transform_indices = @transform_15, window_bounds = array<i64: 1, 9, 32>}]} {
    %c0 = arith.constant 0 : index
    %c0_0 = arith.constant 0 : index
    %c0_1 = arith.constant 0 : index
    %0 = vector.load %arg1[%c0, %c0_0, %c0_1] : memref<1x9x32xbf16, #tpu.memory_space<vmem>>, vector<1x9x32xbf16>
    %1 = vector.shape_cast %0 : vector<1x9x32xbf16> to vector<9x32xbf16>
    %2 = arith.extf %1 : vector<9x32xbf16> to vector<9x32xf32>
    %c0_2 = arith.constant 0 : index
    %c0_3 = arith.constant 0 : index
    %3 = vector.load %arg14[%c0_2, %c0_3] : memref<1x32xf32, #tpu.memory_space<vmem>>, vector<1x32xf32>
    %c0_4 = arith.constant 0 : index
    %c0_5 = arith.constant 0 : index
    %4 = vector.load %arg15[%c0_4, %c0_5] : memref<1x32xf32, #tpu.memory_space<vmem>>, vector<1x32xf32>
    %cst = arith.constant dense<0.000000e+00> : vector<9xf32>
    %5 = vector.multi_reduction <add>, %2, %cst [1] : vector<9x32xf32> to vector<9xf32>
    %6 = vector.shape_cast %5 : vector<9xf32> to vector<9x1xf32>
    %cst_6 = arith.constant 3.200000e+01 : f32
    %7 = vector.broadcast %cst_6 : f32 to vector<9x1xf32>
    %8 = arith.divf %6, %7 : vector<9x1xf32>
    %9 = vector.broadcast %8 : vector<9x1xf32> to vector<9x32xf32>
    %10 = arith.subf %2, %9 : vector<9x32xf32>
    %11 = arith.mulf %10, %10 : vector<9x32xf32>
    %cst_7 = arith.constant dense<0.000000e+00> : vector<9xf32>
    %12 = vector.multi_reduction <add>, %11, %cst_7 [1] : vector<9x32xf32> to vector<9xf32>
    %13 = vector.shape_cast %12 : vector<9xf32> to vector<9x1xf32>
    %cst_8 = arith.constant 3.200000e+01 : f32
    %14 = vector.broadcast %cst_8 : f32 to vector<9x1xf32>
    %15 = arith.divf %13, %14 : vector<9x1xf32>
    %16 = vector.broadcast %8 : vector<9x1xf32> to vector<9x32xf32>
    %17 = arith.subf %2, %16 : vector<9x32xf32>
    %cst_9 = arith.constant 9.99999974E-6 : f32
    %18 = vector.broadcast %cst_9 : f32 to vector<9x1xf32>
    %19 = arith.addf %15, %18 : vector<9x1xf32>
    %20 = math.rsqrt %19 : vector<9x1xf32>
    %21 = vector.broadcast %20 : vector<9x1xf32> to vector<9x32xf32>
    %22 = arith.mulf %17, %21 : vector<9x32xf32>
    %23 = vector.broadcast %3 : vector<1x32xf32> to vector<9x32xf32>
    %24 = arith.mulf %22, %23 : vector<9x32xf32>
    %25 = vector.broadcast %4 : vector<1x32xf32> to vector<9x32xf32>
    %26 = arith.addf %24, %25 : vector<9x32xf32>
    %c0_10 = arith.constant 0 : index
    %c0_11 = arith.constant 0 : index
    %27 = vector.load %arg2[%c0_10, %c0_11] : memref<1x32xf32, #tpu.memory_space<vmem>>, vector<1x32xf32>
    %c0_12 = arith.constant 0 : index
    %c0_13 = arith.constant 0 : index
    %28 = vector.load %arg3[%c0_12, %c0_13] : memref<1x32xf32, #tpu.memory_space<vmem>>, vector<1x32xf32>
    %cst_14 = arith.constant dense<0.000000e+00> : vector<9xf32>
    %29 = vector.multi_reduction <add>, %26, %cst_14 [1] : vector<9x32xf32> to vector<9xf32>
    %30 = vector.shape_cast %29 : vector<9xf32> to vector<9x1xf32>
    %cst_15 = arith.constant 3.200000e+01 : f32
    %31 = vector.broadcast %cst_15 : f32 to vector<9x1xf32>
    %32 = arith.divf %30, %31 : vector<9x1xf32>
    %33 = vector.broadcast %32 : vector<9x1xf32> to vector<9x32xf32>
    %34 = arith.subf %26, %33 : vector<9x32xf32>
    %35 = arith.mulf %34, %34 : vector<9x32xf32>
    %cst_16 = arith.constant dense<0.000000e+00> : vector<9xf32>
    %36 = vector.multi_reduction <add>, %35, %cst_16 [1] : vector<9x32xf32> to vector<9xf32>
    %37 = vector.shape_cast %36 : vector<9xf32> to vector<9x1xf32>
    %cst_17 = arith.constant 3.200000e+01 : f32
    %38 = vector.broadcast %cst_17 : f32 to vector<9x1xf32>
    %39 = arith.divf %37, %38 : vector<9x1xf32>
    %40 = vector.broadcast %32 : vector<9x1xf32> to vector<9x32xf32>
    %41 = arith.subf %26, %40 : vector<9x32xf32>
    %cst_18 = arith.constant 9.99999974E-6 : f32
    %42 = vector.broadcast %cst_18 : f32 to vector<9x1xf32>
    %43 = arith.addf %39, %42 : vector<9x1xf32>
    %44 = math.rsqrt %43 : vector<9x1xf32>
    %45 = vector.broadcast %44 : vector<9x1xf32> to vector<9x32xf32>
    %46 = arith.mulf %41, %45 : vector<9x32xf32>
    %47 = vector.broadcast %27 : vector<1x32xf32> to vector<9x32xf32>
    %48 = arith.mulf %46, %47 : vector<9x32xf32>
    %49 = vector.broadcast %28 : vector<1x32xf32> to vector<9x32xf32>
    %50 = arith.addf %48, %49 : vector<9x32xf32>
    %51 = arith.truncf %50 : vector<9x32xf32> to vector<9x32xbf16>
    %c0_19 = arith.constant 0 : index
    %c0_20 = arith.constant 0 : index
    %52 = vector.load %arg4[%c0_19, %c0_20] : memref<32x96xbf16, #tpu.memory_space<vmem>>, vector<32x96xbf16>
    %cst_21 = arith.constant dense<0.000000e+00> : vector<9x96xf32>
    %53 = tpu.matmul %51, %52, %cst_21 {dimension_numbers = #tpu.dot_dimension_numbers<[1], [0], [0], [1], [0, 0, 1, 1], [], []>} : vector<9x32xbf16>, vector<32x96xbf16>, vector<9x96xf32> -> vector<9x96xf32>
    %c0_22 = arith.constant 0 : index
    %c0_23 = arith.constant 0 : index
    %54 = vector.load %arg5[%c0_22, %c0_23] : memref<1x96xf32, #tpu.memory_space<vmem>>, vector<1x96xf32>
    %55 = vector.broadcast %54 : vector<1x96xf32> to vector<9x96xf32>
    %56 = arith.addf %53, %55 : vector<9x96xf32>
    %57 = vector.extract_strided_slice %56 {offsets = [0, 0], sizes = [9, 32], strides = [1, 1]} : vector<9x96xf32> to vector<9x32xf32>
    %cst_24 = arith.constant 0.353553385 : f32
    %58 = vector.broadcast %cst_24 : f32 to vector<9x32xf32>
    %59 = arith.mulf %57, %58 : vector<9x32xf32>
    %60 = vector.extract_strided_slice %56 {offsets = [0, 32], sizes = [9, 32], strides = [1, 1]} : vector<9x96xf32> to vector<9x32xf32>
    %61 = vector.extract_strided_slice %56 {offsets = [0, 64], sizes = [9, 32], strides = [1, 1]} : vector<9x96xf32> to vector<9x32xf32>
    %62 = vector.extract_strided_slice %59 {offsets = [0, 0], sizes = [9, 8], strides = [1, 1]} : vector<9x32xf32> to vector<9x8xf32>
    %63 = arith.truncf %62 : vector<9x8xf32> to vector<9x8xbf16>
    %64 = vector.extract_strided_slice %60 {offsets = [0, 0], sizes = [9, 8], strides = [1, 1]} : vector<9x32xf32> to vector<9x8xf32>
    %65 = arith.truncf %64 : vector<9x8xf32> to vector<9x8xbf16>
    %66 = vector.extract_strided_slice %61 {offsets = [0, 0], sizes = [9, 8], strides = [1, 1]} : vector<9x32xf32> to vector<9x8xf32>
    %67 = arith.truncf %66 : vector<9x8xf32> to vector<9x8xbf16>
    %cst_25 = arith.constant dense<0.000000e+00> : vector<9x9xf32>
    %68 = tpu.matmul %63, %65, %cst_25 {dimension_numbers = #tpu.dot_dimension_numbers<[1], [1], [0], [0], [0, 0, 1, 0], [], []>} : vector<9x8xbf16>, vector<9x8xbf16>, vector<9x9xf32> -> vector<9x9xf32>
    %cst_26 = arith.constant dense<0xFF800000> : vector<9xf32>
    %69 = vector.multi_reduction <maximumf>, %68, %cst_26 [1] : vector<9x9xf32> to vector<9xf32>
    %70 = vector.shape_cast %69 : vector<9xf32> to vector<9x1xf32>
    %71 = vector.broadcast %70 : vector<9x1xf32> to vector<9x9xf32>
    %72 = arith.subf %68, %71 : vector<9x9xf32>
    %73 = math.exp %72 : vector<9x9xf32>
    %cst_27 = arith.constant dense<0.000000e+00> : vector<9xf32>
    %74 = vector.multi_reduction <add>, %73, %cst_27 [1] : vector<9x9xf32> to vector<9xf32>
    %75 = vector.shape_cast %74 : vector<9xf32> to vector<9x1xf32>
    %76 = tpu.reciprocal %75 {approx = true} : vector<9x1xf32> -> vector<9x1xf32>
    %77 = vector.broadcast %76 : vector<9x1xf32> to vector<9x9xf32>
    %78 = arith.mulf %73, %77 : vector<9x9xf32>
    %79 = arith.truncf %78 : vector<9x9xf32> to vector<9x9xbf16>
    %cst_28 = arith.constant dense<0.000000e+00> : vector<9x8xf32>
    %80 = tpu.matmul %79, %67, %cst_28 {dimension_numbers = #tpu.dot_dimension_numbers<[1], [0], [0], [1], [0, 0, 1, 1], [], []>} : vector<9x9xbf16>, vector<9x8xbf16>, vector<9x8xf32> -> vector<9x8xf32>
    %81 = vector.extract_strided_slice %59 {offsets = [0, 8], sizes = [9, 8], strides = [1, 1]} : vector<9x32xf32> to vector<9x8xf32>
    %82 = arith.truncf %81 : vector<9x8xf32> to vector<9x8xbf16>
    %83 = vector.extract_strided_slice %60 {offsets = [0, 8], sizes = [9, 8], strides = [1, 1]} : vector<9x32xf32> to vector<9x8xf32>
    %84 = arith.truncf %83 : vector<9x8xf32> to vector<9x8xbf16>
    %85 = vector.extract_strided_slice %61 {offsets = [0, 8], sizes = [9, 8], strides = [1, 1]} : vector<9x32xf32> to vector<9x8xf32>
    %86 = arith.truncf %85 : vector<9x8xf32> to vector<9x8xbf16>
    %cst_29 = arith.constant dense<0.000000e+00> : vector<9x9xf32>
    %87 = tpu.matmul %82, %84, %cst_29 {dimension_numbers = #tpu.dot_dimension_numbers<[1], [1], [0], [0], [0, 0, 1, 0], [], []>} : vector<9x8xbf16>, vector<9x8xbf16>, vector<9x9xf32> -> vector<9x9xf32>
    %cst_30 = arith.constant dense<0xFF800000> : vector<9xf32>
    %88 = vector.multi_reduction <maximumf>, %87, %cst_30 [1] : vector<9x9xf32> to vector<9xf32>
    %89 = vector.shape_cast %88 : vector<9xf32> to vector<9x1xf32>
    %90 = vector.broadcast %89 : vector<9x1xf32> to vector<9x9xf32>
    %91 = arith.subf %87, %90 : vector<9x9xf32>
    %92 = math.exp %91 : vector<9x9xf32>
    %cst_31 = arith.constant dense<0.000000e+00> : vector<9xf32>
    %93 = vector.multi_reduction <add>, %92, %cst_31 [1] : vector<9x9xf32> to vector<9xf32>
    %94 = vector.shape_cast %93 : vector<9xf32> to vector<9x1xf32>
    %95 = tpu.reciprocal %94 {approx = true} : vector<9x1xf32> -> vector<9x1xf32>
    %96 = vector.broadcast %95 : vector<9x1xf32> to vector<9x9xf32>
    %97 = arith.mulf %92, %96 : vector<9x9xf32>
    %98 = arith.truncf %97 : vector<9x9xf32> to vector<9x9xbf16>
    %cst_32 = arith.constant dense<0.000000e+00> : vector<9x8xf32>
    %99 = tpu.matmul %98, %86, %cst_32 {dimension_numbers = #tpu.dot_dimension_numbers<[1], [0], [0], [1], [0, 0, 1, 1], [], []>} : vector<9x9xbf16>, vector<9x8xbf16>, vector<9x8xf32> -> vector<9x8xf32>
    %100 = vector.extract_strided_slice %59 {offsets = [0, 16], sizes = [9, 8], strides = [1, 1]} : vector<9x32xf32> to vector<9x8xf32>
    %101 = arith.truncf %100 : vector<9x8xf32> to vector<9x8xbf16>
    %102 = vector.extract_strided_slice %60 {offsets = [0, 16], sizes = [9, 8], strides = [1, 1]} : vector<9x32xf32> to vector<9x8xf32>
    %103 = arith.truncf %102 : vector<9x8xf32> to vector<9x8xbf16>
    %104 = vector.extract_strided_slice %61 {offsets = [0, 16], sizes = [9, 8], strides = [1, 1]} : vector<9x32xf32> to vector<9x8xf32>
    %105 = arith.truncf %104 : vector<9x8xf32> to vector<9x8xbf16>
    %cst_33 = arith.constant dense<0.000000e+00> : vector<9x9xf32>
    %106 = tpu.matmul %101, %103, %cst_33 {dimension_numbers = #tpu.dot_dimension_numbers<[1], [1], [0], [0], [0, 0, 1, 0], [], []>} : vector<9x8xbf16>, vector<9x8xbf16>, vector<9x9xf32> -> vector<9x9xf32>
    %cst_34 = arith.constant dense<0xFF800000> : vector<9xf32>
    %107 = vector.multi_reduction <maximumf>, %106, %cst_34 [1] : vector<9x9xf32> to vector<9xf32>
    %108 = vector.shape_cast %107 : vector<9xf32> to vector<9x1xf32>
    %109 = vector.broadcast %108 : vector<9x1xf32> to vector<9x9xf32>
    %110 = arith.subf %106, %109 : vector<9x9xf32>
    %111 = math.exp %110 : vector<9x9xf32>
    %cst_35 = arith.constant dense<0.000000e+00> : vector<9xf32>
    %112 = vector.multi_reduction <add>, %111, %cst_35 [1] : vector<9x9xf32> to vector<9xf32>
    %113 = vector.shape_cast %112 : vector<9xf32> to vector<9x1xf32>
    %114 = tpu.reciprocal %113 {approx = true} : vector<9x1xf32> -> vector<9x1xf32>
    %115 = vector.broadcast %114 : vector<9x1xf32> to vector<9x9xf32>
    %116 = arith.mulf %111, %115 : vector<9x9xf32>
    %117 = arith.truncf %116 : vector<9x9xf32> to vector<9x9xbf16>
    %cst_36 = arith.constant dense<0.000000e+00> : vector<9x8xf32>
    %118 = tpu.matmul %117, %105, %cst_36 {dimension_numbers = #tpu.dot_dimension_numbers<[1], [0], [0], [1], [0, 0, 1, 1], [], []>} : vector<9x9xbf16>, vector<9x8xbf16>, vector<9x8xf32> -> vector<9x8xf32>
    %119 = vector.extract_strided_slice %59 {offsets = [0, 24], sizes = [9, 8], strides = [1, 1]} : vector<9x32xf32> to vector<9x8xf32>
    %120 = arith.truncf %119 : vector<9x8xf32> to vector<9x8xbf16>
    %121 = vector.extract_strided_slice %60 {offsets = [0, 24], sizes = [9, 8], strides = [1, 1]} : vector<9x32xf32> to vector<9x8xf32>
    %122 = arith.truncf %121 : vector<9x8xf32> to vector<9x8xbf16>
    %123 = vector.extract_strided_slice %61 {offsets = [0, 24], sizes = [9, 8], strides = [1, 1]} : vector<9x32xf32> to vector<9x8xf32>
    %124 = arith.truncf %123 : vector<9x8xf32> to vector<9x8xbf16>
    %cst_37 = arith.constant dense<0.000000e+00> : vector<9x9xf32>
    %125 = tpu.matmul %120, %122, %cst_37 {dimension_numbers = #tpu.dot_dimension_numbers<[1], [1], [0], [0], [0, 0, 1, 0], [], []>} : vector<9x8xbf16>, vector<9x8xbf16>, vector<9x9xf32> -> vector<9x9xf32>
    %cst_38 = arith.constant dense<0xFF800000> : vector<9xf32>
    %126 = vector.multi_reduction <maximumf>, %125, %cst_38 [1] : vector<9x9xf32> to vector<9xf32>
    %127 = vector.shape_cast %126 : vector<9xf32> to vector<9x1xf32>
    %128 = vector.broadcast %127 : vector<9x1xf32> to vector<9x9xf32>
    %129 = arith.subf %125, %128 : vector<9x9xf32>
    %130 = math.exp %129 : vector<9x9xf32>
    %cst_39 = arith.constant dense<0.000000e+00> : vector<9xf32>
    %131 = vector.multi_reduction <add>, %130, %cst_39 [1] : vector<9x9xf32> to vector<9xf32>
    %132 = vector.shape_cast %131 : vector<9xf32> to vector<9x1xf32>
    %133 = tpu.reciprocal %132 {approx = true} : vector<9x1xf32> -> vector<9x1xf32>
    %134 = vector.broadcast %133 : vector<9x1xf32> to vector<9x9xf32>
    %135 = arith.mulf %130, %134 : vector<9x9xf32>
    %136 = arith.truncf %135 : vector<9x9xf32> to vector<9x9xbf16>
    %cst_40 = arith.constant dense<0.000000e+00> : vector<9x8xf32>
    %137 = tpu.matmul %136, %124, %cst_40 {dimension_numbers = #tpu.dot_dimension_numbers<[1], [0], [0], [1], [0, 0, 1, 1], [], []>} : vector<9x9xbf16>, vector<9x8xbf16>, vector<9x8xf32> -> vector<9x8xf32>
    %138 = tpu.concatenate %80, %99, %118, %137 in 1 : vector<9x8xf32>, vector<9x8xf32>, vector<9x8xf32>, vector<9x8xf32> -> vector<9x32xf32>
    %139 = arith.truncf %138 : vector<9x32xf32> to vector<9x32xbf16>
    %c0_41 = arith.constant 0 : index
    %c0_42 = arith.constant 0 : index
    %140 = vector.load %arg6[%c0_41, %c0_42] : memref<32x32xbf16, #tpu.memory_space<vmem>>, vector<32x32xbf16>
    %cst_43 = arith.constant dense<0.000000e+00> : vector<9x32xf32>
    %141 = tpu.matmul %139, %140, %cst_43 {dimension_numbers = #tpu.dot_dimension_numbers<[1], [0], [0], [1], [0, 0, 1, 1], [], []>} : vector<9x32xbf16>, vector<32x32xbf16>, vector<9x32xf32> -> vector<9x32xf32>
    %142 = arith.addf %26, %141 : vector<9x32xf32>
    %c0_44 = arith.constant 0 : index
    %c0_45 = arith.constant 0 : index
    %143 = vector.load %arg7[%c0_44, %c0_45] : memref<1x32xf32, #tpu.memory_space<vmem>>, vector<1x32xf32>
    %144 = vector.broadcast %143 : vector<1x32xf32> to vector<9x32xf32>
    %145 = arith.addf %142, %144 : vector<9x32xf32>
    %c0_46 = arith.constant 0 : index
    %c0_47 = arith.constant 0 : index
    %146 = vector.load %arg8[%c0_46, %c0_47] : memref<1x32xf32, #tpu.memory_space<vmem>>, vector<1x32xf32>
    %c0_48 = arith.constant 0 : index
    %c0_49 = arith.constant 0 : index
    %147 = vector.load %arg9[%c0_48, %c0_49] : memref<1x32xf32, #tpu.memory_space<vmem>>, vector<1x32xf32>
    %cst_50 = arith.constant dense<0.000000e+00> : vector<9xf32>
    %148 = vector.multi_reduction <add>, %145, %cst_50 [1] : vector<9x32xf32> to vector<9xf32>
    %149 = vector.shape_cast %148 : vector<9xf32> to vector<9x1xf32>
    %cst_51 = arith.constant 3.200000e+01 : f32
    %150 = vector.broadcast %cst_51 : f32 to vector<9x1xf32>
    %151 = arith.divf %149, %150 : vector<9x1xf32>
    %152 = vector.broadcast %151 : vector<9x1xf32> to vector<9x32xf32>
    %153 = arith.subf %145, %152 : vector<9x32xf32>
    %154 = arith.mulf %153, %153 : vector<9x32xf32>
    %cst_52 = arith.constant dense<0.000000e+00> : vector<9xf32>
    %155 = vector.multi_reduction <add>, %154, %cst_52 [1] : vector<9x32xf32> to vector<9xf32>
    %156 = vector.shape_cast %155 : vector<9xf32> to vector<9x1xf32>
    %cst_53 = arith.constant 3.200000e+01 : f32
    %157 = vector.broadcast %cst_53 : f32 to vector<9x1xf32>
    %158 = arith.divf %156, %157 : vector<9x1xf32>
    %159 = vector.broadcast %151 : vector<9x1xf32> to vector<9x32xf32>
    %160 = arith.subf %145, %159 : vector<9x32xf32>
    %cst_54 = arith.constant 9.99999974E-6 : f32
    %161 = vector.broadcast %cst_54 : f32 to vector<9x1xf32>
    %162 = arith.addf %158, %161 : vector<9x1xf32>
    %163 = math.rsqrt %162 : vector<9x1xf32>
    %164 = vector.broadcast %163 : vector<9x1xf32> to vector<9x32xf32>
    %165 = arith.mulf %160, %164 : vector<9x32xf32>
    %166 = vector.broadcast %146 : vector<1x32xf32> to vector<9x32xf32>
    %167 = arith.mulf %165, %166 : vector<9x32xf32>
    %168 = vector.broadcast %147 : vector<1x32xf32> to vector<9x32xf32>
    %169 = arith.addf %167, %168 : vector<9x32xf32>
    %170 = arith.truncf %169 : vector<9x32xf32> to vector<9x32xbf16>
    %cst_55 = arith.constant 0.000000e+00 : f32
    %171 = vector.broadcast %cst_55 : f32 to vector<9x32xf32>
    %c0_56 = arith.constant 0 : index
    %c0_57 = arith.constant 0 : index
    %172 = vector.load %arg10[%c0_56, %c0_57] : memref<32x128xbf16, #tpu.memory_space<vmem>>, vector<32x128xbf16>
    %cst_58 = arith.constant dense<0.000000e+00> : vector<9x128xf32>
    %173 = tpu.matmul %170, %172, %cst_58 {dimension_numbers = #tpu.dot_dimension_numbers<[1], [0], [0], [1], [0, 0, 1, 1], [], []>} : vector<9x32xbf16>, vector<32x128xbf16>, vector<9x128xf32> -> vector<9x128xf32>
    %c0_59 = arith.constant 0 : index
    %c0_60 = arith.constant 0 : index
    %174 = vector.load %arg11[%c0_59, %c0_60] : memref<1x128xf32, #tpu.memory_space<vmem>>, vector<1x128xf32>
    %175 = vector.broadcast %174 : vector<1x128xf32> to vector<9x128xf32>
    %176 = arith.addf %173, %175 : vector<9x128xf32>
    %cst_61 = arith.constant 1.702000e+00 : f32
    %177 = vector.broadcast %cst_61 : f32 to vector<9x128xf32>
    %178 = arith.mulf %177, %176 : vector<9x128xf32>
    %179 = arith.negf %178 : vector<9x128xf32>
    %180 = math.exp %179 : vector<9x128xf32>
    %cst_62 = arith.constant 1.000000e+00 : f32
    %181 = vector.broadcast %cst_62 : f32 to vector<9x128xf32>
    %182 = arith.addf %181, %180 : vector<9x128xf32>
    %183 = arith.divf %181, %182 : vector<9x128xf32>
    %184 = arith.mulf %176, %183 : vector<9x128xf32>
    %185 = arith.truncf %184 : vector<9x128xf32> to vector<9x128xbf16>
    %c0_63 = arith.constant 0 : index
    %c0_64 = arith.constant 0 : index
    %186 = vector.load %arg12[%c0_63, %c0_64] : memref<128x32xbf16, #tpu.memory_space<vmem>>, vector<128x32xbf16>
    %cst_65 = arith.constant dense<0.000000e+00> : vector<9x32xf32>
    %187 = tpu.matmul %185, %186, %cst_65 {dimension_numbers = #tpu.dot_dimension_numbers<[1], [0], [0], [1], [0, 0, 1, 1], [], []>} : vector<9x128xbf16>, vector<128x32xbf16>, vector<9x32xf32> -> vector<9x32xf32>
    %188 = arith.addf %171, %187 : vector<9x32xf32>
    %189 = arith.addf %145, %188 : vector<9x32xf32>
    %c0_66 = arith.constant 0 : index
    %c0_67 = arith.constant 0 : index
    %190 = vector.load %arg13[%c0_66, %c0_67] : memref<1x32xf32, #tpu.memory_space<vmem>>, vector<1x32xf32>
    %191 = vector.broadcast %190 : vector<1x32xf32> to vector<9x32xf32>
    %192 = arith.addf %189, %191 : vector<9x32xf32>
    %193 = arith.truncf %192 : vector<9x32xf32> to vector<9x32xbf16>
    %c0_68 = arith.constant 0 : index
    %c0_69 = arith.constant 0 : index
    %c0_70 = arith.constant 0 : index
    %194 = vector.load %arg16[%c0_68, %c0_69, %c0_70] : memref<1x9x32xbf16, #tpu.memory_space<vmem>>, vector<1x9x32xbf16>
    %195 = vector.shape_cast %194 : vector<1x9x32xbf16> to vector<9x32xbf16>
    %196 = vector.shape_cast %193 : vector<9x32xbf16> to vector<1x9x32xbf16>
    tpu.vector_store %arg16[%c0_68, %c0_69, %c0_70], %196 {strides = array<i32>} : memref<1x9x32xbf16, #tpu.memory_space<vmem>>, vector<1x9x32xbf16>,
    return
  }
  func.func @transform_0(%arg0: i32) -> (i32, i32, i32) {
    %c0_i32 = arith.constant 0 : i32
    %c0_i32_0 = arith.constant 0 : i32
    %c0_i32_1 = arith.constant 0 : i32
    return %arg0, %c0_i32, %c0_i32_0 : i32, i32, i32
  }
  func.func @transform_1(%arg0: i32) -> (i32, i32) {
    %c0_i32 = arith.constant 0 : i32
    %c0_i32_0 = arith.constant 0 : i32
    %c0_i32_1 = arith.constant 0 : i32
    return %c0_i32, %c0_i32_0 : i32, i32
  }
  func.func @transform_2(%arg0: i32) -> (i32, i32) {
    %c0_i32 = arith.constant 0 : i32
    %c0_i32_0 = arith.constant 0 : i32
    %c0_i32_1 = arith.constant 0 : i32
    return %c0_i32, %c0_i32_0 : i32, i32
  }
  func.func @transform_3(%arg0: i32) -> (i32, i32) {
    %c0_i32 = arith.constant 0 : i32
    %c0_i32_0 = arith.constant 0 : i32
    %c0_i32_1 = arith.constant 0 : i32
    return %c0_i32, %c0_i32_0 : i32, i32
  }
  func.func @transform_4(%arg0: i32) -> (i32, i32) {
    %c0_i32 = arith.constant 0 : i32
    %c0_i32_0 = arith.constant 0 : i32
    %c0_i32_1 = arith.constant 0 : i32
    return %c0_i32, %c0_i32_0 : i32, i32
  }
  func.func @transform_5(%arg0: i32) -> (i32, i32) {
    %c0_i32 = arith.constant 0 : i32
    %c0_i32_0 = arith.constant 0 : i32
    %c0_i32_1 = arith.constant 0 : i32
    return %c0_i32, %c0_i32_0 : i32, i32
  }
  func.func @transform_6(%arg0: i32) -> (i32, i32) {
    %c0_i32 = arith.constant 0 : i32
    %c0_i32_0 = arith.constant 0 : i32
    %c0_i32_1 = arith.constant 0 : i32
    return %c0_i32, %c0_i32_0 : i32, i32
  }
  func.func @transform_7(%arg0: i32) -> (i32, i32) {
    %c0_i32 = arith.constant 0 : i32
    %c0_i32_0 = arith.constant 0 : i32
    %c0_i32_1 = arith.constant 0 : i32
    return %c0_i32, %c0_i32_0 : i32, i32
  }
  func.func @transform_8(%arg0: i32) -> (i32, i32) {
    %c0_i32 = arith.constant 0 : i32
    %c0_i32_0 = arith.constant 0 : i32
    %c0_i32_1 = arith.constant 0 : i32
    return %c0_i32, %c0_i32_0 : i32, i32
  }
  func.func @transform_9(%arg0: i32) -> (i32, i32) {
    %c0_i32 = arith.constant 0 : i32
    %c0_i32_0 = arith.constant 0 : i32
    %c0_i32_1 = arith.constant 0 : i32
    return %c0_i32, %c0_i32_0 : i32, i32
  }
  func.func @transform_10(%arg0: i32) -> (i32, i32) {
    %c0_i32 = arith.constant 0 : i32
    %c0_i32_0 = arith.constant 0 : i32
    %c0_i32_1 = arith.constant 0 : i32
    return %c0_i32, %c0_i32_0 : i32, i32
  }
  func.func @transform_11(%arg0: i32) -> (i32, i32) {
    %c0_i32 = arith.constant 0 : i32
    %c0_i32_0 = arith.constant 0 : i32
    %c0_i32_1 = arith.constant 0 : i32
    return %c0_i32, %c0_i32_0 : i32, i32
  }
  func.func @transform_12(%arg0: i32) -> (i32, i32) {
    %c0_i32 = arith.constant 0 : i32
    %c0_i32_0 = arith.constant 0 : i32
    %c0_i32_1 = arith.constant 0 : i32
    return %c0_i32, %c0_i32_0 : i32, i32
  }
  func.func @transform_13(%arg0: i32) -> (i32, i32) {
    %c0_i32 = arith.constant 0 : i32
    %c0_i32_0 = arith.constant 0 : i32
    %c0_i32_1 = arith.constant 0 : i32
    return %c0_i32, %c0_i32_0 : i32, i32
  }
  func.func @transform_14(%arg0: i32) -> (i32, i32) {
    %c0_i32 = arith.constant 0 : i32
    %c0_i32_0 = arith.constant 0 : i32
    %c0_i32_1 = arith.constant 0 : i32
    return %c0_i32, %c0_i32_0 : i32, i32
  }
  func.func @transform_15(%arg0: i32) -> (i32, i32, i32) {
    %c0_i32 = arith.constant 0 : i32
    %c0_i32_0 = arith.constant 0 : i32
    %c0_i32_1 = arith.constant 0 : i32
    return %arg0, %c0_i32, %c0_i32_0 : i32, i32, i32
  }
}

</mosaic_0001>

<llo_original>
// kernel: tpu_custom_call.1
$region0: #{tpu_custom_call.1}
  #allocation0 [shape = 'u32[]', space=smem, size = 0x4, offset = 0x4, fixed_abs, tag = 'smem constant byte address 0x4 - core index']
  #allocation1 [shape = 'u32[144,128]{1,0:T(1,128)}', space=vmem, size = 0x12000, scoped, tag = 'internal scratch']
  %s0 = inlined_call_operand.hbm [shape: f32[8,128], index: 0, kind: input, shape index: {}]
  %s1 = inlined_call_operand.hbm [shape: f32[8,128], index: 1, kind: input, shape index: {}]
  %s2 = inlined_call_operand.hbm [shape: f32[8,128], index: 2, kind: output, shape index: {}]
  %s3 = sld [smem:[#allocation0]]
  $region49: #{tpu_custom_call.1} parent=0
    _
  %s5 = ssub.s32 1, %s3
  %s6 = scalar_select 0, %s5, %s3
  $region1: #{tpu_custom_call.1} parent=0
    #allocation2 [shape = 'u8[4096]{0}', space=vmem, size = 0x1000, scoped, tag = 'input window, operand 0, single buffered']
    #allocation3 [shape = 's32[2]{0}', space=sflag, size = 0x8, scoped, tag = 'scoped memory for tpu_custom_call.1']
    #allocation4 [shape = 's32[2]{0}', space=sflag, size = 0x8, scoped, tag = 'scoped memory for tpu_custom_call.1']
    #allocation5 [shape = 'u8[4096]{0}', space=vmem, size = 0x1000, scoped, tag = 'input window, operand 1, single buffered']
    #allocation6 [shape = 's32[1]{0}', space=sflag, size = 0x4, scoped, tag = 'scoped memory for tpu_custom_call.1']
    #allocation7 [shape = 'u8[4096]{0}', space=vmem, size = 0x1000, scoped, tag = 'output window, operand 0, single buffered']
    %7 = vsyncpa [#allocation3], 0
    %8 = vsyncpa [#allocation6], 0
    %9 = vsyncpa [#allocation4], 0
    loop: start=0, step=1, limit=4
    $region2: #{tpu_custom_call.1} parent=1 // loop_pre_header
      _
    $region3: #{tpu_custom_call.1} parent=1 // loop_header
      %s11 = sphi 0, %s15
      %p12 = scmp.ge.s32.totalorder %s11, 4
      %s19 = sphi 0, %s19
      %s21 = sphi 0, %s19
      %s22 = sphi 0, %s21
      %s36 = sphi 0, %s22
      %s40 = sphi 0, %s40
      %s42 = sphi 0, %s40
      %s43 = sphi 0, %s42
      %s57 = sphi 0, %s43
      %s61 = sphi 0, %s61
      %s63 = sphi 0, %s61
      %s64 = sphi 0, %s63
      %s78 = sphi 0, %s64
    $region4: #{tpu_custom_call.1} parent=1 // loop_header_branch
      %14 = sbr.rel (%p12) target = $region8
    $region5: #{tpu_custom_call.1} parent=1 // loop_body
      %s16 = ssub.s32 %s11, 1
      %s17 = ssub.s32 %s11, 2
      %s18 = sadd.s32 %s11, 1
      %s20 = sadd.s32 %s19, 1
      %p23 = scmp.eq.s32.totalorder %s11, 1
      %p24 = scmp.ne.s32.totalorder %s19, %s21
      %p25 = scmp.eq.s32.totalorder %s11, 0
      %p26 = por %p24, %p25
      %p27 = scmp.ne.s32.totalorder %s19, %s21
      %p28 = scmp.eq.s32.totalorder %s16, 1
      %p29 = por %p27, %p28
      %p30 = scmp.ne.s32.totalorder %s21, %s22
      %p31 = scmp.eq.s32.totalorder %s16, 0
      %p32 = por %p30, %p31
      %p33 = scmp.ne.s32.totalorder %s21, %s22
      %p34 = scmp.eq.s32.totalorder %s17, 1
      %p35 = por %p33, %p34
      %p37 = scmp.ne.s32.totalorder %s22, %s36
      %p38 = scmp.eq.s32.totalorder %s17, 0
      %p39 = por %p37, %p38
      %s41 = sadd.s32 %s40, 1
      %p44 = scmp.eq.s32.totalorder %s11, 1
      %p45 = scmp.ne.s32.totalorder %s40, %s42
      %p46 = scmp.eq.s32.totalorder %s11, 0
      %p47 = por %p45, %p46
      %p48 = scmp.ne.s32.totalorder %s40, %s42
      %p49 = scmp.eq.s32.totalorder %s16, 1
      %p50 = por %p48, %p49
      %p51 = scmp.ne.s32.totalorder %s42, %s43
      %p52 = scmp.eq.s32.totalorder %s16, 0
      %p53 = por %p51, %p52
      %p54 = scmp.ne.s32.totalorder %s42, %s43
      %p55 = scmp.eq.s32.totalorder %s17, 1
      %p56 = por %p54, %p55
      %p58 = scmp.ne.s32.totalorder %s43, %s57
      %p59 = scmp.eq.s32.totalorder %s17, 0
      %p60 = por %p58, %p59
      %s62 = sadd.s32 %s61, 1
      %p65 = scmp.eq.s32.totalorder %s11, 1
      %p66 = scmp.ne.s32.totalorder %s61, %s63
      %p67 = scmp.eq.s32.totalorder %s11, 0
      %p68 = por %p66, %p67
      %p69 = scmp.ne.s32.totalorder %s61, %s63
      %p70 = scmp.eq.s32.totalorder %s16, 1
      %p71 = por %p69, %p70
      %p72 = scmp.ne.s32.totalorder %s63, %s64
      %p73 = scmp.eq.s32.totalorder %s16, 0
      %p74 = por %p72, %p73
      %p75 = scmp.ne.s32.totalorder %s63, %s64
      %p76 = scmp.eq.s32.totalorder %s17, 1
      %p77 = por %p75, %p76
      %p79 = scmp.ne.s32.totalorder %s64, %s78
      %p80 = scmp.eq.s32.totalorder %s17, 0
      %p81 = por %p79, %p80
      %p82 = scmp.le.s32.totalorder 1, %s11
      %p83 = scmp.lt.s32.totalorder %s11, 3
      %p84 = pnand %p82, %p83
      %p85 = pneg %p84
      // Predicated region
      $region9: #{tpu_custom_call.1} parent=5 // pred_check
        _
      $region10: #{tpu_custom_call.1} parent=5 // pred_check_branch
        %87 = sbr.rel (%p84) target = $region12
      $region11: #{tpu_custom_call.1} parent=5 // pred_region
        %s88 = ssub.s32 %s11, 1
        // Predicated region
        $region13: #{tpu_custom_call.1} parent=11 // pred_check
          %p89 = pneg %p32
        $region14: #{tpu_custom_call.1} parent=11 // pred_check_branch
          %91 = sbr.rel (%p89) target = $region16
        $region15: #{tpu_custom_call.1} parent=11 // pred_region
          %s93 = ssub.s32 128, 128
          %94 = vsyncadd [#allocation3], %s93
          %s96 = sshll.u32 [#allocation2], 4
          %s97 = int_to_ptr.vmem [resolvable:$true] %s96
          %99 = dma.hbm_to_vmem [thread:$0]  %s0, 128, %s97, [#allocation3]
        $region16: #{tpu_custom_call.1} parent=11 // pred_fallthru
          _
        // Predicated region
        $region17: #{tpu_custom_call.1} parent=11 // pred_check
          %p100 = pneg %p53
        $region18: #{tpu_custom_call.1} parent=11 // pred_check_branch
          %102 = sbr.rel (%p100) target = $region20
        $region19: #{tpu_custom_call.1} parent=11 // pred_region
          %s104 = ssub.s32 128, 128
          %105 = vsyncadd [#allocation6], %s104
          %s107 = sshll.u32 [#allocation5], 4
          %s108 = int_to_ptr.vmem [resolvable:$true] %s107
          %110 = dma.hbm_to_vmem [thread:$0]  %s1, 128, %s108, [#allocation6]
        $region20: #{tpu_custom_call.1} parent=11 // pred_fallthru
          _
      $region12: #{tpu_custom_call.1} parent=5 // pred_fallthru
        _
      %p111 = scmp.lt.s32.totalorder %s11, 2
      // Predicated region
      $region21: #{tpu_custom_call.1} parent=5 // pred_check
        %p112 = pneg %p111
      $region22: #{tpu_custom_call.1} parent=5 // pred_check_branch
        %114 = sbr.rel (%p112) target = $region24
      $region23: #{tpu_custom_call.1} parent=5 // pred_region
        _
      $region24: #{tpu_custom_call.1} parent=5 // pred_fallthru
        _
      %p115 = scmp.le.s32.totalorder 1, %s11
      %p116 = scmp.lt.s32.totalorder %s11, 3
      %p117 = pnand %p115, %p116
      %p118 = pneg %p117
      // Predicated region
      $region25: #{tpu_custom_call.1} parent=5 // pred_check
        _
      $region26: #{tpu_custom_call.1} parent=5 // pred_check_branch
        %120 = sbr.rel (%p117) target = $region28
      $region27: #{tpu_custom_call.1} parent=5 // pred_region
        %s121 = ssub.s32 %s11, 1
        // Predicated region
        $region29: #{tpu_custom_call.1} parent=27 // pred_check
          %p122 = pneg %p32
        $region30: #{tpu_custom_call.1} parent=27 // pred_check_branch
          %124 = sbr.rel (%p122) target = $region32
        $region31: #{tpu_custom_call.1} parent=27 // pred_region
          %125 = dma.done [#allocation3], 128
        $region32: #{tpu_custom_call.1} parent=27 // pred_fallthru
          _
        // Predicated region
        $region33: #{tpu_custom_call.1} parent=27 // pred_check
          %p126 = pneg %p53
        $region34: #{tpu_custom_call.1} parent=27 // pred_check_branch
          %128 = sbr.rel (%p126) target = $region36
        $region35: #{tpu_custom_call.1} parent=27 // pred_region
          %129 = dma.done [#allocation6], 128
        $region36: #{tpu_custom_call.1} parent=27 // pred_fallthru
          _
        %p130 = pneg %p32
        %p131 = pneg %p29
        %p132 = pneg %p53
        %p133 = pneg %p50
        %p134 = pneg %p74
        %p135 = pneg %p71
        %v136 = vld [vmem:[#allocation2] sm:$0xff]
        %v137 = vld [vmem:[#allocation5] sm:$0xff]
        %v138 = vadd.f32 %v136, %v137
        %139 = vst [vmem:[#allocation7] sm:$0xff] %v138
        // Predicated region
        $region37: #{tpu_custom_call.1} parent=27 // pred_check
          %p140 = pneg %p71
        $region38: #{tpu_custom_call.1} parent=27 // pred_check_branch
          %142 = sbr.rel (%p140) target = $region40
        $region39: #{tpu_custom_call.1} parent=27 // pred_region
          %s144 = ssub.s32 128, 128
          %145 = vsyncadd [#allocation4], %s144
          %s147 = sshll.u32 [#allocation7], 4
          %s148 = int_to_ptr.vmem [resolvable:$true] %s147
          %150 = dma.vmem_to_hbm [thread:$0]  %s148, 128, %s2, [#allocation4]
        $region40: #{tpu_custom_call.1} parent=27 // pred_fallthru
          _
        // Predicated region
        $region41: #{tpu_custom_call.1} parent=27 // pred_check
          %p151 = pneg %p71
        $region42: #{tpu_custom_call.1} parent=27 // pred_check_branch
          %153 = sbr.rel (%p151) target = $region44
        $region43: #{tpu_custom_call.1} parent=27 // pred_region
          %154 = dma.done [#allocation4], 128
        $region44: #{tpu_custom_call.1} parent=27 // pred_fallthru
          _
      $region28: #{tpu_custom_call.1} parent=5 // pred_fallthru
        _
      %p155 = scmp.le.s32.totalorder 2, %s11
      // Predicated region
      $region45: #{tpu_custom_call.1} parent=5 // pred_check
        %p156 = pneg %p155
      $region46: #{tpu_custom_call.1} parent=5 // pred_check_branch
        %158 = sbr.rel (%p156) target = $region48
      $region47: #{tpu_custom_call.1} parent=5 // pred_region
        %s159 = ssub.s32 %s11, 2
      $region48: #{tpu_custom_call.1} parent=5 // pred_fallthru
        _
    $region6: #{tpu_custom_call.1} parent=1 // loop_footer
      %s15 = sadd.s32 1, %s11
    $region7: #{tpu_custom_call.1} parent=1 // loop_footer_branch
      %10 = sbr.rel target = $region3
    $region8: #{tpu_custom_call.1} parent=1 // loop_exit
      _
    %160 = vsyncpa [#allocation3], 1
    %s161 = scalar_lea.sflag [#allocation3], 1
    %162 = vsyncpa %s161, 1
    %163 = vsyncpa [#allocation6], 1
    %164 = vsyncpa [#allocation4], 1
    %s165 = scalar_lea.sflag [#allocation4], 1
    %166 = vsyncpa %s165, 1

// kernel: vision_transformer_forward.4
$region0: #{vision_transformer_forward.4}
  #allocation0 [shape = 'u32[]', space=smem, size = 0x4, offset = 0x4, fixed_abs, tag = 'smem constant byte address 0x4 - core index']
  #allocation1 [shape = 'u32[144,128]{1,0:T(1,128)}', space=vmem, size = 0x12000, scoped, tag = 'internal scratch']
  %s0 = inlined_call_operand.vmem [shape: bf16[2,4,256], index: 0, kind: input, shape index: {}]
  %s1 = inlined_call_operand.vmem [shape: bf16[256,32], index: 1, kind: input, shape index: {}]
  %s2 = inlined_call_operand.vmem [shape: f32[4,32], index: 2, kind: input, shape index: {}]
  %s3 = inlined_call_operand.vmem [shape: bf16[2,4,32], index: 3, kind: output, shape index: {}]
  %s4 = sld [smem:[#allocation0]]
  $region45: #{vision_transformer_forward.4} parent=0
    _
  %s6 = ssub.s32 1, %s4
  %s7 = scalar_select 0, %s6, %s4
  loop: start=0, step=1, limit=4
  $region2: #{vision_transformer_forward.4} parent=0 // loop_pre_header
    _
  $region3: #{vision_transformer_forward.4} parent=0 // loop_header
    %s9 = sphi 0, %s13
    %p10 = scmp.ge.s32.totalorder %s9, 4
    %s19 = sphi 0, %s21
    %s22 = sphi 0, %s19
    %s23 = sphi 0, %s22
    %s39 = sphi 0, %s23
    %s43 = sphi 0, %s43
    %s45 = sphi 0, %s43
    %s46 = sphi 0, %s45
    %s60 = sphi 0, %s46
    %s64 = sphi 0, %s64
    %s66 = sphi 0, %s64
    %s67 = sphi 0, %s66
    %s81 = sphi 0, %s67
    %s87 = sphi 0, %s89
    %s90 = sphi 0, %s87
    %s91 = sphi 0, %s90
    %s107 = sphi 0, %s91
  $region4: #{vision_transformer_forward.4} parent=0 // loop_header_branch
    %12 = sbr.rel (%p10) target = $region8
  $region5: #{vision_transformer_forward.4} parent=0 // loop_body
    %s14 = ssub.s32 %s9, 1
    %s15 = ssub.s32 %s9, 2
    %s16 = sadd.s32 %s9, 1
    %s17 = ssub.s32 %s9, %s16
    %p18 = scmp.eq.s32.totalorder %s17, 0
    %s20 = sadd.s32 %s19, 1
    %s21 = scalar_select %p18, %s19, %s20
    %p24 = pneg %p18
    %p25 = scmp.eq.s32.totalorder %s9, 1
    %p26 = por %p24, %p25
    %p27 = scmp.ne.s32.totalorder %s19, %s22
    %p28 = scmp.eq.s32.totalorder %s9, 0
    %p29 = por %p27, %p28
    %p30 = scmp.ne.s32.totalorder %s19, %s22
    %p31 = scmp.eq.s32.totalorder %s14, 1
    %p32 = por %p30, %p31
    %p33 = scmp.ne.s32.totalorder %s22, %s23
    %p34 = scmp.eq.s32.totalorder %s14, 0
    %p35 = por %p33, %p34
    %p36 = scmp.ne.s32.totalorder %s22, %s23
    %p37 = scmp.eq.s32.totalorder %s15, 1
    %p38 = por %p36, %p37
    %p40 = scmp.ne.s32.totalorder %s23, %s39
    %p41 = scmp.eq.s32.totalorder %s15, 0
    %p42 = por %p40, %p41
    %s44 = sadd.s32 %s43, 1
    %p47 = scmp.eq.s32.totalorder %s9, 1
    %p48 = scmp.ne.s32.totalorder %s43, %s45
    %p49 = scmp.eq.s32.totalorder %s9, 0
    %p50 = por %p48, %p49
    %p51 = scmp.ne.s32.totalorder %s43, %s45
    %p52 = scmp.eq.s32.totalorder %s14, 1
    %p53 = por %p51, %p52
    %p54 = scmp.ne.s32.totalorder %s45, %s46
    %p55 = scmp.eq.s32.totalorder %s14, 0
    %p56 = por %p54, %p55
    %p57 = scmp.ne.s32.totalorder %s45, %s46
    %p58 = scmp.eq.s32.totalorder %s15, 1
    %p59 = por %p57, %p58
    %p61 = scmp.ne.s32.totalorder %s46, %s60
    %p62 = scmp.eq.s32.totalorder %s15, 0
    %p63 = por %p61, %p62
    %s65 = sadd.s32 %s64, 1
    %p68 = scmp.eq.s32.totalorder %s9, 1
    %p69 = scmp.ne.s32.totalorder %s64, %s66
    %p70 = scmp.eq.s32.totalorder %s9, 0
    %p71 = por %p69, %p70
    %p72 = scmp.ne.s32.totalorder %s64, %s66
    %p73 = scmp.eq.s32.totalorder %s14, 1
    %p74 = por %p72, %p73
    %p75 = scmp.ne.s32.totalorder %s66, %s67
    %p76 = scmp.eq.s32.totalorder %s14, 0
    %p77 = por %p75, %p76
    %p78 = scmp.ne.s32.totalorder %s66, %s67
    %p79 = scmp.eq.s32.totalorder %s15, 1
    %p80 = por %p78, %p79
    %p82 = scmp.ne.s32.totalorder %s67, %s81
    %p83 = scmp.eq.s32.totalorder %s15, 0
    %p84 = por %p82, %p83
    %s85 = ssub.s32 %s9, %s16
    %p86 = scmp.eq.s32.totalorder %s85, 0
    %s88 = sadd.s32 %s87, 1
    %s89 = scalar_select %p86, %s87, %s88
    %p92 = pneg %p86
    %p93 = scmp.eq.s32.totalorder %s9, 1
    %p94 = por %p92, %p93
    %p95 = scmp.ne.s32.totalorder %s87, %s90
    %p96 = scmp.eq.s32.totalorder %s9, 0
    %p97 = por %p95, %p96
    %p98 = scmp.ne.s32.totalorder %s87, %s90
    %p99 = scmp.eq.s32.totalorder %s14, 1
    %p100 = por %p98, %p99
    %p101 = scmp.ne.s32.totalorder %s90, %s91
    %p102 = scmp.eq.s32.totalorder %s14, 0
    %p103 = por %p101, %p102
    %p104 = scmp.ne.s32.totalorder %s90, %s91
    %p105 = scmp.eq.s32.totalorder %s15, 1
    %p106 = por %p104, %p105
    %p108 = scmp.ne.s32.totalorder %s91, %s107
    %p109 = scmp.eq.s32.totalorder %s15, 0
    %p110 = por %p108, %p109
    %p111 = scmp.le.s32.totalorder 1, %s9
    %p112 = scmp.lt.s32.totalorder %s9, 3
    %p113 = pnand %p111, %p112
    %p114 = pneg %p113
    // Predicated region
    $region9: #{vision_transformer_forward.4} parent=5 // pred_check
      _
    $region10: #{vision_transformer_forward.4} parent=5 // pred_check_branch
      %116 = sbr.rel (%p113) target = $region12
    $region11: #{vision_transformer_forward.4} parent=5 // pred_region
      %s117 = ssub.s32 %s9, 1
      // Predicated region
      $region13: #{vision_transformer_forward.4} parent=11 // pred_check
        %p118 = pneg %p56
      $region14: #{vision_transformer_forward.4} parent=11 // pred_check_branch
        %120 = sbr.rel (%p118) target = $region16
      $region15: #{vision_transformer_forward.4} parent=11 // pred_region
        _
      $region16: #{vision_transformer_forward.4} parent=11 // pred_fallthru
        _
      // Predicated region
      $region17: #{vision_transformer_forward.4} parent=11 // pred_check
        %p121 = pneg %p77
      $region18: #{vision_transformer_forward.4} parent=11 // pred_check_branch
        %123 = sbr.rel (%p121) target = $region20
      $region19: #{vision_transformer_forward.4} parent=11 // pred_region
        _
      $region20: #{vision_transformer_forward.4} parent=11 // pred_fallthru
        _
    $region12: #{vision_transformer_forward.4} parent=5 // pred_fallthru
      _
    %p124 = scmp.lt.s32.totalorder %s9, 2
    // Predicated region
    $region21: #{vision_transformer_forward.4} parent=5 // pred_check
      %p125 = pneg %p124
    $region22: #{vision_transformer_forward.4} parent=5 // pred_check_branch
      %127 = sbr.rel (%p125) target = $region24
    $region23: #{vision_transformer_forward.4} parent=5 // pred_region
      // Predicated region
      $region25: #{vision_transformer_forward.4} parent=23 // pred_check
        %p128 = pneg %p29
      $region26: #{vision_transformer_forward.4} parent=23 // pred_check_branch
        %130 = sbr.rel (%p128) target = $region28
      $region27: #{vision_transformer_forward.4} parent=23 // pred_region
        %p131 = scmp.lt.s32.totalorder %s9, 1
        %s132 = scalar_select %p131, %s9, 1
        %s133 = smul.addr %s132, 2
        %s134 = smul.addr %s133, 2
        %s135 = scalar_lea.vmem %s0, %s134
      $region28: #{vision_transformer_forward.4} parent=23 // pred_fallthru
        _
    $region24: #{vision_transformer_forward.4} parent=5 // pred_fallthru
      _
    %p136 = scmp.le.s32.totalorder 1, %s9
    %p137 = scmp.lt.s32.totalorder %s9, 3
    %p138 = pnand %p136, %p137
    %p139 = pneg %p138
    // Predicated region
    $region29: #{vision_transformer_forward.4} parent=5 // pred_check
      _
    $region30: #{vision_transformer_forward.4} parent=5 // pred_check_branch
      %141 = sbr.rel (%p138) target = $region32
    $region31: #{vision_transformer_forward.4} parent=5 // pred_region
      %s142 = ssub.s32 %s9, 1
      %p143 = scmp.lt.s32.totalorder %s14, 1
      %s144 = scalar_select %p143, %s14, 1
      %s145 = smul.addr %s144, 2
      %s146 = smul.addr %s145, 2
      %s147 = scalar_lea.vmem %s0, %s146
      %p148 = pneg %p35
      %p149 = pneg %p32
      %p150 = pneg %p56
      %p151 = pneg %p53
      %p152 = pneg %p77
      %p153 = pneg %p74
      %p154 = pneg %p103
      %p155 = pneg %p100
      %p156 = scmp.lt.s32.totalorder %s14, 1
      %s157 = scalar_select %p156, %s14, 1
      %s158 = smul.addr %s157, 2
      %s159 = scalar_lea.vmem %s3, %s158
      %p160 = scmp.lt.s32.totalorder %s14, 1
      %s161 = scalar_select %p160, %s14, 1
      %s162 = smul.addr %s161, 2
      %s163 = smul.addr %s162, 2
      %s164 = scalar_lea.vmem %s0, %s163
      %p165 = scmp.lt.s32.totalorder %s14, 1
      %s166 = scalar_select %p165, %s14, 1
      %s167 = smul.addr %s166, 2
      %s168 = scalar_lea.vmem %s3, %s167
      %v170 = vld [vmem:[%s164] sm:$0xf]
      %v171 = vld [vmem:[%s1] sm:$0xf]
      %v172 = vld [vmem:[%s1 + $0x4] sm:$0xf]
      %v173 = vld [vmem:[%s1 + $0x8] sm:$0xf]
      %v174 = vld [vmem:[%s1 + $0xc] sm:$0xf]
      %v175 = vld [vmem:[%s1 + $0x10] sm:$0xf]
      %v176 = vld [vmem:[%s1 + $0x14] sm:$0xf]
      %v177 = vld [vmem:[%s1 + $0x18] sm:$0xf]
      %v178 = vld [vmem:[%s1 + $0x1c] sm:$0xf]
      %v179 = vld [vmem:[%s1 + $0x20] sm:$0xf]
      %v180 = vld [vmem:[%s1 + $0x24] sm:$0xf]
      %v181 = vld [vmem:[%s1 + $0x28] sm:$0xf]
      %v182 = vld [vmem:[%s1 + $0x2c] sm:$0xf]
      %v183 = vld [vmem:[%s1 + $0x30] sm:$0xf]
      %v184 = vld [vmem:[%s1 + $0x34] sm:$0xf]
      %v185 = vld [vmem:[%s1 + $0x38] sm:$0xf]
      %v186 = vld [vmem:[%s1 + $0x3c] sm:$0xf]
      %v187 = vld [vmem:[%s1 + $0x40] sm:$0xf]
      %v188 = vld [vmem:[%s1 + $0x44] sm:$0xf]
      %v189 = vld [vmem:[%s1 + $0x48] sm:$0xf]
      %v190 = vld [vmem:[%s1 + $0x4c] sm:$0xf]
      %v191 = vld [vmem:[%s1 + $0x50] sm:$0xf]
      %v192 = vld [vmem:[%s1 + $0x54] sm:$0xf]
      %v193 = vld [vmem:[%s1 + $0x58] sm:$0xf]
      %v194 = vld [vmem:[%s1 + $0x5c] sm:$0xf]
      %v195 = vld [vmem:[%s1 + $0x60] sm:$0xf]
      %v196 = vld [vmem:[%s1 + $0x64] sm:$0xf]
      %v197 = vld [vmem:[%s1 + $0x68] sm:$0xf]
      %v198 = vld [vmem:[%s1 + $0x6c] sm:$0xf]
      %v199 = vld [vmem:[%s1 + $0x70] sm:$0xf]
      %v200 = vld [vmem:[%s1 + $0x74] sm:$0xf]
      %v201 = vld [vmem:[%s1 + $0x78] sm:$0xf]
      %v202 = vld [vmem:[%s1 + $0x7c] sm:$0xf]
      %v203 = vld [vmem:[%s2] sm:$0xf]
      %v206 = vunpack.c.l.s4 1983009808
      %v207 = vunpack.c.0.s8 %v206
      %v208 = vlaneseq
      %v209 = vshrl.u32 %v208, 7
      %v210 = vsub.s32 %v207, %v209
      %v211 = vrot.slane %v170, %v210
      %v212 = vcombine.high %v211, %v211
      %v247 = vunpack.c.l.b16 %v171
      %v248 = vunpack.c.l.b16 %v172
      %v249 = vunpack.c.l.b16 %v173
      %v250 = vunpack.c.l.b16 %v174
      %v251 = vunpack.c.l.b16 %v175
      %v252 = vunpack.c.l.b16 %v176
      %v253 = vunpack.c.l.b16 %v177
      %v254 = vunpack.c.l.b16 %v178
      %v255 = vunpack.c.l.b16 %v179
      %v256 = vunpack.c.l.b16 %v180
      %v257 = vunpack.c.l.b16 %v181
      %v258 = vunpack.c.l.b16 %v182
      %v259 = vunpack.c.l.b16 %v183
      %v260 = vunpack.c.l.b16 %v184
      %v261 = vunpack.c.l.b16 %v185
      %v262 = vunpack.c.l.b16 %v186
      %v263 = vunpack.c.l.b16 %v187
      %v264 = vunpack.c.l.b16 %v188
      %v265 = vunpack.c.l.b16 %v189
      %v266 = vunpack.c.l.b16 %v190
      %v267 = vunpack.c.l.b16 %v191
      %v268 = vunpack.c.l.b16 %v192
      %v269 = vunpack.c.l.b16 %v193
      %v270 = vunpack.c.l.b16 %v194
      %v271 = vunpack.c.l.b16 %v195
      %v272 = vunpack.c.l.b16 %v196
      %v273 = vunpack.c.l.b16 %v197
      %v274 = vunpack.c.l.b16 %v198
      %v275 = vunpack.c.l.b16 %v199
      %v276 = vunpack.c.l.b16 %v200
      %v277 = vunpack.c.l.b16 %v201
      %v278 = vunpack.c.l.b16 %v202
      %v279 = vpack.c.b16 %v248, %v247
      %v280 = vpack.c.b16 %v250, %v249
      %v281 = vpack.c.b16 %v252, %v251
      %v282 = vpack.c.b16 %v254, %v253
      %v283 = vpack.c.b16 %v256, %v255
      %v284 = vpack.c.b16 %v258, %v257
      %v285 = vpack.c.b16 %v260, %v259
      %v286 = vpack.c.b16 %v262, %v261
      %v287 = vpack.c.b16 %v264, %v263
      %v288 = vpack.c.b16 %v266, %v265
      %v289 = vpack.c.b16 %v268, %v267
      %v290 = vpack.c.b16 %v270, %v269
      %v291 = vpack.c.b16 %v272, %v271
      %v292 = vpack.c.b16 %v274, %v273
      %v293 = vpack.c.b16 %v276, %v275
      %v294 = vpack.c.b16 %v278, %v277
      %311 = vmatprep.subr.bf16.mxu0 0
      %312 = vmatpush1.bf16.msra.mxu0 %v279
      %313 = vmatprep.subr.bf16.mxu0 0
      %314 = vmatpush1.bf16.msra.mxu0 %v280
      %315 = vmatprep.subr.bf16.mxu0 0
      %316 = vmatpush1.bf16.msra.mxu0 %v281
      %317 = vmatprep.subr.bf16.mxu0 0
      %318 = vmatpush1.bf16.msra.mxu0 %v282
      %319 = vmatprep.subr.bf16.mxu0 0
      %320 = vmatpush1.bf16.msra.mxu0 %v283
      %321 = vmatprep.subr.bf16.mxu0 0
      %322 = vmatpush1.bf16.msra.mxu0 %v284
      %323 = vmatprep.subr.bf16.mxu0 0
      %324 = vmatpush1.bf16.msra.mxu0 %v285
      %325 = vmatprep.subr.bf16.mxu0 0
      %326 = vmatpush1.bf16.msra.mxu0 %v286
      %327 = vmatprep.subr.bf16.mxu0 0
      %328 = vmatpush1.bf16.msra.mxu0 %v287
      %329 = vmatprep.subr.bf16.mxu0 0
      %330 = vmatpush1.bf16.msra.mxu0 %v288
      %331 = vmatprep.subr.bf16.mxu0 0
      %332 = vmatpush1.bf16.msra.mxu0 %v289
      %333 = vmatprep.subr.bf16.mxu0 0
      %334 = vmatpush1.bf16.msra.mxu0 %v290
      %335 = vmatprep.subr.bf16.mxu0 0
      %336 = vmatpush1.bf16.msra.mxu0 %v291
      %337 = vmatprep.subr.bf16.mxu0 0
      %338 = vmatpush1.bf16.msra.mxu0 %v292
      %339 = vmatprep.subr.bf16.mxu0 0
      %340 = vmatpush1.bf16.msra.mxu0 %v293
      %341 = vmatprep.subr.bf16.mxu0 0
      %342 = vmatpush1.bf16.msra.mxu0 %v294
      %343 = vmatprep.mubr.bf16.mxu0 %v212
      %344 = vmatmul.mubr.bf16.gmra.mrb[0].mxu0 %v211
      %v345 = vpop.f32.mrb[0].mxu0
      %v346 = vadd.f32 %v203, %v345
      %v347 = vpop.f32.mrb[0].mxu0
      %v348 = vpop.f32.mrb[0].mxu0
      %v349 = vpop.f32.mrb[0].mxu0
      %350 = vdwg.mxu0
      %v351 = vpack.c.bf16 %v346, %v346
      %vm352 = vcmask 254976
      %353 = vst.msk [vmem:[%s168] sm:$0x3] %vm352, %v351
      %p354 = scmp.lt.s32.totalorder %s14, 1
      %s355 = scalar_select %p354, %s14, 1
      %s356 = smul.addr %s355, 2
      %s357 = scalar_lea.vmem %s3, %s356
      // Predicated region
      $region33: #{vision_transformer_forward.4} parent=31 // pred_check
        %p358 = pneg %p100
      $region34: #{vision_transformer_forward.4} parent=31 // pred_check_branch
        %360 = sbr.rel (%p358) target = $region36
      $region35: #{vision_transformer_forward.4} parent=31 // pred_region
        _
      $region36: #{vision_transformer_forward.4} parent=31 // pred_fallthru
        _
    $region32: #{vision_transformer_forward.4} parent=5 // pred_fallthru
      _
    %p361 = scmp.le.s32.totalorder 2, %s9
    // Predicated region
    $region37: #{vision_transformer_forward.4} parent=5 // pred_check
      %p362 = pneg %p361
    $region38: #{vision_transformer_forward.4} parent=5 // pred_check_branch
      %364 = sbr.rel (%p362) target = $region40
    $region39: #{vision_transformer_forward.4} parent=5 // pred_region
      %s365 = ssub.s32 %s9, 2
      // Predicated region
      $region41: #{vision_transformer_forward.4} parent=39 // pred_check
        %p366 = pneg %p106
      $region42: #{vision_transformer_forward.4} parent=39 // pred_check_branch
        %368 = sbr.rel (%p366) target = $region44
      $region43: #{vision_transformer_forward.4} parent=39 // pred_region
        %p369 = scmp.lt.s32.totalorder %s15, 1
        %s370 = scalar_select %p369, %s15, 1
        %s371 = smul.addr %s370, 2
        %s372 = scalar_lea.vmem %s3, %s371
      $region44: #{vision_transformer_forward.4} parent=39 // pred_fallthru
        _
    $region40: #{vision_transformer_forward.4} parent=5 // pred_fallthru
      _
  $region6: #{vision_transformer_forward.4} parent=0 // loop_footer
    %s13 = sadd.s32 1, %s9
  $region7: #{vision_transformer_forward.4} parent=0 // loop_footer_branch
    %8 = sbr.rel target = $region3
  $region8: #{vision_transformer_forward.4} parent=0 // loop_exit
    _

// kernel: vision_transformer_forward.7
$region0: #{vision_transformer_forward.7}
  #allocation0 [shape = 'u32[]', space=smem, size = 0x4, offset = 0x4, fixed_abs, tag = 'smem constant byte address 0x4 - core index']
  #allocation1 [shape = 'u32[144,128]{1,0:T(1,128)}', space=vmem, size = 0x12000, scoped, tag = 'internal scratch']
  %s0 = inlined_call_operand.vmem [shape: bf16[2,32], index: 0, kind: input, shape index: {}]
  %s1 = inlined_call_operand.vmem [shape: f32[1,32], index: 1, kind: input, shape index: {}]
  %s2 = inlined_call_operand.vmem [shape: f32[1,32], index: 2, kind: input, shape index: {}]
  %s3 = inlined_call_operand.vmem [shape: bf16[32,16], index: 3, kind: input, shape index: {}]
  %s4 = inlined_call_operand.hbm [shape: f32[2,16], index: 4, kind: output, shape index: {}]
  %s5 = sld [smem:[#allocation0]]
  $region26: #{vision_transformer_forward.7} parent=0
    _
  %s7 = ssub.s32 1, %s5
  %s8 = scalar_select 0, %s7, %s5
  $region1: #{vision_transformer_forward.7} parent=0
    #allocation2 [shape = 'u8[1024]{0}', space=vmem, size = 0x400, scoped, tag = 'output window, operand 0, single buffered']
    #allocation3 [shape = 's32[1]{0}', space=sflag, size = 0x4, scoped, tag = 'scoped memory for vision_transformer_forward.7']
    %9 = vsyncpa [#allocation3], 0
    // Predicated region
    $region2: #{vision_transformer_forward.7} parent=1 // pred_check
      _
    $region3: #{vision_transformer_forward.7} parent=1 // pred_check_branch
      %11 = sbr.rel (0) target = $region5
    $region4: #{vision_transformer_forward.7} parent=1 // pred_region
      _
    $region5: #{vision_transformer_forward.7} parent=1 // pred_fallthru
      _
    // Predicated region
    $region6: #{vision_transformer_forward.7} parent=1 // pred_check
      _
    $region7: #{vision_transformer_forward.7} parent=1 // pred_check_branch
      %13 = sbr.rel (0) target = $region9
    $region8: #{vision_transformer_forward.7} parent=1 // pred_region
      _
    $region9: #{vision_transformer_forward.7} parent=1 // pred_fallthru
      _
    // Predicated region
    $region10: #{vision_transformer_forward.7} parent=1 // pred_check
      _
    $region11: #{vision_transformer_forward.7} parent=1 // pred_check_branch
      %15 = sbr.rel (0) target = $region13
    $region12: #{vision_transformer_forward.7} parent=1 // pred_region
      _
    $region13: #{vision_transformer_forward.7} parent=1 // pred_fallthru
      _
    // Predicated region
    $region14: #{vision_transformer_forward.7} parent=1 // pred_check
      _
    $region15: #{vision_transformer_forward.7} parent=1 // pred_check_branch
      %17 = sbr.rel (0) target = $region17
    $region16: #{vision_transformer_forward.7} parent=1 // pred_region
      _
    $region17: #{vision_transformer_forward.7} parent=1 // pred_fallthru
      _
    %v19 = vld [vmem:[%s0] sm:$0x1]
    %v20 = vunpack.c.l.bf16 %v19
    %v21 = vld [vmem:[%s1] sm:$0x1]
    %v22 = vld [vmem:[%s2] sm:$0x1]
    %vm23 = vcmask 254976
    %v24 = vsel %vm23, %v20, 0.0
    %25 = vadd.xlane.f32.xlu0 %v24
    %v26 = vpop.xlane.xlu0 %25
    %v27 = vrcp.pop 32.0
    %v28 = vmul.f32 %v26, %v27
    %v29 = vsub.f32 %v20, %v28
    %v30 = vmul.f32 %v29, %v29
    %v31 = vsel %vm23, %v30, 0.0
    %32 = vadd.xlane.f32.xlu0 %v31
    %v33 = vpop.xlane.xlu0 %32
    %v34 = vmul.f32 %v33, %v27
    %v35 = vadd.f32 %v34, 1e-05
    %v36 = vrsqrt.pop %v35
    %v37 = vmul.f32 %v29, %v36
    %v39 = vlaneseq
    %v40 = vshrl.u32 %v39, 7
    %v41 = vsub.s32 0, %v40
    %v42 = vrot.slane %v21, %v41
    %v44 = vmul.f32 %v37, %v42
    %v46 = vlaneseq
    %v47 = vshrl.u32 %v46, 7
    %v48 = vsub.s32 0, %v47
    %v49 = vrot.slane %v22, %v48
    %v51 = vadd.f32 %v44, %v49
    %v52 = vpack.c.bf16 %v51, %v51
    %v53 = vld [vmem:[%s3] sm:$0xf]
    %v54 = vld [vmem:[%s3 + $0x4] sm:$0xf]
    %v55 = vld [vmem:[%s3 + $0x8] sm:$0xf]
    %v56 = vld [vmem:[%s3 + $0xc] sm:$0xf]
    %v61 = vunpack.c.l.b16 %v53
    %v62 = vunpack.c.l.b16 %v54
    %v63 = vunpack.c.l.b16 %v55
    %v64 = vunpack.c.l.b16 %v56
    %v65 = vpack.c.b16 %v62, %v61
    %v66 = vpack.c.b16 %v64, %v63
    %vm69 = vcmask 261120
    %v71 = vsel %vm69, %v52, 0
    %73 = vmatprep.subr.bf16.mxu0 0
    %74 = vmatpush1.bf16.msra.mxu0 %v65
    %75 = vmatprep.subr.bf16.mxu0 0
    %76 = vmatpush1.bf16.msra.mxu0 %v66
    %77 = vmatprep.subr.bf16.mxu0 0
    %78 = vmatpush1.bf16.msra.mxu0 0
    %79 = vmatprep.subr.bf16.mxu0 0
    %80 = vmatpush1.bf16.msra.mxu0 0
    %81 = vmatprep.subr.bf16.mxu0 0
    %82 = vmatpush1.bf16.msra.mxu0 0
    %83 = vmatprep.subr.bf16.mxu0 0
    %84 = vmatpush1.bf16.msra.mxu0 0
    %85 = vmatprep.subr.bf16.mxu0 0
    %86 = vmatpush1.bf16.msra.mxu0 0
    %87 = vmatprep.subr.bf16.mxu0 0
    %88 = vmatpush1.bf16.msra.mxu0 0
    %89 = vmatprep.subr.bf16.mxu0 0
    %90 = vmatpush1.bf16.msra.mxu0 0
    %91 = vmatprep.subr.bf16.mxu0 0
    %92 = vmatpush1.bf16.msra.mxu0 0
    %93 = vmatprep.subr.bf16.mxu0 0
    %94 = vmatpush1.bf16.msra.mxu0 0
    %95 = vmatprep.subr.bf16.mxu0 0
    %96 = vmatpush1.bf16.msra.mxu0 0
    %97 = vmatprep.subr.bf16.mxu0 0
    %98 = vmatpush1.bf16.msra.mxu0 0
    %99 = vmatprep.subr.bf16.mxu0 0
    %100 = vmatpush1.bf16.msra.mxu0 0
    %101 = vmatprep.subr.bf16.mxu0 0
    %102 = vmatpush1.bf16.msra.mxu0 0
    %103 = vmatprep.subr.bf16.mxu0 0
    %104 = vmatpush1.bf16.msra.mxu0 0
    %105 = vmatprep.mubr.bf16.mxu0 0
    %106 = vmatmul.mubr.bf16.gmra.mrb[0].mxu0 %v71
    %v107 = vpop.f32.mrb[0].mxu0
    %v108 = vadd.f32 0.0, %v107
    %v109 = vpop.f32.mrb[0].mxu0
    %v110 = vpop.f32.mrb[0].mxu0
    %v111 = vpop.f32.mrb[0].mxu0
    %112 = vdwg.mxu0
    %vm113 = vcmask 123904
    %114 = vst.msk [vmem:[#allocation2] sm:$0x3] %vm113, %v108
    // Predicated region
    $region18: #{vision_transformer_forward.7} parent=1 // pred_check
      _
    $region19: #{vision_transformer_forward.7} parent=1 // pred_check_branch
      %116 = sbr.rel (0) target = $region21
    $region20: #{vision_transformer_forward.7} parent=1 // pred_region
      %s118 = ssub.s32 32, 32
      %119 = vsyncadd [#allocation3], %s118
      %s121 = sshll.u32 [#allocation2], 4
      %s122 = int_to_ptr.vmem [resolvable:$true] %s121
      %124 = dma.vmem_to_hbm [thread:$0]  %s122, 32, %s4, [#allocation3]
    $region21: #{vision_transformer_forward.7} parent=1 // pred_fallthru
      _
    // Predicated region
    $region22: #{vision_transformer_forward.7} parent=1 // pred_check
      _
    $region23: #{vision_transformer_forward.7} parent=1 // pred_check_branch
      %126 = sbr.rel (0) target = $region25
    $region24: #{vision_transformer_forward.7} parent=1 // pred_region
      %127 = dma.done [#allocation3], 32
    $region25: #{vision_transformer_forward.7} parent=1 // pred_fallthru
      _
    %128 = vsyncpa [#allocation3], 1

// kernel: vision_transformer_forward.6
$region0: #{vision_transformer_forward.6}
  #allocation0 [shape = 'u32[]', space=smem, size = 0x4, offset = 0x4, fixed_abs, tag = 'smem constant byte address 0x4 - core index']
  #allocation1 [shape = 'u32[144,128]{1,0:T(1,128)}', space=vmem, size = 0x12000, scoped, tag = 'internal scratch']
  %s0 = inlined_call_operand.vmem [shape: bf16[2,9,32], index: 0, kind: input, shape index: {}]
  %s1 = inlined_call_operand.vmem [shape: f32[1,32], index: 1, kind: input, shape index: {}]
  %s2 = inlined_call_operand.vmem [shape: f32[1,32], index: 2, kind: input, shape index: {}]
  %s3 = inlined_call_operand.vmem [shape: bf16[32,96], index: 3, kind: input, shape index: {}]
  %s4 = inlined_call_operand.vmem [shape: f32[1,96], index: 4, kind: input, shape index: {}]
  %s5 = inlined_call_operand.vmem [shape: bf16[32,32], index: 5, kind: input, shape index: {}]
  %s6 = inlined_call_operand.vmem [shape: f32[1,32], index: 6, kind: input, shape index: {}]
  %s7 = inlined_call_operand.vmem [shape: f32[1,32], index: 7, kind: input, shape index: {}]
  %s8 = inlined_call_operand.vmem [shape: f32[1,32], index: 8, kind: input, shape index: {}]
  %s9 = inlined_call_operand.vmem [shape: bf16[32,128], index: 9, kind: input, shape index: {}]
  %s10 = inlined_call_operand.vmem [shape: f32[1,128], index: 10, kind: input, shape index: {}]
  %s11 = inlined_call_operand.vmem [shape: bf16[128,32], index: 11, kind: input, shape index: {}]
  %s12 = inlined_call_operand.vmem [shape: f32[1,32], index: 12, kind: input, shape index: {}]
  %s13 = inlined_call_operand.vmem [shape: bf16[9,32], index: 13, kind: input, shape index: {}]
  %s14 = inlined_call_operand.vmem [shape: bf16[2,9,32], index: 14, kind: output, shape index: {}]
  %s15 = sld [smem:[#allocation0]]
  $region89: #{vision_transformer_forward.6} parent=0
    _
  %s17 = ssub.s32 1, %s15
  %s18 = scalar_select 0, %s17, %s15
  loop: start=0, step=1, limit=4
  $region2: #{vision_transformer_forward.6} parent=0 // loop_pre_header
    _
  $region3: #{vision_transformer_forward.6} parent=0 // loop_header
    %s20 = sphi 0, %s24
    %p21 = scmp.ge.s32.totalorder %s20, 4
    %s30 = sphi 0, %s32
    %s33 = sphi 0, %s30
    %s34 = sphi 0, %s33
    %s50 = sphi 0, %s34
    %s54 = sphi 0, %s54
    %s56 = sphi 0, %s54
    %s57 = sphi 0, %s56
    %s71 = sphi 0, %s57
    %s75 = sphi 0, %s75
    %s77 = sphi 0, %s75
    %s78 = sphi 0, %s77
    %s92 = sphi 0, %s78
    %s96 = sphi 0, %s96
    %s98 = sphi 0, %s96
    %s99 = sphi 0, %s98
    %s113 = sphi 0, %s99
    %s117 = sphi 0, %s117
    %s119 = sphi 0, %s117
    %s120 = sphi 0, %s119
    %s134 = sphi 0, %s120
    %s138 = sphi 0, %s138
    %s140 = sphi 0, %s138
    %s141 = sphi 0, %s140
    %s155 = sphi 0, %s141
    %s159 = sphi 0, %s159
    %s161 = sphi 0, %s159
    %s162 = sphi 0, %s161
    %s176 = sphi 0, %s162
    %s180 = sphi 0, %s180
    %s182 = sphi 0, %s180
    %s183 = sphi 0, %s182
    %s197 = sphi 0, %s183
    %s201 = sphi 0, %s201
    %s203 = sphi 0, %s201
    %s204 = sphi 0, %s203
    %s218 = sphi 0, %s204
    %s222 = sphi 0, %s222
    %s224 = sphi 0, %s222
    %s225 = sphi 0, %s224
    %s239 = sphi 0, %s225
    %s243 = sphi 0, %s243
    %s245 = sphi 0, %s243
    %s246 = sphi 0, %s245
    %s260 = sphi 0, %s246
    %s264 = sphi 0, %s264
    %s266 = sphi 0, %s264
    %s267 = sphi 0, %s266
    %s281 = sphi 0, %s267
    %s285 = sphi 0, %s285
    %s287 = sphi 0, %s285
    %s288 = sphi 0, %s287
    %s302 = sphi 0, %s288
    %s306 = sphi 0, %s306
    %s308 = sphi 0, %s306
    %s309 = sphi 0, %s308
    %s323 = sphi 0, %s309
    %s329 = sphi 0, %s331
    %s332 = sphi 0, %s329
    %s333 = sphi 0, %s332
    %s349 = sphi 0, %s333
  $region4: #{vision_transformer_forward.6} parent=0 // loop_header_branch
    %23 = sbr.rel (%p21) target = $region8
  $region5: #{vision_transformer_forward.6} parent=0 // loop_body
    %s25 = ssub.s32 %s20, 1
    %s26 = ssub.s32 %s20, 2
    %s27 = sadd.s32 %s20, 1
    %s28 = ssub.s32 %s20, %s27
    %p29 = scmp.eq.s32.totalorder %s28, 0
    %s31 = sadd.s32 %s30, 1
    %s32 = scalar_select %p29, %s30, %s31
    %p35 = pneg %p29
    %p36 = scmp.eq.s32.totalorder %s20, 1
    %p37 = por %p35, %p36
    %p38 = scmp.ne.s32.totalorder %s30, %s33
    %p39 = scmp.eq.s32.totalorder %s20, 0
    %p40 = por %p38, %p39
    %p41 = scmp.ne.s32.totalorder %s30, %s33
    %p42 = scmp.eq.s32.totalorder %s25, 1
    %p43 = por %p41, %p42
    %p44 = scmp.ne.s32.totalorder %s33, %s34
    %p45 = scmp.eq.s32.totalorder %s25, 0
    %p46 = por %p44, %p45
    %p47 = scmp.ne.s32.totalorder %s33, %s34
    %p48 = scmp.eq.s32.totalorder %s26, 1
    %p49 = por %p47, %p48
    %p51 = scmp.ne.s32.totalorder %s34, %s50
    %p52 = scmp.eq.s32.totalorder %s26, 0
    %p53 = por %p51, %p52
    %s55 = sadd.s32 %s54, 1
    %p58 = scmp.eq.s32.totalorder %s20, 1
    %p59 = scmp.ne.s32.totalorder %s54, %s56
    %p60 = scmp.eq.s32.totalorder %s20, 0
    %p61 = por %p59, %p60
    %p62 = scmp.ne.s32.totalorder %s54, %s56
    %p63 = scmp.eq.s32.totalorder %s25, 1
    %p64 = por %p62, %p63
    %p65 = scmp.ne.s32.totalorder %s56, %s57
    %p66 = scmp.eq.s32.totalorder %s25, 0
    %p67 = por %p65, %p66
    %p68 = scmp.ne.s32.totalorder %s56, %s57
    %p69 = scmp.eq.s32.totalorder %s26, 1
    %p70 = por %p68, %p69
    %p72 = scmp.ne.s32.totalorder %s57, %s71
    %p73 = scmp.eq.s32.totalorder %s26, 0
    %p74 = por %p72, %p73
    %s76 = sadd.s32 %s75, 1
    %p79 = scmp.eq.s32.totalorder %s20, 1
    %p80 = scmp.ne.s32.totalorder %s75, %s77
    %p81 = scmp.eq.s32.totalorder %s20, 0
    %p82 = por %p80, %p81
    %p83 = scmp.ne.s32.totalorder %s75, %s77
    %p84 = scmp.eq.s32.totalorder %s25, 1
    %p85 = por %p83, %p84
    %p86 = scmp.ne.s32.totalorder %s77, %s78
    %p87 = scmp.eq.s32.totalorder %s25, 0
    %p88 = por %p86, %p87
    %p89 = scmp.ne.s32.totalorder %s77, %s78
    %p90 = scmp.eq.s32.totalorder %s26, 1
    %p91 = por %p89, %p90
    %p93 = scmp.ne.s32.totalorder %s78, %s92
    %p94 = scmp.eq.s32.totalorder %s26, 0
    %p95 = por %p93, %p94
    %s97 = sadd.s32 %s96, 1
    %p100 = scmp.eq.s32.totalorder %s20, 1
    %p101 = scmp.ne.s32.totalorder %s96, %s98
    %p102 = scmp.eq.s32.totalorder %s20, 0
    %p103 = por %p101, %p102
    %p104 = scmp.ne.s32.totalorder %s96, %s98
    %p105 = scmp.eq.s32.totalorder %s25, 1
    %p106 = por %p104, %p105
    %p107 = scmp.ne.s32.totalorder %s98, %s99
    %p108 = scmp.eq.s32.totalorder %s25, 0
    %p109 = por %p107, %p108
    %p110 = scmp.ne.s32.totalorder %s98, %s99
    %p111 = scmp.eq.s32.totalorder %s26, 1
    %p112 = por %p110, %p111
    %p114 = scmp.ne.s32.totalorder %s99, %s113
    %p115 = scmp.eq.s32.totalorder %s26, 0
    %p116 = por %p114, %p115
    %s118 = sadd.s32 %s117, 1
    %p121 = scmp.eq.s32.totalorder %s20, 1
    %p122 = scmp.ne.s32.totalorder %s117, %s119
    %p123 = scmp.eq.s32.totalorder %s20, 0
    %p124 = por %p122, %p123
    %p125 = scmp.ne.s32.totalorder %s117, %s119
    %p126 = scmp.eq.s32.totalorder %s25, 1
    %p127 = por %p125, %p126
    %p128 = scmp.ne.s32.totalorder %s119, %s120
    %p129 = scmp.eq.s32.totalorder %s25, 0
    %p130 = por %p128, %p129
    %p131 = scmp.ne.s32.totalorder %s119, %s120
    %p132 = scmp.eq.s32.totalorder %s26, 1
    %p133 = por %p131, %p132
    %p135 = scmp.ne.s32.totalorder %s120, %s134
    %p136 = scmp.eq.s32.totalorder %s26, 0
    %p137 = por %p135, %p136
    %s139 = sadd.s32 %s138, 1
    %p142 = scmp.eq.s32.totalorder %s20, 1
    %p143 = scmp.ne.s32.totalorder %s138, %s140
    %p144 = scmp.eq.s32.totalorder %s20, 0
    %p145 = por %p143, %p144
    %p146 = scmp.ne.s32.totalorder %s138, %s140
    %p147 = scmp.eq.s32.totalorder %s25, 1
    %p148 = por %p146, %p147
    %p149 = scmp.ne.s32.totalorder %s140, %s141
    %p150 = scmp.eq.s32.totalorder %s25, 0
    %p151 = por %p149, %p150
    %p152 = scmp.ne.s32.totalorder %s140, %s141
    %p153 = scmp.eq.s32.totalorder %s26, 1
    %p154 = por %p152, %p153
    %p156 = scmp.ne.s32.totalorder %s141, %s155
    %p157 = scmp.eq.s32.totalorder %s26, 0
    %p158 = por %p156, %p157
    %s160 = sadd.s32 %s159, 1
    %p163 = scmp.eq.s32.totalorder %s20, 1
    %p164 = scmp.ne.s32.totalorder %s159, %s161
    %p165 = scmp.eq.s32.totalorder %s20, 0
    %p166 = por %p164, %p165
    %p167 = scmp.ne.s32.totalorder %s159, %s161
    %p168 = scmp.eq.s32.totalorder %s25, 1
    %p169 = por %p167, %p168
    %p170 = scmp.ne.s32.totalorder %s161, %s162
    %p171 = scmp.eq.s32.totalorder %s25, 0
    %p172 = por %p170, %p171
    %p173 = scmp.ne.s32.totalorder %s161, %s162
    %p174 = scmp.eq.s32.totalorder %s26, 1
    %p175 = por %p173, %p174
    %p177 = scmp.ne.s32.totalorder %s162, %s176
    %p178 = scmp.eq.s32.totalorder %s26, 0
    %p179 = por %p177, %p178
    %s181 = sadd.s32 %s180, 1
    %p184 = scmp.eq.s32.totalorder %s20, 1
    %p185 = scmp.ne.s32.totalorder %s180, %s182
    %p186 = scmp.eq.s32.totalorder %s20, 0
    %p187 = por %p185, %p186
    %p188 = scmp.ne.s32.totalorder %s180, %s182
    %p189 = scmp.eq.s32.totalorder %s25, 1
    %p190 = por %p188, %p189
    %p191 = scmp.ne.s32.totalorder %s182, %s183
    %p192 = scmp.eq.s32.totalorder %s25, 0
    %p193 = por %p191, %p192
    %p194 = scmp.ne.s32.totalorder %s182, %s183
    %p195 = scmp.eq.s32.totalorder %s26, 1
    %p196 = por %p194, %p195
    %p198 = scmp.ne.s32.totalorder %s183, %s197
    %p199 = scmp.eq.s32.totalorder %s26, 0
    %p200 = por %p198, %p199
    %s202 = sadd.s32 %s201, 1
    %p205 = scmp.eq.s32.totalorder %s20, 1
    %p206 = scmp.ne.s32.totalorder %s201, %s203
    %p207 = scmp.eq.s32.totalorder %s20, 0
    %p208 = por %p206, %p207
    %p209 = scmp.ne.s32.totalorder %s201, %s203
    %p210 = scmp.eq.s32.totalorder %s25, 1
    %p211 = por %p209, %p210
    %p212 = scmp.ne.s32.totalorder %s203, %s204
    %p213 = scmp.eq.s32.totalorder %s25, 0
    %p214 = por %p212, %p213
    %p215 = scmp.ne.s32.totalorder %s203, %s204
    %p216 = scmp.eq.s32.totalorder %s26, 1
    %p217 = por %p215, %p216
    %p219 = scmp.ne.s32.totalorder %s204, %s218
    %p220 = scmp.eq.s32.totalorder %s26, 0
    %p221 = por %p219, %p220
    %s223 = sadd.s32 %s222, 1
    %p226 = scmp.eq.s32.totalorder %s20, 1
    %p227 = scmp.ne.s32.totalorder %s222, %s224
    %p228 = scmp.eq.s32.totalorder %s20, 0
    %p229 = por %p227, %p228
    %p230 = scmp.ne.s32.totalorder %s222, %s224
    %p231 = scmp.eq.s32.totalorder %s25, 1
    %p232 = por %p230, %p231
    %p233 = scmp.ne.s32.totalorder %s224, %s225
    %p234 = scmp.eq.s32.totalorder %s25, 0
    %p235 = por %p233, %p234
    %p236 = scmp.ne.s32.totalorder %s224, %s225
    %p237 = scmp.eq.s32.totalorder %s26, 1
    %p238 = por %p236, %p237
    %p240 = scmp.ne.s32.totalorder %s225, %s239
    %p241 = scmp.eq.s32.totalorder %s26, 0
    %p242 = por %p240, %p241
    %s244 = sadd.s32 %s243, 1
    %p247 = scmp.eq.s32.totalorder %s20, 1
    %p248 = scmp.ne.s32.totalorder %s243, %s245
    %p249 = scmp.eq.s32.totalorder %s20, 0
    %p250 = por %p248, %p249
    %p251 = scmp.ne.s32.totalorder %s243, %s245
    %p252 = scmp.eq.s32.totalorder %s25, 1
    %p253 = por %p251, %p252
    %p254 = scmp.ne.s32.totalorder %s245, %s246
    %p255 = scmp.eq.s32.totalorder %s25, 0
    %p256 = por %p254, %p255
    %p257 = scmp.ne.s32.totalorder %s245, %s246
    %p258 = scmp.eq.s32.totalorder %s26, 1
    %p259 = por %p257, %p258
    %p261 = scmp.ne.s32.totalorder %s246, %s260
    %p262 = scmp.eq.s32.totalorder %s26, 0
    %p263 = por %p261, %p262
    %s265 = sadd.s32 %s264, 1
    %p268 = scmp.eq.s32.totalorder %s20, 1
    %p269 = scmp.ne.s32.totalorder %s264, %s266
    %p270 = scmp.eq.s32.totalorder %s20, 0
    %p271 = por %p269, %p270
    %p272 = scmp.ne.s32.totalorder %s264, %s266
    %p273 = scmp.eq.s32.totalorder %s25, 1
    %p274 = por %p272, %p273
    %p275 = scmp.ne.s32.totalorder %s266, %s267
    %p276 = scmp.eq.s32.totalorder %s25, 0
    %p277 = por %p275, %p276
    %p278 = scmp.ne.s32.totalorder %s266, %s267
    %p279 = scmp.eq.s32.totalorder %s26, 1
    %p280 = por %p278, %p279
    %p282 = scmp.ne.s32.totalorder %s267, %s281
    %p283 = scmp.eq.s32.totalorder %s26, 0
    %p284 = por %p282, %p283
    %s286 = sadd.s32 %s285, 1
    %p289 = scmp.eq.s32.totalorder %s20, 1
    %p290 = scmp.ne.s32.totalorder %s285, %s287
    %p291 = scmp.eq.s32.totalorder %s20, 0
    %p292 = por %p290, %p291
    %p293 = scmp.ne.s32.totalorder %s285, %s287
    %p294 = scmp.eq.s32.totalorder %s25, 1
    %p295 = por %p293, %p294
    %p296 = scmp.ne.s32.totalorder %s287, %s288
    %p297 = scmp.eq.s32.totalorder %s25, 0
    %p298 = por %p296, %p297
    %p299 = scmp.ne.s32.totalorder %s287, %s288
    %p300 = scmp.eq.s32.totalorder %s26, 1
    %p301 = por %p299, %p300
    %p303 = scmp.ne.s32.totalorder %s288, %s302
    %p304 = scmp.eq.s32.totalorder %s26, 0
    %p305 = por %p303, %p304
    %s307 = sadd.s32 %s306, 1
    %p310 = scmp.eq.s32.totalorder %s20, 1
    %p311 = scmp.ne.s32.totalorder %s306, %s308
    %p312 = scmp.eq.s32.totalorder %s20, 0
    %p313 = por %p311, %p312
    %p314 = scmp.ne.s32.totalorder %s306, %s308
    %p315 = scmp.eq.s32.totalorder %s25, 1
    %p316 = por %p314, %p315
    %p317 = scmp.ne.s32.totalorder %s308, %s309
    %p318 = scmp.eq.s32.totalorder %s25, 0
    %p319 = por %p317, %p318
    %p320 = scmp.ne.s32.totalorder %s308, %s309
    %p321 = scmp.eq.s32.totalorder %s26, 1
    %p322 = por %p320, %p321
    %p324 = scmp.ne.s32.totalorder %s309, %s323
    %p325 = scmp.eq.s32.totalorder %s26, 0
    %p326 = por %p324, %p325
    %s327 = ssub.s32 %s20, %s27
    %p328 = scmp.eq.s32.totalorder %s327, 0
    %s330 = sadd.s32 %s329, 1
    %s331 = scalar_select %p328, %s329, %s330
    %p334 = pneg %p328
    %p335 = scmp.eq.s32.totalorder %s20, 1
    %p336 = por %p334, %p335
    %p337 = scmp.ne.s32.totalorder %s329, %s332
    %p338 = scmp.eq.s32.totalorder %s20, 0
    %p339 = por %p337, %p338
    %p340 = scmp.ne.s32.totalorder %s329, %s332
    %p341 = scmp.eq.s32.totalorder %s25, 1
    %p342 = por %p340, %p341
    %p343 = scmp.ne.s32.totalorder %s332, %s333
    %p344 = scmp.eq.s32.totalorder %s25, 0
    %p345 = por %p343, %p344
    %p346 = scmp.ne.s32.totalorder %s332, %s333
    %p347 = scmp.eq.s32.totalorder %s26, 1
    %p348 = por %p346, %p347
    %p350 = scmp.ne.s32.totalorder %s333, %s349
    %p351 = scmp.eq.s32.totalorder %s26, 0
    %p352 = por %p350, %p351
    %p353 = scmp.le.s32.totalorder 1, %s20
    %p354 = scmp.lt.s32.totalorder %s20, 3
    %p355 = pnand %p353, %p354
    %p356 = pneg %p355
    // Predicated region
    $region9: #{vision_transformer_forward.6} parent=5 // pred_check
      _
    $region10: #{vision_transformer_forward.6} parent=5 // pred_check_branch
      %358 = sbr.rel (%p355) target = $region12
    $region11: #{vision_transformer_forward.6} parent=5 // pred_region
      %s359 = ssub.s32 %s20, 1
      // Predicated region
      $region13: #{vision_transformer_forward.6} parent=11 // pred_check
        %p360 = pneg %p67
      $region14: #{vision_transformer_forward.6} parent=11 // pred_check_branch
        %362 = sbr.rel (%p360) target = $region16
      $region15: #{vision_transformer_forward.6} parent=11 // pred_region
        _
      $region16: #{vision_transformer_forward.6} parent=11 // pred_fallthru
        _
      // Predicated region
      $region17: #{vision_transformer_forward.6} parent=11 // pred_check
        %p363 = pneg %p88
      $region18: #{vision_transformer_forward.6} parent=11 // pred_check_branch
        %365 = sbr.rel (%p363) target = $region20
      $region19: #{vision_transformer_forward.6} parent=11 // pred_region
        _
      $region20: #{vision_transformer_forward.6} parent=11 // pred_fallthru
        _
      // Predicated region
      $region21: #{vision_transformer_forward.6} parent=11 // pred_check
        %p366 = pneg %p109
      $region22: #{vision_transformer_forward.6} parent=11 // pred_check_branch
        %368 = sbr.rel (%p366) target = $region24
      $region23: #{vision_transformer_forward.6} parent=11 // pred_region
        _
      $region24: #{vision_transformer_forward.6} parent=11 // pred_fallthru
        _
      // Predicated region
      $region25: #{vision_transformer_forward.6} parent=11 // pred_check
        %p369 = pneg %p130
      $region26: #{vision_transformer_forward.6} parent=11 // pred_check_branch
        %371 = sbr.rel (%p369) target = $region28
      $region27: #{vision_transformer_forward.6} parent=11 // pred_region
        _
      $region28: #{vision_transformer_forward.6} parent=11 // pred_fallthru
        _
      // Predicated region
      $region29: #{vision_transformer_forward.6} parent=11 // pred_check
        %p372 = pneg %p151
      $region30: #{vision_transformer_forward.6} parent=11 // pred_check_branch
        %374 = sbr.rel (%p372) target = $region32
      $region31: #{vision_transformer_forward.6} parent=11 // pred_region
        _
      $region32: #{vision_transformer_forward.6} parent=11 // pred_fallthru
        _
      // Predicated region
      $region33: #{vision_transformer_forward.6} parent=11 // pred_check
        %p375 = pneg %p172
      $region34: #{vision_transformer_forward.6} parent=11 // pred_check_branch
        %377 = sbr.rel (%p375) target = $region36
      $region35: #{vision_transformer_forward.6} parent=11 // pred_region
        _
      $region36: #{vision_transformer_forward.6} parent=11 // pred_fallthru
        _
      // Predicated region
      $region37: #{vision_transformer_forward.6} parent=11 // pred_check
        %p378 = pneg %p193
      $region38: #{vision_transformer_forward.6} parent=11 // pred_check_branch
        %380 = sbr.rel (%p378) target = $region40
      $region39: #{vision_transformer_forward.6} parent=11 // pred_region
        _
      $region40: #{vision_transformer_forward.6} parent=11 // pred_fallthru
        _
      // Predicated region
      $region41: #{vision_transformer_forward.6} parent=11 // pred_check
        %p381 = pneg %p214
      $region42: #{vision_transformer_forward.6} parent=11 // pred_check_branch
        %383 = sbr.rel (%p381) target = $region44
      $region43: #{vision_transformer_forward.6} parent=11 // pred_region
        _
      $region44: #{vision_transformer_forward.6} parent=11 // pred_fallthru
        _
      // Predicated region
      $region45: #{vision_transformer_forward.6} parent=11 // pred_check
        %p384 = pneg %p235
      $region46: #{vision_transformer_forward.6} parent=11 // pred_check_branch
        %386 = sbr.rel (%p384) target = $region48
      $region47: #{vision_transformer_forward.6} parent=11 // pred_region
        _
      $region48: #{vision_transformer_forward.6} parent=11 // pred_fallthru
        _
      // Predicated region
      $region49: #{vision_transformer_forward.6} parent=11 // pred_check
        %p387 = pneg %p256
      $region50: #{vision_transformer_forward.6} parent=11 // pred_check_branch
        %389 = sbr.rel (%p387) target = $region52
      $region51: #{vision_transformer_forward.6} parent=11 // pred_region
        _
      $region52: #{vision_transformer_forward.6} parent=11 // pred_fallthru
        _
      // Predicated region
      $region53: #{vision_transformer_forward.6} parent=11 // pred_check
        %p390 = pneg %p277
      $region54: #{vision_transformer_forward.6} parent=11 // pred_check_branch
        %392 = sbr.rel (%p390) target = $region56
      $region55: #{vision_transformer_forward.6} parent=11 // pred_region
        _
      $region56: #{vision_transformer_forward.6} parent=11 // pred_fallthru
        _
      // Predicated region
      $region57: #{vision_transformer_forward.6} parent=11 // pred_check
        %p393 = pneg %p298
      $region58: #{vision_transformer_forward.6} parent=11 // pred_check_branch
        %395 = sbr.rel (%p393) target = $region60
      $region59: #{vision_transformer_forward.6} parent=11 // pred_region
        _
      $region60: #{vision_transformer_forward.6} parent=11 // pred_fallthru
        _
      // Predicated region
      $region61: #{vision_transformer_forward.6} parent=11 // pred_check
        %p396 = pneg %p319
      $region62: #{vision_transformer_forward.6} parent=11 // pred_check_branch
        %398 = sbr.rel (%p396) target = $region64
      $region63: #{vision_transformer_forward.6} parent=11 // pred_region
        _
      $region64: #{vision_transformer_forward.6} parent=11 // pred_fallthru
        _
    $region12: #{vision_transformer_forward.6} parent=5 // pred_fallthru
      _
    %p399 = scmp.lt.s32.totalorder %s20, 2
    // Predicated region
    $region65: #{vision_transformer_forward.6} parent=5 // pred_check
      %p400 = pneg %p399
    $region66: #{vision_transformer_forward.6} parent=5 // pred_check_branch
      %402 = sbr.rel (%p400) target = $region68
    $region67: #{vision_transformer_forward.6} parent=5 // pred_region
      // Predicated region
      $region69: #{vision_transformer_forward.6} parent=67 // pred_check
        %p403 = pneg %p40
      $region70: #{vision_transformer_forward.6} parent=67 // pred_check_branch
        %405 = sbr.rel (%p403) target = $region72
      $region71: #{vision_transformer_forward.6} parent=67 // pred_region
        %p406 = scmp.lt.s32.totalorder %s20, 1
        %s407 = scalar_select %p406, %s20, 1
        %s408 = smul.addr %s407, 2
        %s409 = smul.addr %s408, 4
        %s410 = scalar_lea.vmem %s0, %s409
      $region72: #{vision_transformer_forward.6} parent=67 // pred_fallthru
        _
    $region68: #{vision_transformer_forward.6} parent=5 // pred_fallthru
      _
    %p411 = scmp.le.s32.totalorder 1, %s20
    %p412 = scmp.lt.s32.totalorder %s20, 3
    %p413 = pnand %p411, %p412
    %p414 = pneg %p413
    // Predicated region
    $region73: #{vision_transformer_forward.6} parent=5 // pred_check
      _
    $region74: #{vision_transformer_forward.6} parent=5 // pred_check_branch
      %416 = sbr.rel (%p413) target = $region76
    $region75: #{vision_transformer_forward.6} parent=5 // pred_region
      %s417 = ssub.s32 %s20, 1
      %p418 = scmp.lt.s32.totalorder %s25, 1
      %s419 = scalar_select %p418, %s25, 1
      %s420 = smul.addr %s419, 2
      %s421 = smul.addr %s420, 4
      %s422 = scalar_lea.vmem %s0, %s421
      %p423 = pneg %p46
      %p424 = pneg %p43
      %p425 = pneg %p67
      %p426 = pneg %p64
      %p427 = pneg %p88
      %p428 = pneg %p85
      %p429 = pneg %p109
      %p430 = pneg %p106
      %p431 = pneg %p130
      %p432 = pneg %p127
      %p433 = pneg %p151
      %p434 = pneg %p148
      %p435 = pneg %p172
      %p436 = pneg %p169
      %p437 = pneg %p193
      %p438 = pneg %p190
      %p439 = pneg %p214
      %p440 = pneg %p211
      %p441 = pneg %p235
      %p442 = pneg %p232
      %p443 = pneg %p256
      %p444 = pneg %p253
      %p445 = pneg %p277
      %p446 = pneg %p274
      %p447 = pneg %p298
      %p448 = pneg %p295
      %p449 = pneg %p319
      %p450 = pneg %p316
      %p451 = pneg %p345
      %p452 = pneg %p342
      %p453 = scmp.lt.s32.totalorder %s25, 1
      %s454 = scalar_select %p453, %s25, 1
      %s455 = smul.addr %s454, 2
      %s456 = smul.addr %s455, 4
      %s457 = scalar_lea.vmem %s14, %s456
      %p458 = scmp.lt.s32.totalorder %s25, 1
      %s459 = scalar_select %p458, %s25, 1
      %s460 = smul.addr %s459, 2
      %s461 = smul.addr %s460, 4
      %s462 = scalar_lea.vmem %s0, %s461
      %p463 = scmp.lt.s32.totalorder %s25, 1
      %s464 = scalar_select %p463, %s25, 1
      %s465 = smul.addr %s464, 2
      %s466 = smul.addr %s465, 4
      %s467 = scalar_lea.vmem %s14, %s466
      %v469 = vld [vmem:[%s462] sm:$0xf]
      %v470 = vld [vmem:[%s462 + $0x4] sm:$0x1]
      %v471 = vunpack.c.l.bf16 %v469
      %v472 = vunpack.c.l.bf16 %v470
      %v473 = vlaneseq
      %v474 = vshrl.u32 %v473, 7
      %v475 = vadd.s32 %v474, 8
      %vm476 = vcmp.ge.s32.totalorder %v474, 5
      %vm477 = vcmp.ge.s32.totalorder %v475, 5
      %v478 = vld [vmem:[%s13] sm:$0xf]
      %v479 = vld [vmem:[%s13 + $0x4] sm:$0x1]
      %v480 = vunpack.c.l.bf16 %v478
      %v481 = vunpack.c.l.bf16 %v479
      %v482 = vsel %vm476, 1, 0
      %v483 = vsel %vm477, 1, 0
      %vm484 = vcmp.eq.s32.totalorder %v482, 1
      %vm485 = vcmp.eq.s32.totalorder %v483, 1
      %v486 = vsel %vm484, %v480, %v471
      %v487 = vsel %vm485, %v481, %v472
      %v488 = vld [vmem:[%s1] sm:$0x1]
      %v489 = vld [vmem:[%s2] sm:$0x1]
      %vm490 = vcmask 261120
      %v491 = vsel %vm490, %v486, 0.0
      %492 = vadd.xlane.f32.xlu0 %v491
      %v493 = vpop.xlane.xlu0 %492
      %vm494 = vcmask 253952
      %v495 = vsel %vm494, %v487, 0.0
      %496 = vadd.xlane.f32.xlu0 %v495
      %v497 = vpop.xlane.xlu0 %496
      %v498 = vrcp.pop 32.0
      %v499 = vmul.f32 %v493, %v498
      %v500 = vmul.f32 %v497, %v498
      %v501 = vsub.f32 %v486, %v499
      %v502 = vsub.f32 %v487, %v500
      %v503 = vmul.f32 %v501, %v501
      %v504 = vmul.f32 %v502, %v502
      %v505 = vsel %vm490, %v503, 0.0
      %506 = vadd.xlane.f32.xlu0 %v505
      %v507 = vpop.xlane.xlu0 %506
      %v508 = vsel %vm494, %v504, 0.0
      %509 = vadd.xlane.f32.xlu0 %v508
      %v510 = vpop.xlane.xlu0 %509
      %v511 = vmul.f32 %v507, %v498
      %v512 = vmul.f32 %v510, %v498
      %v513 = vadd.f32 %v511, 1e-05
      %v514 = vadd.f32 %v512, 1e-05
      %v515 = vrsqrt.pop %v513
      %v516 = vrsqrt.pop %v514
      %v517 = vmul.f32 %v501, %v515
      %v518 = vmul.f32 %v502, %v516
      %v520 = vlaneseq
      %v521 = vshrl.u32 %v520, 7
      %v522 = vsub.s32 0, %v521
      %v523 = vrot.slane %v488, %v522
      %v525 = vmul.f32 %v517, %v523
      %v526 = vmul.f32 %v518, %v523
      %v528 = vlaneseq
      %v529 = vshrl.u32 %v528, 7
      %v530 = vsub.s32 0, %v529
      %v531 = vrot.slane %v489, %v530
      %v533 = vadd.f32 %v525, %v531
      %v534 = vadd.f32 %v526, %v531
      %v535 = vpack.c.bf16 %v534, %v533
      %v536 = vld [vmem:[%s3] sm:$0xf]
      %v537 = vld [vmem:[%s3 + $0x4] sm:$0xf]
      %v538 = vld [vmem:[%s3 + $0x8] sm:$0xf]
      %v539 = vld [vmem:[%s3 + $0xc] sm:$0xf]
      %v540 = vld [vmem:[%s4] sm:$0x1]
      %v542 = vlaneseq
      %v543 = vshrl.u32 %v542, 7
      %v544 = vsub.s32 0, %v543
      %v545 = vrot.slane %v540, %v544
      %v551 = vunpack.c.l.b16 %v536
      %v552 = vunpack.c.l.b16 %v537
      %v553 = vunpack.c.l.b16 %v538
      %v554 = vunpack.c.l.b16 %v539
      %v555 = vpack.c.b16 %v552, %v551
      %v556 = vpack.c.b16 %v554, %v553
      %v560 = vsel %vm490, %v535, 0
      %562 = vmatprep.subr.bf16.mxu0 0
      %563 = vmatpush1.bf16.msra.mxu0 %v555
      %564 = vmatprep.subr.bf16.mxu0 0
      %565 = vmatpush1.bf16.msra.mxu0 %v556
      %566 = vmatprep.subr.bf16.mxu0 0
      %567 = vmatpush1.bf16.msra.mxu0 0
      %568 = vmatprep.subr.bf16.mxu0 0
      %569 = vmatpush1.bf16.msra.mxu0 0
      %570 = vmatprep.subr.bf16.mxu0 0
      %571 = vmatpush1.bf16.msra.mxu0 0
      %572 = vmatprep.subr.bf16.mxu0 0
      %573 = vmatpush1.bf16.msra.mxu0 0
      %574 = vmatprep.subr.bf16.mxu0 0
      %575 = vmatpush1.bf16.msra.mxu0 0
      %576 = vmatprep.subr.bf16.mxu0 0
      %577 = vmatpush1.bf16.msra.mxu0 0
      %578 = vmatprep.subr.bf16.mxu0 0
      %579 = vmatpush1.bf16.msra.mxu0 0
      %580 = vmatprep.subr.bf16.mxu0 0
      %581 = vmatpush1.bf16.msra.mxu0 0
      %582 = vmatprep.subr.bf16.mxu0 0
      %583 = vmatpush1.bf16.msra.mxu0 0
      %584 = vmatprep.subr.bf16.mxu0 0
      %585 = vmatpush1.bf16.msra.mxu0 0
      %586 = vmatprep.subr.bf16.mxu0 0
      %587 = vmatpush1.bf16.msra.mxu0 0
      %588 = vmatprep.subr.bf16.mxu0 0
      %589 = vmatpush1.bf16.msra.mxu0 0
      %590 = vmatprep.subr.bf16.mxu0 0
      %591 = vmatpush1.bf16.msra.mxu0 0
      %592 = vmatprep.subr.bf16.mxu0 0
      %593 = vmatpush1.bf16.msra.mxu0 0
      %594 = vmatprep.mubr.bf16.mxu0 0
      %595 = vmatmul.mubr.bf16.gmra.mrb[0].mxu0 %v560
      %v596 = vpop.f32.mrb[0].mxu0
      %v597 = vadd.f32 %v545, %v596
      %v598 = vpop.f32.mrb[0].mxu0
      %v599 = vpop.f32.mrb[0].mxu0
      %v600 = vadd.f32 %v545, %v599
      %v601 = vpop.f32.mrb[0].mxu0
      %602 = vdwg.mxu0
      %v603 = vmul.f32 %v597, 0.35355338
      %v604 = vmul.f32 %v600, 0.35355338
      %v605 = vpack.c.bf16 %v604, %v603
      %v606 = vpack.c.bf16 %v600, %v597
      %608 = vrot.lane.b32.xlu0 %v606, 96
      %v609 = vpop.permute.xlu0 %608
      %vm610 = vcmask 64512
      %v612 = vsel %vm610, %v605, 0
      %v615 = vsel %vm610, %v609, 0
      %617 = vmatprep.subr.bf16.mxu0 0
      %618 = vmatpush1.bf16.xpose.msra.mxu0 %v615
      %619 = vmatprep.subr.bf16.mxu0 0
      %620 = vmatpush1.bf16.xpose.msra.mxu0 0
      %621 = vmatprep.subr.bf16.mxu0 0
      %622 = vmatpush1.bf16.xpose.msra.mxu0 0
      %623 = vmatprep.subr.bf16.mxu0 0
      %624 = vmatpush1.bf16.xpose.msra.mxu0 0
      %625 = vmatprep.subr.bf16.mxu0 0
      %626 = vmatpush1.bf16.xpose.msra.mxu0 0
      %627 = vmatprep.subr.bf16.mxu0 0
      %628 = vmatpush1.bf16.xpose.msra.mxu0 0
      %629 = vmatprep.subr.bf16.mxu0 0
      %630 = vmatpush1.bf16.xpose.msra.mxu0 0
      %631 = vmatprep.subr.bf16.mxu0 0
      %632 = vmatpush1.bf16.xpose.msra.mxu0 0
      %633 = vmatprep.subr.bf16.mxu0 0
      %634 = vmatpush1.bf16.xpose.msra.mxu0 0
      %635 = vmatprep.subr.bf16.mxu0 0
      %636 = vmatpush1.bf16.xpose.msra.mxu0 0
      %637 = vmatprep.subr.bf16.mxu0 0
      %638 = vmatpush1.bf16.xpose.msra.mxu0 0
      %639 = vmatprep.subr.bf16.mxu0 0
      %640 = vmatpush1.bf16.xpose.msra.mxu0 0
      %641 = vmatprep.subr.bf16.mxu0 0
      %642 = vmatpush1.bf16.xpose.msra.mxu0 0
      %643 = vmatprep.subr.bf16.mxu0 0
      %644 = vmatpush1.bf16.xpose.msra.mxu0 0
      %645 = vmatprep.subr.bf16.mxu0 0
      %646 = vmatpush1.bf16.xpose.msra.mxu0 0
      %647 = vmatprep.subr.bf16.mxu0 0
      %648 = vmatpush1.bf16.xpose.msra.mxu0 0
      %649 = vmatprep.mubr.bf16.mxu0 0
      %650 = vmatmul.mubr.bf16.gmra.mrb[0].mxu0 %v612
      %v651 = vpop.f32.mrb[0].mxu0
      %v652 = vadd.f32 0.0, %v651
      %v653 = vpop.f32.mrb[0].mxu0
      %v654 = vpop.f32.mrb[0].mxu0
      %v655 = vadd.f32 0.0, %v654
      %v656 = vpop.f32.mrb[0].mxu0
      %657 = vdwg.mxu0
      %vm658 = vcmask 72704
      %v659 = vsel %vm658, %v652, -inf
      %660 = vmax.xlane.f32.xlu0 %v659
      %v661 = vpop.xlane.xlu0 %660
      %vm662 = vcmask 65536
      %v663 = vsel %vm662, %v655, -inf
      %664 = vmax.xlane.f32.xlu0 %v663
      %v665 = vpop.xlane.xlu0 %664
      %v666 = vsub.f32 %v652, %v661
      %v667 = vsub.f32 %v655, %v665
      %v668 = vmul.f32 %v666, 1.442695
      %v669 = vpow.pop %v668
      %v670 = vmul.f32 %v667, 1.442695
      %v671 = vpow.pop %v670
      %v672 = vsel %vm658, %v669, 0.0
      %673 = vadd.xlane.f32.xlu0 %v672
      %v674 = vpop.xlane.xlu0 %673
      %v675 = vsel %vm662, %v671, 0.0
      %676 = vadd.xlane.f32.xlu0 %v675
      %v677 = vpop.xlane.xlu0 %676
      %v678 = vrcp.pop %v674
      %v679 = vrcp.pop %v677
      %v680 = vmul.f32 %v669, %v678
      %v681 = vmul.f32 %v671, %v679
      %v682 = vpack.c.bf16 %v681, %v680
      %683 = vrot.lane.b32.xlu0 %v606, 64
      %v684 = vpop.permute.xlu0 %683
      %v686 = vsel %vm658, %v682, 0
      %vm688 = vcmask 1043456
      %vm689 = vcmask 1044480
      %v690 = vsel %vm688, 4294967295, 65535
      %v691 = vsel %vm689, %v690, 0
      %v693 = vand.u32 %v684, %v691
      %695 = vmatprep.subr.bf16.mxu0 0
      %696 = vmatpush1.bf16.msra.mxu0 %v693
      %697 = vmatprep.subr.bf16.mxu0 0
      %698 = vmatpush1.bf16.msra.mxu0 0
      %699 = vmatprep.subr.bf16.mxu0 0
      %700 = vmatpush1.bf16.msra.mxu0 0
      %701 = vmatprep.subr.bf16.mxu0 0
      %702 = vmatpush1.bf16.msra.mxu0 0
      %703 = vmatprep.subr.bf16.mxu0 0
      %704 = vmatpush1.bf16.msra.mxu0 0
      %705 = vmatprep.subr.bf16.mxu0 0
      %706 = vmatpush1.bf16.msra.mxu0 0
      %707 = vmatprep.subr.bf16.mxu0 0
      %708 = vmatpush1.bf16.msra.mxu0 0
      %709 = vmatprep.subr.bf16.mxu0 0
      %710 = vmatpush1.bf16.msra.mxu0 0
      %711 = vmatprep.subr.bf16.mxu0 0
      %712 = vmatpush1.bf16.msra.mxu0 0
      %713 = vmatprep.subr.bf16.mxu0 0
      %714 = vmatpush1.bf16.msra.mxu0 0
      %715 = vmatprep.subr.bf16.mxu0 0
      %716 = vmatpush1.bf16.msra.mxu0 0
      %717 = vmatprep.subr.bf16.mxu0 0
      %718 = vmatpush1.bf16.msra.mxu0 0
      %719 = vmatprep.subr.bf16.mxu0 0
      %720 = vmatpush1.bf16.msra.mxu0 0
      %721 = vmatprep.subr.bf16.mxu0 0
      %722 = vmatpush1.bf16.msra.mxu0 0
      %723 = vmatprep.subr.bf16.mxu0 0
      %724 = vmatpush1.bf16.msra.mxu0 0
      %725 = vmatprep.subr.bf16.mxu0 0
      %726 = vmatpush1.bf16.msra.mxu0 0
      %727 = vmatprep.mubr.bf16.mxu0 0
      %728 = vmatmul.mubr.bf16.gmra.mrb[0].mxu0 %v686
      %v729 = vpop.f32.mrb[0].mxu0
      %v730 = vadd.f32 0.0, %v729
      %v731 = vpop.f32.mrb[0].mxu0
      %v732 = vpop.f32.mrb[0].mxu0
      %v733 = vadd.f32 0.0, %v732
      %v734 = vpop.f32.mrb[0].mxu0
      %735 = vdwg.mxu0
      %737 = vrot.lane.b32.xlu0 %v605, 120
      %v738 = vpop.permute.xlu0 %737
      %739 = vrot.lane.b32.xlu0 %v606, 88
      %v740 = vpop.permute.xlu0 %739
      %v742 = vsel %vm610, %v738, 0
      %v745 = vsel %vm610, %v740, 0
      %747 = vmatprep.subr.bf16.mxu0 0
      %748 = vmatpush1.bf16.xpose.msra.mxu0 %v745
      %749 = vmatprep.subr.bf16.mxu0 0
      %750 = vmatpush1.bf16.xpose.msra.mxu0 0
      %751 = vmatprep.subr.bf16.mxu0 0
      %752 = vmatpush1.bf16.xpose.msra.mxu0 0
      %753 = vmatprep.subr.bf16.mxu0 0
      %754 = vmatpush1.bf16.xpose.msra.mxu0 0
      %755 = vmatprep.subr.bf16.mxu0 0
      %756 = vmatpush1.bf16.xpose.msra.mxu0 0
      %757 = vmatprep.subr.bf16.mxu0 0
      %758 = vmatpush1.bf16.xpose.msra.mxu0 0
      %759 = vmatprep.subr.bf16.mxu0 0
      %760 = vmatpush1.bf16.xpose.msra.mxu0 0
      %761 = vmatprep.subr.bf16.mxu0 0
      %762 = vmatpush1.bf16.xpose.msra.mxu0 0
      %763 = vmatprep.subr.bf16.mxu0 0
      %764 = vmatpush1.bf16.xpose.msra.mxu0 0
      %765 = vmatprep.subr.bf16.mxu0 0
      %766 = vmatpush1.bf16.xpose.msra.mxu0 0
      %767 = vmatprep.subr.bf16.mxu0 0
      %768 = vmatpush1.bf16.xpose.msra.mxu0 0
      %769 = vmatprep.subr.bf16.mxu0 0
      %770 = vmatpush1.bf16.xpose.msra.mxu0 0
      %771 = vmatprep.subr.bf16.mxu0 0
      %772 = vmatpush1.bf16.xpose.msra.mxu0 0
      %773 = vmatprep.subr.bf16.mxu0 0
      %774 = vmatpush1.bf16.xpose.msra.mxu0 0
      %775 = vmatprep.subr.bf16.mxu0 0
      %776 = vmatpush1.bf16.xpose.msra.mxu0 0
      %777 = vmatprep.subr.bf16.mxu0 0
      %778 = vmatpush1.bf16.xpose.msra.mxu0 0
      %779 = vmatprep.mubr.bf16.mxu0 0
      %780 = vmatmul.mubr.bf16.gmra.mrb[0].mxu0 %v742
      %v781 = vpop.f32.mrb[0].mxu0
      %v782 = vadd.f32 0.0, %v781
      %v783 = vpop.f32.mrb[0].mxu0
      %v784 = vpop.f32.mrb[0].mxu0
      %v785 = vadd.f32 0.0, %v784
      %v786 = vpop.f32.mrb[0].mxu0
      %787 = vdwg.mxu0
      %v788 = vsel %vm658, %v782, -inf
      %789 = vmax.xlane.f32.xlu0 %v788
      %v790 = vpop.xlane.xlu0 %789
      %v791 = vsel %vm662, %v785, -inf
      %792 = vmax.xlane.f32.xlu0 %v791
      %v793 = vpop.xlane.xlu0 %792
      %v794 = vsub.f32 %v782, %v790
      %v795 = vsub.f32 %v785, %v793
      %v796 = vmul.f32 %v794, 1.442695
      %v797 = vpow.pop %v796
      %v798 = vmul.f32 %v795, 1.442695
      %v799 = vpow.pop %v798
      %v800 = vsel %vm658, %v797, 0.0
      %801 = vadd.xlane.f32.xlu0 %v800
      %v802 = vpop.xlane.xlu0 %801
      %v803 = vsel %vm662, %v799, 0.0
      %804 = vadd.xlane.f32.xlu0 %v803
      %v805 = vpop.xlane.xlu0 %804
      %v806 = vrcp.pop %v802
      %v807 = vrcp.pop %v805
      %v808 = vmul.f32 %v797, %v806
      %v809 = vmul.f32 %v799, %v807
      %v810 = vpack.c.bf16 %v809, %v808
      %811 = vrot.lane.b32.xlu0 %v606, 56
      %v812 = vpop.permute.xlu0 %811
      %v814 = vsel %vm658, %v810, 0
      %v817 = vand.u32 %v812, %v691
      %819 = vmatprep.subr.bf16.mxu0 0
      %820 = vmatpush1.bf16.msra.mxu0 %v817
      %821 = vmatprep.subr.bf16.mxu0 0
      %822 = vmatpush1.bf16.msra.mxu0 0
      %823 = vmatprep.subr.bf16.mxu0 0
      %824 = vmatpush1.bf16.msra.mxu0 0
      %825 = vmatprep.subr.bf16.mxu0 0
      %826 = vmatpush1.bf16.msra.mxu0 0
      %827 = vmatprep.subr.bf16.mxu0 0
      %828 = vmatpush1.bf16.msra.mxu0 0
      %829 = vmatprep.subr.bf16.mxu0 0
      %830 = vmatpush1.bf16.msra.mxu0 0
      %831 = vmatprep.subr.bf16.mxu0 0
      %832 = vmatpush1.bf16.msra.mxu0 0
      %833 = vmatprep.subr.bf16.mxu0 0
      %834 = vmatpush1.bf16.msra.mxu0 0
      %835 = vmatprep.subr.bf16.mxu0 0
      %836 = vmatpush1.bf16.msra.mxu0 0
      %837 = vmatprep.subr.bf16.mxu0 0
      %838 = vmatpush1.bf16.msra.mxu0 0
      %839 = vmatprep.subr.bf16.mxu0 0
      %840 = vmatpush1.bf16.msra.mxu0 0
      %841 = vmatprep.subr.bf16.mxu0 0
      %842 = vmatpush1.bf16.msra.mxu0 0
      %843 = vmatprep.subr.bf16.mxu0 0
      %844 = vmatpush1.bf16.msra.mxu0 0
      %845 = vmatprep.subr.bf16.mxu0 0
      %846 = vmatpush1.bf16.msra.mxu0 0
      %847 = vmatprep.subr.bf16.mxu0 0
      %848 = vmatpush1.bf16.msra.mxu0 0
      %849 = vmatprep.subr.bf16.mxu0 0
      %850 = vmatpush1.bf16.msra.mxu0 0
      %851 = vmatprep.mubr.bf16.mxu0 0
      %852 = vmatmul.mubr.bf16.gmra.mrb[0].mxu0 %v814
      %v853 = vpop.f32.mrb[0].mxu0
      %v854 = vadd.f32 0.0, %v853
      %v855 = vpop.f32.mrb[0].mxu0
      %v856 = vpop.f32.mrb[0].mxu0
      %v857 = vadd.f32 0.0, %v856
      %v858 = vpop.f32.mrb[0].mxu0
      %859 = vdwg.mxu0
      %860 = vrot.lane.b32.xlu0 %v605, 112
      %v861 = vpop.permute.xlu0 %860
      %862 = vrot.lane.b32.xlu0 %v606, 80
      %v863 = vpop.permute.xlu0 %862
      %v865 = vsel %vm610, %v861, 0
      %v868 = vsel %vm610, %v863, 0
      %870 = vmatprep.subr.bf16.mxu0 0
      %871 = vmatpush1.bf16.xpose.msra.mxu0 %v868
      %872 = vmatprep.subr.bf16.mxu0 0
      %873 = vmatpush1.bf16.xpose.msra.mxu0 0
      %874 = vmatprep.subr.bf16.mxu0 0
      %875 = vmatpush1.bf16.xpose.msra.mxu0 0
      %876 = vmatprep.subr.bf16.mxu0 0
      %877 = vmatpush1.bf16.xpose.msra.mxu0 0
      %878 = vmatprep.subr.bf16.mxu0 0
      %879 = vmatpush1.bf16.xpose.msra.mxu0 0
      %880 = vmatprep.subr.bf16.mxu0 0
      %881 = vmatpush1.bf16.xpose.msra.mxu0 0
      %882 = vmatprep.subr.bf16.mxu0 0
      %883 = vmatpush1.bf16.xpose.msra.mxu0 0
      %884 = vmatprep.subr.bf16.mxu0 0
      %885 = vmatpush1.bf16.xpose.msra.mxu0 0
      %886 = vmatprep.subr.bf16.mxu0 0
      %887 = vmatpush1.bf16.xpose.msra.mxu0 0
      %888 = vmatprep.subr.bf16.mxu0 0
      %889 = vmatpush1.bf16.xpose.msra.mxu0 0
      %890 = vmatprep.subr.bf16.mxu0 0
      %891 = vmatpush1.bf16.xpose.msra.mxu0 0
      %892 = vmatprep.subr.bf16.mxu0 0
      %893 = vmatpush1.bf16.xpose.msra.mxu0 0
      %894 = vmatprep.subr.bf16.mxu0 0
      %895 = vmatpush1.bf16.xpose.msra.mxu0 0
      %896 = vmatprep.subr.bf16.mxu0 0
      %897 = vmatpush1.bf16.xpose.msra.mxu0 0
      %898 = vmatprep.subr.bf16.mxu0 0
      %899 = vmatpush1.bf16.xpose.msra.mxu0 0
      %900 = vmatprep.subr.bf16.mxu0 0
      %901 = vmatpush1.bf16.xpose.msra.mxu0 0
      %902 = vmatprep.mubr.bf16.mxu0 0
      %903 = vmatmul.mubr.bf16.gmra.mrb[0].mxu0 %v865
      %v904 = vpop.f32.mrb[0].mxu0
      %v905 = vadd.f32 0.0, %v904
      %v906 = vpop.f32.mrb[0].mxu0
      %v907 = vpop.f32.mrb[0].mxu0
      %v908 = vadd.f32 0.0, %v907
      %v909 = vpop.f32.mrb[0].mxu0
      %910 = vdwg.mxu0
      %v911 = vsel %vm658, %v905, -inf
      %912 = vmax.xlane.f32.xlu0 %v911
      %v913 = vpop.xlane.xlu0 %912
      %v914 = vsel %vm662, %v908, -inf
      %915 = vmax.xlane.f32.xlu0 %v914
      %v916 = vpop.xlane.xlu0 %915
      %v917 = vsub.f32 %v905, %v913
      %v918 = vsub.f32 %v908, %v916
      %v919 = vmul.f32 %v917, 1.442695
      %v920 = vpow.pop %v919
      %v921 = vmul.f32 %v918, 1.442695
      %v922 = vpow.pop %v921
      %v923 = vsel %vm658, %v920, 0.0
      %924 = vadd.xlane.f32.xlu0 %v923
      %v925 = vpop.xlane.xlu0 %924
      %v926 = vsel %vm662, %v922, 0.0
      %927 = vadd.xlane.f32.xlu0 %v926
      %v928 = vpop.xlane.xlu0 %927
      %v929 = vrcp.pop %v925
      %v930 = vrcp.pop %v928
      %v931 = vmul.f32 %v920, %v929
      %v932 = vmul.f32 %v922, %v930
      %v933 = vpack.c.bf16 %v932, %v931
      %934 = vrot.lane.b32.xlu0 %v606, 48
      %v935 = vpop.permute.xlu0 %934
      %v937 = vsel %vm658, %v933, 0
      %v940 = vand.u32 %v935, %v691
      %942 = vmatprep.subr.bf16.mxu0 0
      %943 = vmatpush1.bf16.msra.mxu0 %v940
      %944 = vmatprep.subr.bf16.mxu0 0
      %945 = vmatpush1.bf16.msra.mxu0 0
      %946 = vmatprep.subr.bf16.mxu0 0
      %947 = vmatpush1.bf16.msra.mxu0 0
      %948 = vmatprep.subr.bf16.mxu0 0
      %949 = vmatpush1.bf16.msra.mxu0 0
      %950 = vmatprep.subr.bf16.mxu0 0
      %951 = vmatpush1.bf16.msra.mxu0 0
      %952 = vmatprep.subr.bf16.mxu0 0
      %953 = vmatpush1.bf16.msra.mxu0 0
      %954 = vmatprep.subr.bf16.mxu0 0
      %955 = vmatpush1.bf16.msra.mxu0 0
      %956 = vmatprep.subr.bf16.mxu0 0
      %957 = vmatpush1.bf16.msra.mxu0 0
      %958 = vmatprep.subr.bf16.mxu0 0
      %959 = vmatpush1.bf16.msra.mxu0 0
      %960 = vmatprep.subr.bf16.mxu0 0
      %961 = vmatpush1.bf16.msra.mxu0 0
      %962 = vmatprep.subr.bf16.mxu0 0
      %963 = vmatpush1.bf16.msra.mxu0 0
      %964 = vmatprep.subr.bf16.mxu0 0
      %965 = vmatpush1.bf16.msra.mxu0 0
      %966 = vmatprep.subr.bf16.mxu0 0
      %967 = vmatpush1.bf16.msra.mxu0 0
      %968 = vmatprep.subr.bf16.mxu0 0
      %969 = vmatpush1.bf16.msra.mxu0 0
      %970 = vmatprep.subr.bf16.mxu0 0
      %971 = vmatpush1.bf16.msra.mxu0 0
      %972 = vmatprep.subr.bf16.mxu0 0
      %973 = vmatpush1.bf16.msra.mxu0 0
      %974 = vmatprep.mubr.bf16.mxu0 0
      %975 = vmatmul.mubr.bf16.gmra.mrb[0].mxu0 %v937
      %v976 = vpop.f32.mrb[0].mxu0
      %v977 = vadd.f32 0.0, %v976
      %v978 = vpop.f32.mrb[0].mxu0
      %v979 = vpop.f32.mrb[0].mxu0
      %v980 = vadd.f32 0.0, %v979
      %v981 = vpop.f32.mrb[0].mxu0
      %982 = vdwg.mxu0
      %983 = vrot.lane.b32.xlu0 %v605, 104
      %v984 = vpop.permute.xlu0 %983
      %985 = vrot.lane.b32.xlu0 %v606, 72
      %v986 = vpop.permute.xlu0 %985
      %v988 = vsel %vm610, %v984, 0
      %v991 = vsel %vm610, %v986, 0
      %993 = vmatprep.subr.bf16.mxu0 0
      %994 = vmatpush1.bf16.xpose.msra.mxu0 %v991
      %995 = vmatprep.subr.bf16.mxu0 0
      %996 = vmatpush1.bf16.xpose.msra.mxu0 0
      %997 = vmatprep.subr.bf16.mxu0 0
      %998 = vmatpush1.bf16.xpose.msra.mxu0 0
      %999 = vmatprep.subr.bf16.mxu0 0
      %1000 = vmatpush1.bf16.xpose.msra.mxu0 0
      %1001 = vmatprep.subr.bf16.mxu0 0
      %1002 = vmatpush1.bf16.xpose.msra.mxu0 0
      %1003 = vmatprep.subr.bf16.mxu0 0
      %1004 = vmatpush1.bf16.xpose.msra.mxu0 0
      %1005 = vmatprep.subr.bf16.mxu0 0
      %1006 = vmatpush1.bf16.xpose.msra.mxu0 0
      %1007 = vmatprep.subr.bf16.mxu0 0
      %1008 = vmatpush1.bf16.xpose.msra.mxu0 0
      %1009 = vmatprep.subr.bf16.mxu0 0
      %1010 = vmatpush1.bf16.xpose.msra.mxu0 0
      %1011 = vmatprep.subr.bf16.mxu0 0
      %1012 = vmatpush1.bf16.xpose.msra.mxu0 0
      %1013 = vmatprep.subr.bf16.mxu0 0
      %1014 = vmatpush1.bf16.xpose.msra.mxu0 0
      %1015 = vmatprep.subr.bf16.mxu0 0
      %1016 = vmatpush1.bf16.xpose.msra.mxu0 0
      %1017 = vmatprep.subr.bf16.mxu0 0
      %1018 = vmatpush1.bf16.xpose.msra.mxu0 0
      %1019 = vmatprep.subr.bf16.mxu0 0
      %1020 = vmatpush1.bf16.xpose.msra.mxu0 0
      %1021 = vmatprep.subr.bf16.mxu0 0
      %1022 = vmatpush1.bf16.xpose.msra.mxu0 0
      %1023 = vmatprep.subr.bf16.mxu0 0
      %1024 = vmatpush1.bf16.xpose.msra.mxu0 0
      %1025 = vmatprep.mubr.bf16.mxu0 0
      %1026 = vmatmul.mubr.bf16.gmra.mrb[0].mxu0 %v988
      %v1027 = vpop.f32.mrb[0].mxu0
      %v1028 = vadd.f32 0.0, %v1027
      %v1029 = vpop.f32.mrb[0].mxu0
      %v1030 = vpop.f32.mrb[0].mxu0
      %v1031 = vadd.f32 0.0, %v1030
      %v1032 = vpop.f32.mrb[0].mxu0
      %1033 = vdwg.mxu0
      %v1034 = vsel %vm658, %v1028, -inf
      %1035 = vmax.xlane.f32.xlu0 %v1034
      %v1036 = vpop.xlane.xlu0 %1035
      %v1037 = vsel %vm662, %v1031, -inf
      %1038 = vmax.xlane.f32.xlu0 %v1037
      %v1039 = vpop.xlane.xlu0 %1038
      %v1040 = vsub.f32 %v1028, %v1036
      %v1041 = vsub.f32 %v1031, %v1039
      %v1042 = vmul.f32 %v1040, 1.442695
      %v1043 = vpow.pop %v1042
      %v1044 = vmul.f32 %v1041, 1.442695
      %v1045 = vpow.pop %v1044
      %v1046 = vsel %vm658, %v1043, 0.0
      %1047 = vadd.xlane.f32.xlu0 %v1046
      %v1048 = vpop.xlane.xlu0 %1047
      %v1049 = vsel %vm662, %v1045, 0.0
      %1050 = vadd.xlane.f32.xlu0 %v1049
      %v1051 = vpop.xlane.xlu0 %1050
      %v1052 = vrcp.pop %v1048
      %v1053 = vrcp.pop %v1051
      %v1054 = vmul.f32 %v1043, %v1052
      %v1055 = vmul.f32 %v1045, %v1053
      %v1056 = vpack.c.bf16 %v1055, %v1054
      %1057 = vrot.lane.b32.xlu0 %v606, 40
      %v1058 = vpop.permute.xlu0 %1057
      %v1060 = vsel %vm658, %v1056, 0
      %v1063 = vand.u32 %v1058, %v691
      %1065 = vmatprep.subr.bf16.mxu0 0
      %1066 = vmatpush1.bf16.msra.mxu0 %v1063
      %1067 = vmatprep.subr.bf16.mxu0 0
      %1068 = vmatpush1.bf16.msra.mxu0 0
      %1069 = vmatprep.subr.bf16.mxu0 0
      %1070 = vmatpush1.bf16.msra.mxu0 0
      %1071 = vmatprep.subr.bf16.mxu0 0
      %1072 = vmatpush1.bf16.msra.mxu0 0
      %1073 = vmatprep.subr.bf16.mxu0 0
      %1074 = vmatpush1.bf16.msra.mxu0 0
      %1075 = vmatprep.subr.bf16.mxu0 0
      %1076 = vmatpush1.bf16.msra.mxu0 0
      %1077 = vmatprep.subr.bf16.mxu0 0
      %1078 = vmatpush1.bf16.msra.mxu0 0
      %1079 = vmatprep.subr.bf16.mxu0 0
      %1080 = vmatpush1.bf16.msra.mxu0 0
      %1081 = vmatprep.subr.bf16.mxu0 0
      %1082 = vmatpush1.bf16.msra.mxu0 0
      %1083 = vmatprep.subr.bf16.mxu0 0
      %1084 = vmatpush1.bf16.msra.mxu0 0
      %1085 = vmatprep.subr.bf16.mxu0 0
      %1086 = vmatpush1.bf16.msra.mxu0 0
      %1087 = vmatprep.subr.bf16.mxu0 0
      %1088 = vmatpush1.bf16.msra.mxu0 0
      %1089 = vmatprep.subr.bf16.mxu0 0
      %1090 = vmatpush1.bf16.msra.mxu0 0
      %1091 = vmatprep.subr.bf16.mxu0 0
      %1092 = vmatpush1.bf16.msra.mxu0 0
      %1093 = vmatprep.subr.bf16.mxu0 0
      %1094 = vmatpush1.bf16.msra.mxu0 0
      %1095 = vmatprep.subr.bf16.mxu0 0
      %1096 = vmatpush1.bf16.msra.mxu0 0
      %1097 = vmatprep.mubr.bf16.mxu0 0
      %1098 = vmatmul.mubr.bf16.gmra.mrb[0].mxu0 %v1060
      %v1099 = vpop.f32.mrb[0].mxu0
      %v1100 = vadd.f32 0.0, %v1099
      %v1101 = vpop.f32.mrb[0].mxu0
      %v1102 = vpop.f32.mrb[0].mxu0
      %v1103 = vadd.f32 0.0, %v1102
      %v1104 = vpop.f32.mrb[0].mxu0
      %1105 = vdwg.mxu0
      %1108 = vrot.lane.b32.xlu0 %v854, 8
      %v1109 = vpop.permute.xlu0 %1108
      %1110 = vrot.lane.b32.xlu0 %v857, 8
      %v1111 = vpop.permute.xlu0 %1110
      %1116 = vrot.lane.b32.xlu0 %v977, 16
      %v1117 = vpop.permute.xlu0 %1116
      %1118 = vrot.lane.b32.xlu0 %v980, 16
      %v1119 = vpop.permute.xlu0 %1118
      %1124 = vrot.lane.b32.xlu0 %v1100, 24
      %v1125 = vpop.permute.xlu0 %1124
      %1126 = vrot.lane.b32.xlu0 %v1103, 24
      %v1127 = vpop.permute.xlu0 %1126
      %v1130 = vsel %vm610, %v730, %v1109
      %v1131 = vsel %vm610, %v733, %v1111
      %vm1132 = vcmask 130048
      %v1133 = vsel %vm1132, %v1130, %v1117
      %v1134 = vsel %vm1132, %v1131, %v1119
      %vm1135 = vcmask 195584
      %v1136 = vsel %vm1135, %v1133, %v1125
      %v1137 = vsel %vm1135, %v1134, %v1127
      %v1138 = vpack.c.bf16 %v1137, %v1136
      %v1139 = vld [vmem:[%s5] sm:$0xf]
      %v1140 = vld [vmem:[%s5 + $0x4] sm:$0xf]
      %v1141 = vld [vmem:[%s5 + $0x8] sm:$0xf]
      %v1142 = vld [vmem:[%s5 + $0xc] sm:$0xf]
      %v1147 = vunpack.c.l.b16 %v1139
      %v1148 = vunpack.c.l.b16 %v1140
      %v1149 = vunpack.c.l.b16 %v1141
      %v1150 = vunpack.c.l.b16 %v1142
      %v1151 = vpack.c.b16 %v1148, %v1147
      %v1152 = vpack.c.b16 %v1150, %v1149
      %v1156 = vsel %vm490, %v1138, 0
      %1158 = vmatprep.subr.bf16.mxu0 0
      %1159 = vmatpush1.bf16.msra.mxu0 %v1151
      %1160 = vmatprep.subr.bf16.mxu0 0
      %1161 = vmatpush1.bf16.msra.mxu0 %v1152
      %1162 = vmatprep.subr.bf16.mxu0 0
      %1163 = vmatpush1.bf16.msra.mxu0 0
      %1164 = vmatprep.subr.bf16.mxu0 0
      %1165 = vmatpush1.bf16.msra.mxu0 0
      %1166 = vmatprep.subr.bf16.mxu0 0
      %1167 = vmatpush1.bf16.msra.mxu0 0
      %1168 = vmatprep.subr.bf16.mxu0 0
      %1169 = vmatpush1.bf16.msra.mxu0 0
      %1170 = vmatprep.subr.bf16.mxu0 0
      %1171 = vmatpush1.bf16.msra.mxu0 0
      %1172 = vmatprep.subr.bf16.mxu0 0
      %1173 = vmatpush1.bf16.msra.mxu0 0
      %1174 = vmatprep.subr.bf16.mxu0 0
      %1175 = vmatpush1.bf16.msra.mxu0 0
      %1176 = vmatprep.subr.bf16.mxu0 0
      %1177 = vmatpush1.bf16.msra.mxu0 0
      %1178 = vmatprep.subr.bf16.mxu0 0
      %1179 = vmatpush1.bf16.msra.mxu0 0
      %1180 = vmatprep.subr.bf16.mxu0 0
      %1181 = vmatpush1.bf16.msra.mxu0 0
      %1182 = vmatprep.subr.bf16.mxu0 0
      %1183 = vmatpush1.bf16.msra.mxu0 0
      %1184 = vmatprep.subr.bf16.mxu0 0
      %1185 = vmatpush1.bf16.msra.mxu0 0
      %1186 = vmatprep.subr.bf16.mxu0 0
      %1187 = vmatpush1.bf16.msra.mxu0 0
      %1188 = vmatprep.subr.bf16.mxu0 0
      %1189 = vmatpush1.bf16.msra.mxu0 0
      %1190 = vmatprep.mubr.bf16.mxu0 0
      %1191 = vmatmul.mubr.bf16.gmra.mrb[0].mxu0 %v1156
      %v1192 = vpop.f32.mrb[0].mxu0
      %v1193 = vadd.f32 0.0, %v1192
      %v1194 = vpop.f32.mrb[0].mxu0
      %v1195 = vpop.f32.mrb[0].mxu0
      %v1196 = vadd.f32 0.0, %v1195
      %v1197 = vpop.f32.mrb[0].mxu0
      %1198 = vdwg.mxu0
      %v1199 = vadd.f32 %v486, %v1193
      %v1200 = vadd.f32 %v487, %v1196
      %v1201 = vld [vmem:[%s6] sm:$0x1]
      %v1203 = vlaneseq
      %v1204 = vshrl.u32 %v1203, 7
      %v1205 = vsub.s32 0, %v1204
      %v1206 = vrot.slane %v1201, %v1205
      %v1208 = vadd.f32 %v1199, %v1206
      %v1209 = vadd.f32 %v1200, %v1206
      %v1210 = vld [vmem:[%s7] sm:$0x1]
      %v1211 = vld [vmem:[%s8] sm:$0x1]
      %v1212 = vsel %vm490, %v1208, 0.0
      %1213 = vadd.xlane.f32.xlu0 %v1212
      %v1214 = vpop.xlane.xlu0 %1213
      %v1215 = vsel %vm494, %v1209, 0.0
      %1216 = vadd.xlane.f32.xlu0 %v1215
      %v1217 = vpop.xlane.xlu0 %1216
      %v1218 = vmul.f32 %v1214, %v498
      %v1219 = vmul.f32 %v1217, %v498
      %v1220 = vsub.f32 %v1208, %v1218
      %v1221 = vsub.f32 %v1209, %v1219
      %v1222 = vmul.f32 %v1220, %v1220
      %v1223 = vmul.f32 %v1221, %v1221
      %v1224 = vsel %vm490, %v1222, 0.0
      %1225 = vadd.xlane.f32.xlu0 %v1224
      %v1226 = vpop.xlane.xlu0 %1225
      %v1227 = vsel %vm494, %v1223, 0.0
      %1228 = vadd.xlane.f32.xlu0 %v1227
      %v1229 = vpop.xlane.xlu0 %1228
      %v1230 = vmul.f32 %v1226, %v498
      %v1231 = vmul.f32 %v1229, %v498
      %v1232 = vadd.f32 %v1230, 1e-05
      %v1233 = vadd.f32 %v1231, 1e-05
      %v1234 = vrsqrt.pop %v1232
      %v1235 = vrsqrt.pop %v1233
      %v1236 = vmul.f32 %v1220, %v1234
      %v1237 = vmul.f32 %v1221, %v1235
      %v1239 = vlaneseq
      %v1240 = vshrl.u32 %v1239, 7
      %v1241 = vsub.s32 0, %v1240
      %v1242 = vrot.slane %v1210, %v1241
      %v1244 = vmul.f32 %v1236, %v1242
      %v1245 = vmul.f32 %v1237, %v1242
      %v1247 = vlaneseq
      %v1248 = vshrl.u32 %v1247, 7
      %v1249 = vsub.s32 0, %v1248
      %v1250 = vrot.slane %v1211, %v1249
      %v1252 = vadd.f32 %v1244, %v1250
      %v1253 = vadd.f32 %v1245, %v1250
      %v1254 = vpack.c.bf16 %v1253, %v1252
      %v1255 = vld [vmem:[%s9] sm:$0xf]
      %v1256 = vld [vmem:[%s9 + $0x4] sm:$0xf]
      %v1257 = vld [vmem:[%s9 + $0x8] sm:$0xf]
      %v1258 = vld [vmem:[%s9 + $0xc] sm:$0xf]
      %v1259 = vld [vmem:[%s10] sm:$0x1]
      %v1261 = vlaneseq
      %v1262 = vshrl.u32 %v1261, 7
      %v1263 = vsub.s32 0, %v1262
      %v1264 = vrot.slane %v1259, %v1263
      %v1270 = vunpack.c.l.b16 %v1255
      %v1271 = vunpack.c.l.b16 %v1256
      %v1272 = vunpack.c.l.b16 %v1257
      %v1273 = vunpack.c.l.b16 %v1258
      %v1274 = vpack.c.b16 %v1271, %v1270
      %v1275 = vpack.c.b16 %v1273, %v1272
      %v1279 = vsel %vm490, %v1254, 0
      %1281 = vmatprep.subr.bf16.mxu0 0
      %1282 = vmatpush1.bf16.msra.mxu0 %v1274
      %1283 = vmatprep.subr.bf16.mxu0 0
      %1284 = vmatpush1.bf16.msra.mxu0 %v1275
      %1285 = vmatprep.subr.bf16.mxu0 0
      %1286 = vmatpush1.bf16.msra.mxu0 0
      %1287 = vmatprep.subr.bf16.mxu0 0
      %1288 = vmatpush1.bf16.msra.mxu0 0
      %1289 = vmatprep.subr.bf16.mxu0 0
      %1290 = vmatpush1.bf16.msra.mxu0 0
      %1291 = vmatprep.subr.bf16.mxu0 0
      %1292 = vmatpush1.bf16.msra.mxu0 0
      %1293 = vmatprep.subr.bf16.mxu0 0
      %1294 = vmatpush1.bf16.msra.mxu0 0
      %1295 = vmatprep.subr.bf16.mxu0 0
      %1296 = vmatpush1.bf16.msra.mxu0 0
      %1297 = vmatprep.subr.bf16.mxu0 0
      %1298 = vmatpush1.bf16.msra.mxu0 0
      %1299 = vmatprep.subr.bf16.mxu0 0
      %1300 = vmatpush1.bf16.msra.mxu0 0
      %1301 = vmatprep.subr.bf16.mxu0 0
      %1302 = vmatpush1.bf16.msra.mxu0 0
      %1303 = vmatprep.subr.bf16.mxu0 0
      %1304 = vmatpush1.bf16.msra.mxu0 0
      %1305 = vmatprep.subr.bf16.mxu0 0
      %1306 = vmatpush1.bf16.msra.mxu0 0
      %1307 = vmatprep.subr.bf16.mxu0 0
      %1308 = vmatpush1.bf16.msra.mxu0 0
      %1309 = vmatprep.subr.bf16.mxu0 0
      %1310 = vmatpush1.bf16.msra.mxu0 0
      %1311 = vmatprep.subr.bf16.mxu0 0
      %1312 = vmatpush1.bf16.msra.mxu0 0
      %1313 = vmatprep.mubr.bf16.mxu0 0
      %1314 = vmatmul.mubr.bf16.gmra.mrb[0].mxu0 %v1279
      %v1315 = vpop.f32.mrb[0].mxu0
      %v1316 = vadd.f32 %v1264, %v1315
      %v1317 = vpop.f32.mrb[0].mxu0
      %v1318 = vpop.f32.mrb[0].mxu0
      %v1319 = vadd.f32 %v1264, %v1318
      %v1320 = vpop.f32.mrb[0].mxu0
      %1321 = vdwg.mxu0
      %v1322 = vmul.f32 %v1316, 1.702
      %v1323 = vmul.f32 %v1319, 1.702
      %v1324 = vxor.u32 %v1322, 2147483648
      %v1325 = vxor.u32 %v1323, 2147483648
      %v1326 = vmul.f32 %v1324, 1.442695
      %v1327 = vpow.pop %v1326
      %v1328 = vmul.f32 %v1325, 1.442695
      %v1329 = vpow.pop %v1328
      %v1330 = vadd.f32 %v1327, 1.0
      %v1331 = vadd.f32 %v1329, 1.0
      %v1332 = vrcp.pop %v1330
      %v1333 = vmul.f32 1.0, %v1332
      %v1334 = vrcp.pop %v1331
      %v1335 = vmul.f32 1.0, %v1334
      %v1336 = vmul.f32 %v1316, %v1333
      %v1337 = vmul.f32 %v1319, %v1335
      %v1338 = vpack.c.bf16 %v1337, %v1336
      %v1339 = vld [vmem:[%s11] sm:$0xf]
      %v1340 = vld [vmem:[%s11 + $0x4] sm:$0xf]
      %v1341 = vld [vmem:[%s11 + $0x8] sm:$0xf]
      %v1342 = vld [vmem:[%s11 + $0xc] sm:$0xf]
      %v1343 = vld [vmem:[%s11 + $0x10] sm:$0xf]
      %v1344 = vld [vmem:[%s11 + $0x14] sm:$0xf]
      %v1345 = vld [vmem:[%s11 + $0x18] sm:$0xf]
      %v1346 = vld [vmem:[%s11 + $0x1c] sm:$0xf]
      %v1347 = vld [vmem:[%s11 + $0x20] sm:$0xf]
      %v1348 = vld [vmem:[%s11 + $0x24] sm:$0xf]
      %v1349 = vld [vmem:[%s11 + $0x28] sm:$0xf]
      %v1350 = vld [vmem:[%s11 + $0x2c] sm:$0xf]
      %v1351 = vld [vmem:[%s11 + $0x30] sm:$0xf]
      %v1352 = vld [vmem:[%s11 + $0x34] sm:$0xf]
      %v1353 = vld [vmem:[%s11 + $0x38] sm:$0xf]
      %v1354 = vld [vmem:[%s11 + $0x3c] sm:$0xf]
      %v1371 = vunpack.c.l.b16 %v1339
      %v1372 = vunpack.c.l.b16 %v1340
      %v1373 = vunpack.c.l.b16 %v1341
      %v1374 = vunpack.c.l.b16 %v1342
      %v1375 = vunpack.c.l.b16 %v1343
      %v1376 = vunpack.c.l.b16 %v1344
      %v1377 = vunpack.c.l.b16 %v1345
      %v1378 = vunpack.c.l.b16 %v1346
      %v1379 = vunpack.c.l.b16 %v1347
      %v1380 = vunpack.c.l.b16 %v1348
      %v1381 = vunpack.c.l.b16 %v1349
      %v1382 = vunpack.c.l.b16 %v1350
      %v1383 = vunpack.c.l.b16 %v1351
      %v1384 = vunpack.c.l.b16 %v1352
      %v1385 = vunpack.c.l.b16 %v1353
      %v1386 = vunpack.c.l.b16 %v1354
      %v1387 = vpack.c.b16 %v1372, %v1371
      %v1388 = vpack.c.b16 %v1374, %v1373
      %v1389 = vpack.c.b16 %v1376, %v1375
      %v1390 = vpack.c.b16 %v1378, %v1377
      %v1391 = vpack.c.b16 %v1380, %v1379
      %v1392 = vpack.c.b16 %v1382, %v1381
      %v1393 = vpack.c.b16 %v1384, %v1383
      %v1394 = vpack.c.b16 %v1386, %v1385
      %1403 = vmatprep.subr.bf16.mxu0 0
      %1404 = vmatpush1.bf16.msra.mxu0 %v1387
      %1405 = vmatprep.subr.bf16.mxu0 0
      %1406 = vmatpush1.bf16.msra.mxu0 %v1388
      %1407 = vmatprep.subr.bf16.mxu0 0
      %1408 = vmatpush1.bf16.msra.mxu0 %v1389
      %1409 = vmatprep.subr.bf16.mxu0 0
      %1410 = vmatpush1.bf16.msra.mxu0 %v1390
      %1411 = vmatprep.subr.bf16.mxu0 0
      %1412 = vmatpush1.bf16.msra.mxu0 %v1391
      %1413 = vmatprep.subr.bf16.mxu0 0
      %1414 = vmatpush1.bf16.msra.mxu0 %v1392
      %1415 = vmatprep.subr.bf16.mxu0 0
      %1416 = vmatpush1.bf16.msra.mxu0 %v1393
      %1417 = vmatprep.subr.bf16.mxu0 0
      %1418 = vmatpush1.bf16.msra.mxu0 %v1394
      %1419 = vmatprep.subr.bf16.mxu0 0
      %1420 = vmatpush1.bf16.msra.mxu0 0
      %1421 = vmatprep.subr.bf16.mxu0 0
      %1422 = vmatpush1.bf16.msra.mxu0 0
      %1423 = vmatprep.subr.bf16.mxu0 0
      %1424 = vmatpush1.bf16.msra.mxu0 0
      %1425 = vmatprep.subr.bf16.mxu0 0
      %1426 = vmatpush1.bf16.msra.mxu0 0
      %1427 = vmatprep.subr.bf16.mxu0 0
      %1428 = vmatpush1.bf16.msra.mxu0 0
      %1429 = vmatprep.subr.bf16.mxu0 0
      %1430 = vmatpush1.bf16.msra.mxu0 0
      %1431 = vmatprep.subr.bf16.mxu0 0
      %1432 = vmatpush1.bf16.msra.mxu0 0
      %1433 = vmatprep.subr.bf16.mxu0 0
      %1434 = vmatpush1.bf16.msra.mxu0 0
      %1435 = vmatprep.mubr.bf16.mxu0 0
      %1436 = vmatmul.mubr.bf16.gmra.mrb[0].mxu0 %v1338
      %v1437 = vpop.f32.mrb[0].mxu0
      %v1438 = vadd.f32 0.0, %v1437
      %v1439 = vpop.f32.mrb[0].mxu0
      %v1440 = vpop.f32.mrb[0].mxu0
      %v1441 = vadd.f32 0.0, %v1440
      %v1442 = vpop.f32.mrb[0].mxu0
      %1443 = vdwg.mxu0
      %v1444 = vadd.f32 %v1208, %v1438
      %v1445 = vadd.f32 %v1209, %v1441
      %v1446 = vld [vmem:[%s12] sm:$0x1]
      %v1448 = vlaneseq
      %v1449 = vshrl.u32 %v1448, 7
      %v1450 = vsub.s32 0, %v1449
      %v1451 = vrot.slane %v1446, %v1450
      %v1453 = vadd.f32 %v1444, %v1451
      %v1454 = vadd.f32 %v1445, %v1451
      %v1455 = vpack.c.bf16 %v1454, %v1453
      %v1457 = vunpack.c.l.b16 %v1455
      %v1458 = vunpack.c.h.b16 %v1455
      %v1459 = vpack.c.b16 %v1457, %v1457
      %v1460 = vpack.c.b16 %v1458, %v1458
      %vm1463 = vcmask 257024
      %1464 = vst.msk [vmem:[%s467] sm:$0xf] %vm1463, %v1459
      %vm1465 = vcmask 253952
      %vm1466 = vsmask.f32 256
      %vm1467 = vmand %vm1465, %vm1466
      %v1468 = vld [vmem:[%s467 + $0x4] sm:$0x1]
      %v1469 = vsel %vm1467, %v1460, %v1468
      %1470 = vst [vmem:[%s467 + $0x4] sm:$0x1] %v1469
      %p1471 = scmp.lt.s32.totalorder %s25, 1
      %s1472 = scalar_select %p1471, %s25, 1
      %s1473 = smul.addr %s1472, 2
      %s1474 = smul.addr %s1473, 4
      %s1475 = scalar_lea.vmem %s14, %s1474
      // Predicated region
      $region77: #{vision_transformer_forward.6} parent=75 // pred_check
        %p1476 = pneg %p342
      $region78: #{vision_transformer_forward.6} parent=75 // pred_check_branch
        %1478 = sbr.rel (%p1476) target = $region80
      $region79: #{vision_transformer_forward.6} parent=75 // pred_region
        _
      $region80: #{vision_transformer_forward.6} parent=75 // pred_fallthru
        _
    $region76: #{vision_transformer_forward.6} parent=5 // pred_fallthru
      _
    %p1479 = scmp.le.s32.totalorder 2, %s20
    // Predicated region
    $region81: #{vision_transformer_forward.6} parent=5 // pred_check
      %p1480 = pneg %p1479
    $region82: #{vision_transformer_forward.6} parent=5 // pred_check_branch
      %1482 = sbr.rel (%p1480) target = $region84
    $region83: #{vision_transformer_forward.6} parent=5 // pred_region
      %s1483 = ssub.s32 %s20, 2
      // Predicated region
      $region85: #{vision_transformer_forward.6} parent=83 // pred_check
        %p1484 = pneg %p348
      $region86: #{vision_transformer_forward.6} parent=83 // pred_check_branch
        %1486 = sbr.rel (%p1484) target = $region88
      $region87: #{vision_transformer_forward.6} parent=83 // pred_region
        %p1487 = scmp.lt.s32.totalorder %s26, 1
        %s1488 = scalar_select %p1487, %s26, 1
        %s1489 = smul.addr %s1488, 2
        %s1490 = smul.addr %s1489, 4
        %s1491 = scalar_lea.vmem %s14, %s1490
      $region88: #{vision_transformer_forward.6} parent=83 // pred_fallthru
        _
    $region84: #{vision_transformer_forward.6} parent=5 // pred_fallthru
      _
  $region6: #{vision_transformer_forward.6} parent=0 // loop_footer
    %s24 = sadd.s32 1, %s20
  $region7: #{vision_transformer_forward.6} parent=0 // loop_footer_branch
    %19 = sbr.rel target = $region3
  $region8: #{vision_transformer_forward.6} parent=0 // loop_exit
    _

// kernel: vision_transformer_forward.5
$region0: #{vision_transformer_forward.5}
  #allocation0 [shape = 'u32[]', space=smem, size = 0x4, offset = 0x4, fixed_abs, tag = 'smem constant byte address 0x4 - core index']
  #allocation1 [shape = 'u32[144,128]{1,0:T(1,128)}', space=vmem, size = 0x12000, scoped, tag = 'internal scratch']
  %s0 = inlined_call_operand.vmem [shape: bf16[2,9,32], index: 0, kind: input, shape index: {}]
  %s1 = inlined_call_operand.vmem [shape: f32[1,32], index: 1, kind: input, shape index: {}]
  %s2 = inlined_call_operand.vmem [shape: f32[1,32], index: 2, kind: input, shape index: {}]
  %s3 = inlined_call_operand.vmem [shape: bf16[32,96], index: 3, kind: input, shape index: {}]
  %s4 = inlined_call_operand.vmem [shape: f32[1,96], index: 4, kind: input, shape index: {}]
  %s5 = inlined_call_operand.vmem [shape: bf16[32,32], index: 5, kind: input, shape index: {}]
  %s6 = inlined_call_operand.vmem [shape: f32[1,32], index: 6, kind: input, shape index: {}]
  %s7 = inlined_call_operand.vmem [shape: f32[1,32], index: 7, kind: input, shape index: {}]
  %s8 = inlined_call_operand.vmem [shape: f32[1,32], index: 8, kind: input, shape index: {}]
  %s9 = inlined_call_operand.vmem [shape: bf16[32,128], index: 9, kind: input, shape index: {}]
  %s10 = inlined_call_operand.vmem [shape: f32[1,128], index: 10, kind: input, shape index: {}]
  %s11 = inlined_call_operand.vmem [shape: bf16[128,32], index: 11, kind: input, shape index: {}]
  %s12 = inlined_call_operand.vmem [shape: f32[1,32], index: 12, kind: input, shape index: {}]
  %s13 = inlined_call_operand.vmem [shape: f32[1,32], index: 13, kind: input, shape index: {}]
  %s14 = inlined_call_operand.vmem [shape: f32[1,32], index: 14, kind: input, shape index: {}]
  %s15 = inlined_call_operand.vmem [shape: bf16[2,9,32], index: 15, kind: output, shape index: {}]
  %s16 = sld [smem:[#allocation0]]
  $region93: #{vision_transformer_forward.5} parent=0
    _
  %s18 = ssub.s32 1, %s16
  %s19 = scalar_select 0, %s18, %s16
  loop: start=0, step=1, limit=4
  $region2: #{vision_transformer_forward.5} parent=0 // loop_pre_header
    _
  $region3: #{vision_transformer_forward.5} parent=0 // loop_header
    %s21 = sphi 0, %s25
    %p22 = scmp.ge.s32.totalorder %s21, 4
    %s31 = sphi 0, %s33
    %s34 = sphi 0, %s31
    %s35 = sphi 0, %s34
    %s51 = sphi 0, %s35
    %s55 = sphi 0, %s55
    %s57 = sphi 0, %s55
    %s58 = sphi 0, %s57
    %s72 = sphi 0, %s58
    %s76 = sphi 0, %s76
    %s78 = sphi 0, %s76
    %s79 = sphi 0, %s78
    %s93 = sphi 0, %s79
    %s97 = sphi 0, %s97
    %s99 = sphi 0, %s97
    %s100 = sphi 0, %s99
    %s114 = sphi 0, %s100
    %s118 = sphi 0, %s118
    %s120 = sphi 0, %s118
    %s121 = sphi 0, %s120
    %s135 = sphi 0, %s121
    %s139 = sphi 0, %s139
    %s141 = sphi 0, %s139
    %s142 = sphi 0, %s141
    %s156 = sphi 0, %s142
    %s160 = sphi 0, %s160
    %s162 = sphi 0, %s160
    %s163 = sphi 0, %s162
    %s177 = sphi 0, %s163
    %s181 = sphi 0, %s181
    %s183 = sphi 0, %s181
    %s184 = sphi 0, %s183
    %s198 = sphi 0, %s184
    %s202 = sphi 0, %s202
    %s204 = sphi 0, %s202
    %s205 = sphi 0, %s204
    %s219 = sphi 0, %s205
    %s223 = sphi 0, %s223
    %s225 = sphi 0, %s223
    %s226 = sphi 0, %s225
    %s240 = sphi 0, %s226
    %s244 = sphi 0, %s244
    %s246 = sphi 0, %s244
    %s247 = sphi 0, %s246
    %s261 = sphi 0, %s247
    %s265 = sphi 0, %s265
    %s267 = sphi 0, %s265
    %s268 = sphi 0, %s267
    %s282 = sphi 0, %s268
    %s286 = sphi 0, %s286
    %s288 = sphi 0, %s286
    %s289 = sphi 0, %s288
    %s303 = sphi 0, %s289
    %s307 = sphi 0, %s307
    %s309 = sphi 0, %s307
    %s310 = sphi 0, %s309
    %s324 = sphi 0, %s310
    %s328 = sphi 0, %s328
    %s330 = sphi 0, %s328
    %s331 = sphi 0, %s330
    %s345 = sphi 0, %s331
    %s351 = sphi 0, %s353
    %s354 = sphi 0, %s351
    %s355 = sphi 0, %s354
    %s371 = sphi 0, %s355
  $region4: #{vision_transformer_forward.5} parent=0 // loop_header_branch
    %24 = sbr.rel (%p22) target = $region8
  $region5: #{vision_transformer_forward.5} parent=0 // loop_body
    %s26 = ssub.s32 %s21, 1
    %s27 = ssub.s32 %s21, 2
    %s28 = sadd.s32 %s21, 1
    %s29 = ssub.s32 %s21, %s28
    %p30 = scmp.eq.s32.totalorder %s29, 0
    %s32 = sadd.s32 %s31, 1
    %s33 = scalar_select %p30, %s31, %s32
    %p36 = pneg %p30
    %p37 = scmp.eq.s32.totalorder %s21, 1
    %p38 = por %p36, %p37
    %p39 = scmp.ne.s32.totalorder %s31, %s34
    %p40 = scmp.eq.s32.totalorder %s21, 0
    %p41 = por %p39, %p40
    %p42 = scmp.ne.s32.totalorder %s31, %s34
    %p43 = scmp.eq.s32.totalorder %s26, 1
    %p44 = por %p42, %p43
    %p45 = scmp.ne.s32.totalorder %s34, %s35
    %p46 = scmp.eq.s32.totalorder %s26, 0
    %p47 = por %p45, %p46
    %p48 = scmp.ne.s32.totalorder %s34, %s35
    %p49 = scmp.eq.s32.totalorder %s27, 1
    %p50 = por %p48, %p49
    %p52 = scmp.ne.s32.totalorder %s35, %s51
    %p53 = scmp.eq.s32.totalorder %s27, 0
    %p54 = por %p52, %p53
    %s56 = sadd.s32 %s55, 1
    %p59 = scmp.eq.s32.totalorder %s21, 1
    %p60 = scmp.ne.s32.totalorder %s55, %s57
    %p61 = scmp.eq.s32.totalorder %s21, 0
    %p62 = por %p60, %p61
    %p63 = scmp.ne.s32.totalorder %s55, %s57
    %p64 = scmp.eq.s32.totalorder %s26, 1
    %p65 = por %p63, %p64
    %p66 = scmp.ne.s32.totalorder %s57, %s58
    %p67 = scmp.eq.s32.totalorder %s26, 0
    %p68 = por %p66, %p67
    %p69 = scmp.ne.s32.totalorder %s57, %s58
    %p70 = scmp.eq.s32.totalorder %s27, 1
    %p71 = por %p69, %p70
    %p73 = scmp.ne.s32.totalorder %s58, %s72
    %p74 = scmp.eq.s32.totalorder %s27, 0
    %p75 = por %p73, %p74
    %s77 = sadd.s32 %s76, 1
    %p80 = scmp.eq.s32.totalorder %s21, 1
    %p81 = scmp.ne.s32.totalorder %s76, %s78
    %p82 = scmp.eq.s32.totalorder %s21, 0
    %p83 = por %p81, %p82
    %p84 = scmp.ne.s32.totalorder %s76, %s78
    %p85 = scmp.eq.s32.totalorder %s26, 1
    %p86 = por %p84, %p85
    %p87 = scmp.ne.s32.totalorder %s78, %s79
    %p88 = scmp.eq.s32.totalorder %s26, 0
    %p89 = por %p87, %p88
    %p90 = scmp.ne.s32.totalorder %s78, %s79
    %p91 = scmp.eq.s32.totalorder %s27, 1
    %p92 = por %p90, %p91
    %p94 = scmp.ne.s32.totalorder %s79, %s93
    %p95 = scmp.eq.s32.totalorder %s27, 0
    %p96 = por %p94, %p95
    %s98 = sadd.s32 %s97, 1
    %p101 = scmp.eq.s32.totalorder %s21, 1
    %p102 = scmp.ne.s32.totalorder %s97, %s99
    %p103 = scmp.eq.s32.totalorder %s21, 0
    %p104 = por %p102, %p103
    %p105 = scmp.ne.s32.totalorder %s97, %s99
    %p106 = scmp.eq.s32.totalorder %s26, 1
    %p107 = por %p105, %p106
    %p108 = scmp.ne.s32.totalorder %s99, %s100
    %p109 = scmp.eq.s32.totalorder %s26, 0
    %p110 = por %p108, %p109
    %p111 = scmp.ne.s32.totalorder %s99, %s100
    %p112 = scmp.eq.s32.totalorder %s27, 1
    %p113 = por %p111, %p112
    %p115 = scmp.ne.s32.totalorder %s100, %s114
    %p116 = scmp.eq.s32.totalorder %s27, 0
    %p117 = por %p115, %p116
    %s119 = sadd.s32 %s118, 1
    %p122 = scmp.eq.s32.totalorder %s21, 1
    %p123 = scmp.ne.s32.totalorder %s118, %s120
    %p124 = scmp.eq.s32.totalorder %s21, 0
    %p125 = por %p123, %p124
    %p126 = scmp.ne.s32.totalorder %s118, %s120
    %p127 = scmp.eq.s32.totalorder %s26, 1
    %p128 = por %p126, %p127
    %p129 = scmp.ne.s32.totalorder %s120, %s121
    %p130 = scmp.eq.s32.totalorder %s26, 0
    %p131 = por %p129, %p130
    %p132 = scmp.ne.s32.totalorder %s120, %s121
    %p133 = scmp.eq.s32.totalorder %s27, 1
    %p134 = por %p132, %p133
    %p136 = scmp.ne.s32.totalorder %s121, %s135
    %p137 = scmp.eq.s32.totalorder %s27, 0
    %p138 = por %p136, %p137
    %s140 = sadd.s32 %s139, 1
    %p143 = scmp.eq.s32.totalorder %s21, 1
    %p144 = scmp.ne.s32.totalorder %s139, %s141
    %p145 = scmp.eq.s32.totalorder %s21, 0
    %p146 = por %p144, %p145
    %p147 = scmp.ne.s32.totalorder %s139, %s141
    %p148 = scmp.eq.s32.totalorder %s26, 1
    %p149 = por %p147, %p148
    %p150 = scmp.ne.s32.totalorder %s141, %s142
    %p151 = scmp.eq.s32.totalorder %s26, 0
    %p152 = por %p150, %p151
    %p153 = scmp.ne.s32.totalorder %s141, %s142
    %p154 = scmp.eq.s32.totalorder %s27, 1
    %p155 = por %p153, %p154
    %p157 = scmp.ne.s32.totalorder %s142, %s156
    %p158 = scmp.eq.s32.totalorder %s27, 0
    %p159 = por %p157, %p158
    %s161 = sadd.s32 %s160, 1
    %p164 = scmp.eq.s32.totalorder %s21, 1
    %p165 = scmp.ne.s32.totalorder %s160, %s162
    %p166 = scmp.eq.s32.totalorder %s21, 0
    %p167 = por %p165, %p166
    %p168 = scmp.ne.s32.totalorder %s160, %s162
    %p169 = scmp.eq.s32.totalorder %s26, 1
    %p170 = por %p168, %p169
    %p171 = scmp.ne.s32.totalorder %s162, %s163
    %p172 = scmp.eq.s32.totalorder %s26, 0
    %p173 = por %p171, %p172
    %p174 = scmp.ne.s32.totalorder %s162, %s163
    %p175 = scmp.eq.s32.totalorder %s27, 1
    %p176 = por %p174, %p175
    %p178 = scmp.ne.s32.totalorder %s163, %s177
    %p179 = scmp.eq.s32.totalorder %s27, 0
    %p180 = por %p178, %p179
    %s182 = sadd.s32 %s181, 1
    %p185 = scmp.eq.s32.totalorder %s21, 1
    %p186 = scmp.ne.s32.totalorder %s181, %s183
    %p187 = scmp.eq.s32.totalorder %s21, 0
    %p188 = por %p186, %p187
    %p189 = scmp.ne.s32.totalorder %s181, %s183
    %p190 = scmp.eq.s32.totalorder %s26, 1
    %p191 = por %p189, %p190
    %p192 = scmp.ne.s32.totalorder %s183, %s184
    %p193 = scmp.eq.s32.totalorder %s26, 0
    %p194 = por %p192, %p193
    %p195 = scmp.ne.s32.totalorder %s183, %s184
    %p196 = scmp.eq.s32.totalorder %s27, 1
    %p197 = por %p195, %p196
    %p199 = scmp.ne.s32.totalorder %s184, %s198
    %p200 = scmp.eq.s32.totalorder %s27, 0
    %p201 = por %p199, %p200
    %s203 = sadd.s32 %s202, 1
    %p206 = scmp.eq.s32.totalorder %s21, 1
    %p207 = scmp.ne.s32.totalorder %s202, %s204
    %p208 = scmp.eq.s32.totalorder %s21, 0
    %p209 = por %p207, %p208
    %p210 = scmp.ne.s32.totalorder %s202, %s204
    %p211 = scmp.eq.s32.totalorder %s26, 1
    %p212 = por %p210, %p211
    %p213 = scmp.ne.s32.totalorder %s204, %s205
    %p214 = scmp.eq.s32.totalorder %s26, 0
    %p215 = por %p213, %p214
    %p216 = scmp.ne.s32.totalorder %s204, %s205
    %p217 = scmp.eq.s32.totalorder %s27, 1
    %p218 = por %p216, %p217
    %p220 = scmp.ne.s32.totalorder %s205, %s219
    %p221 = scmp.eq.s32.totalorder %s27, 0
    %p222 = por %p220, %p221
    %s224 = sadd.s32 %s223, 1
    %p227 = scmp.eq.s32.totalorder %s21, 1
    %p228 = scmp.ne.s32.totalorder %s223, %s225
    %p229 = scmp.eq.s32.totalorder %s21, 0
    %p230 = por %p228, %p229
    %p231 = scmp.ne.s32.totalorder %s223, %s225
    %p232 = scmp.eq.s32.totalorder %s26, 1
    %p233 = por %p231, %p232
    %p234 = scmp.ne.s32.totalorder %s225, %s226
    %p235 = scmp.eq.s32.totalorder %s26, 0
    %p236 = por %p234, %p235
    %p237 = scmp.ne.s32.totalorder %s225, %s226
    %p238 = scmp.eq.s32.totalorder %s27, 1
    %p239 = por %p237, %p238
    %p241 = scmp.ne.s32.totalorder %s226, %s240
    %p242 = scmp.eq.s32.totalorder %s27, 0
    %p243 = por %p241, %p242
    %s245 = sadd.s32 %s244, 1
    %p248 = scmp.eq.s32.totalorder %s21, 1
    %p249 = scmp.ne.s32.totalorder %s244, %s246
    %p250 = scmp.eq.s32.totalorder %s21, 0
    %p251 = por %p249, %p250
    %p252 = scmp.ne.s32.totalorder %s244, %s246
    %p253 = scmp.eq.s32.totalorder %s26, 1
    %p254 = por %p252, %p253
    %p255 = scmp.ne.s32.totalorder %s246, %s247
    %p256 = scmp.eq.s32.totalorder %s26, 0
    %p257 = por %p255, %p256
    %p258 = scmp.ne.s32.totalorder %s246, %s247
    %p259 = scmp.eq.s32.totalorder %s27, 1
    %p260 = por %p258, %p259
    %p262 = scmp.ne.s32.totalorder %s247, %s261
    %p263 = scmp.eq.s32.totalorder %s27, 0
    %p264 = por %p262, %p263
    %s266 = sadd.s32 %s265, 1
    %p269 = scmp.eq.s32.totalorder %s21, 1
    %p270 = scmp.ne.s32.totalorder %s265, %s267
    %p271 = scmp.eq.s32.totalorder %s21, 0
    %p272 = por %p270, %p271
    %p273 = scmp.ne.s32.totalorder %s265, %s267
    %p274 = scmp.eq.s32.totalorder %s26, 1
    %p275 = por %p273, %p274
    %p276 = scmp.ne.s32.totalorder %s267, %s268
    %p277 = scmp.eq.s32.totalorder %s26, 0
    %p278 = por %p276, %p277
    %p279 = scmp.ne.s32.totalorder %s267, %s268
    %p280 = scmp.eq.s32.totalorder %s27, 1
    %p281 = por %p279, %p280
    %p283 = scmp.ne.s32.totalorder %s268, %s282
    %p284 = scmp.eq.s32.totalorder %s27, 0
    %p285 = por %p283, %p284
    %s287 = sadd.s32 %s286, 1
    %p290 = scmp.eq.s32.totalorder %s21, 1
    %p291 = scmp.ne.s32.totalorder %s286, %s288
    %p292 = scmp.eq.s32.totalorder %s21, 0
    %p293 = por %p291, %p292
    %p294 = scmp.ne.s32.totalorder %s286, %s288
    %p295 = scmp.eq.s32.totalorder %s26, 1
    %p296 = por %p294, %p295
    %p297 = scmp.ne.s32.totalorder %s288, %s289
    %p298 = scmp.eq.s32.totalorder %s26, 0
    %p299 = por %p297, %p298
    %p300 = scmp.ne.s32.totalorder %s288, %s289
    %p301 = scmp.eq.s32.totalorder %s27, 1
    %p302 = por %p300, %p301
    %p304 = scmp.ne.s32.totalorder %s289, %s303
    %p305 = scmp.eq.s32.totalorder %s27, 0
    %p306 = por %p304, %p305
    %s308 = sadd.s32 %s307, 1
    %p311 = scmp.eq.s32.totalorder %s21, 1
    %p312 = scmp.ne.s32.totalorder %s307, %s309
    %p313 = scmp.eq.s32.totalorder %s21, 0
    %p314 = por %p312, %p313
    %p315 = scmp.ne.s32.totalorder %s307, %s309
    %p316 = scmp.eq.s32.totalorder %s26, 1
    %p317 = por %p315, %p316
    %p318 = scmp.ne.s32.totalorder %s309, %s310
    %p319 = scmp.eq.s32.totalorder %s26, 0
    %p320 = por %p318, %p319
    %p321 = scmp.ne.s32.totalorder %s309, %s310
    %p322 = scmp.eq.s32.totalorder %s27, 1
    %p323 = por %p321, %p322
    %p325 = scmp.ne.s32.totalorder %s310, %s324
    %p326 = scmp.eq.s32.totalorder %s27, 0
    %p327 = por %p325, %p326
    %s329 = sadd.s32 %s328, 1
    %p332 = scmp.eq.s32.totalorder %s21, 1
    %p333 = scmp.ne.s32.totalorder %s328, %s330
    %p334 = scmp.eq.s32.totalorder %s21, 0
    %p335 = por %p333, %p334
    %p336 = scmp.ne.s32.totalorder %s328, %s330
    %p337 = scmp.eq.s32.totalorder %s26, 1
    %p338 = por %p336, %p337
    %p339 = scmp.ne.s32.totalorder %s330, %s331
    %p340 = scmp.eq.s32.totalorder %s26, 0
    %p341 = por %p339, %p340
    %p342 = scmp.ne.s32.totalorder %s330, %s331
    %p343 = scmp.eq.s32.totalorder %s27, 1
    %p344 = por %p342, %p343
    %p346 = scmp.ne.s32.totalorder %s331, %s345
    %p347 = scmp.eq.s32.totalorder %s27, 0
    %p348 = por %p346, %p347
    %s349 = ssub.s32 %s21, %s28
    %p350 = scmp.eq.s32.totalorder %s349, 0
    %s352 = sadd.s32 %s351, 1
    %s353 = scalar_select %p350, %s351, %s352
    %p356 = pneg %p350
    %p357 = scmp.eq.s32.totalorder %s21, 1
    %p358 = por %p356, %p357
    %p359 = scmp.ne.s32.totalorder %s351, %s354
    %p360 = scmp.eq.s32.totalorder %s21, 0
    %p361 = por %p359, %p360
    %p362 = scmp.ne.s32.totalorder %s351, %s354
    %p363 = scmp.eq.s32.totalorder %s26, 1
    %p364 = por %p362, %p363
    %p365 = scmp.ne.s32.totalorder %s354, %s355
    %p366 = scmp.eq.s32.totalorder %s26, 0
    %p367 = por %p365, %p366
    %p368 = scmp.ne.s32.totalorder %s354, %s355
    %p369 = scmp.eq.s32.totalorder %s27, 1
    %p370 = por %p368, %p369
    %p372 = scmp.ne.s32.totalorder %s355, %s371
    %p373 = scmp.eq.s32.totalorder %s27, 0
    %p374 = por %p372, %p373
    %p375 = scmp.le.s32.totalorder 1, %s21
    %p376 = scmp.lt.s32.totalorder %s21, 3
    %p377 = pnand %p375, %p376
    %p378 = pneg %p377
    // Predicated region
    $region9: #{vision_transformer_forward.5} parent=5 // pred_check
      _
    $region10: #{vision_transformer_forward.5} parent=5 // pred_check_branch
      %380 = sbr.rel (%p377) target = $region12
    $region11: #{vision_transformer_forward.5} parent=5 // pred_region
      %s381 = ssub.s32 %s21, 1
      // Predicated region
      $region13: #{vision_transformer_forward.5} parent=11 // pred_check
        %p382 = pneg %p68
      $region14: #{vision_transformer_forward.5} parent=11 // pred_check_branch
        %384 = sbr.rel (%p382) target = $region16
      $region15: #{vision_transformer_forward.5} parent=11 // pred_region
        _
      $region16: #{vision_transformer_forward.5} parent=11 // pred_fallthru
        _
      // Predicated region
      $region17: #{vision_transformer_forward.5} parent=11 // pred_check
        %p385 = pneg %p89
      $region18: #{vision_transformer_forward.5} parent=11 // pred_check_branch
        %387 = sbr.rel (%p385) target = $region20
      $region19: #{vision_transformer_forward.5} parent=11 // pred_region
        _
      $region20: #{vision_transformer_forward.5} parent=11 // pred_fallthru
        _
      // Predicated region
      $region21: #{vision_transformer_forward.5} parent=11 // pred_check
        %p388 = pneg %p110
      $region22: #{vision_transformer_forward.5} parent=11 // pred_check_branch
        %390 = sbr.rel (%p388) target = $region24
      $region23: #{vision_transformer_forward.5} parent=11 // pred_region
        _
      $region24: #{vision_transformer_forward.5} parent=11 // pred_fallthru
        _
      // Predicated region
      $region25: #{vision_transformer_forward.5} parent=11 // pred_check
        %p391 = pneg %p131
      $region26: #{vision_transformer_forward.5} parent=11 // pred_check_branch
        %393 = sbr.rel (%p391) target = $region28
      $region27: #{vision_transformer_forward.5} parent=11 // pred_region
        _
      $region28: #{vision_transformer_forward.5} parent=11 // pred_fallthru
        _
      // Predicated region
      $region29: #{vision_transformer_forward.5} parent=11 // pred_check
        %p394 = pneg %p152
      $region30: #{vision_transformer_forward.5} parent=11 // pred_check_branch
        %396 = sbr.rel (%p394) target = $region32
      $region31: #{vision_transformer_forward.5} parent=11 // pred_region
        _
      $region32: #{vision_transformer_forward.5} parent=11 // pred_fallthru
        _
      // Predicated region
      $region33: #{vision_transformer_forward.5} parent=11 // pred_check
        %p397 = pneg %p173
      $region34: #{vision_transformer_forward.5} parent=11 // pred_check_branch
        %399 = sbr.rel (%p397) target = $region36
      $region35: #{vision_transformer_forward.5} parent=11 // pred_region
        _
      $region36: #{vision_transformer_forward.5} parent=11 // pred_fallthru
        _
      // Predicated region
      $region37: #{vision_transformer_forward.5} parent=11 // pred_check
        %p400 = pneg %p194
      $region38: #{vision_transformer_forward.5} parent=11 // pred_check_branch
        %402 = sbr.rel (%p400) target = $region40
      $region39: #{vision_transformer_forward.5} parent=11 // pred_region
        _
      $region40: #{vision_transformer_forward.5} parent=11 // pred_fallthru
        _
      // Predicated region
      $region41: #{vision_transformer_forward.5} parent=11 // pred_check
        %p403 = pneg %p215
      $region42: #{vision_transformer_forward.5} parent=11 // pred_check_branch
        %405 = sbr.rel (%p403) target = $region44
      $region43: #{vision_transformer_forward.5} parent=11 // pred_region
        _
      $region44: #{vision_transformer_forward.5} parent=11 // pred_fallthru
        _
      // Predicated region
      $region45: #{vision_transformer_forward.5} parent=11 // pred_check
        %p406 = pneg %p236
      $region46: #{vision_transformer_forward.5} parent=11 // pred_check_branch
        %408 = sbr.rel (%p406) target = $region48
      $region47: #{vision_transformer_forward.5} parent=11 // pred_region
        _
      $region48: #{vision_transformer_forward.5} parent=11 // pred_fallthru
        _
      // Predicated region
      $region49: #{vision_transformer_forward.5} parent=11 // pred_check
        %p409 = pneg %p257
      $region50: #{vision_transformer_forward.5} parent=11 // pred_check_branch
        %411 = sbr.rel (%p409) target = $region52
      $region51: #{vision_transformer_forward.5} parent=11 // pred_region
        _
      $region52: #{vision_transformer_forward.5} parent=11 // pred_fallthru
        _
      // Predicated region
      $region53: #{vision_transformer_forward.5} parent=11 // pred_check
        %p412 = pneg %p278
      $region54: #{vision_transformer_forward.5} parent=11 // pred_check_branch
        %414 = sbr.rel (%p412) target = $region56
      $region55: #{vision_transformer_forward.5} parent=11 // pred_region
        _
      $region56: #{vision_transformer_forward.5} parent=11 // pred_fallthru
        _
      // Predicated region
      $region57: #{vision_transformer_forward.5} parent=11 // pred_check
        %p415 = pneg %p299
      $region58: #{vision_transformer_forward.5} parent=11 // pred_check_branch
        %417 = sbr.rel (%p415) target = $region60
      $region59: #{vision_transformer_forward.5} parent=11 // pred_region
        _
      $region60: #{vision_transformer_forward.5} parent=11 // pred_fallthru
        _
      // Predicated region
      $region61: #{vision_transformer_forward.5} parent=11 // pred_check
        %p418 = pneg %p320
      $region62: #{vision_transformer_forward.5} parent=11 // pred_check_branch
        %420 = sbr.rel (%p418) target = $region64
      $region63: #{vision_transformer_forward.5} parent=11 // pred_region
        _
      $region64: #{vision_transformer_forward.5} parent=11 // pred_fallthru
        _
      // Predicated region
      $region65: #{vision_transformer_forward.5} parent=11 // pred_check
        %p421 = pneg %p341
      $region66: #{vision_transformer_forward.5} parent=11 // pred_check_branch
        %423 = sbr.rel (%p421) target = $region68
      $region67: #{vision_transformer_forward.5} parent=11 // pred_region
        _
      $region68: #{vision_transformer_forward.5} parent=11 // pred_fallthru
        _
    $region12: #{vision_transformer_forward.5} parent=5 // pred_fallthru
      _
    %p424 = scmp.lt.s32.totalorder %s21, 2
    // Predicated region
    $region69: #{vision_transformer_forward.5} parent=5 // pred_check
      %p425 = pneg %p424
    $region70: #{vision_transformer_forward.5} parent=5 // pred_check_branch
      %427 = sbr.rel (%p425) target = $region72
    $region71: #{vision_transformer_forward.5} parent=5 // pred_region
      // Predicated region
      $region73: #{vision_transformer_forward.5} parent=71 // pred_check
        %p428 = pneg %p41
      $region74: #{vision_transformer_forward.5} parent=71 // pred_check_branch
        %430 = sbr.rel (%p428) target = $region76
      $region75: #{vision_transformer_forward.5} parent=71 // pred_region
        %p431 = scmp.lt.s32.totalorder %s21, 1
        %s432 = scalar_select %p431, %s21, 1
        %s433 = smul.addr %s432, 2
        %s434 = smul.addr %s433, 4
        %s435 = scalar_lea.vmem %s0, %s434
      $region76: #{vision_transformer_forward.5} parent=71 // pred_fallthru
        _
    $region72: #{vision_transformer_forward.5} parent=5 // pred_fallthru
      _
    %p436 = scmp.le.s32.totalorder 1, %s21
    %p437 = scmp.lt.s32.totalorder %s21, 3
    %p438 = pnand %p436, %p437
    %p439 = pneg %p438
    // Predicated region
    $region77: #{vision_transformer_forward.5} parent=5 // pred_check
      _
    $region78: #{vision_transformer_forward.5} parent=5 // pred_check_branch
      %441 = sbr.rel (%p438) target = $region80
    $region79: #{vision_transformer_forward.5} parent=5 // pred_region
      %s442 = ssub.s32 %s21, 1
      %p443 = scmp.lt.s32.totalorder %s26, 1
      %s444 = scalar_select %p443, %s26, 1
      %s445 = smul.addr %s444, 2
      %s446 = smul.addr %s445, 4
      %s447 = scalar_lea.vmem %s0, %s446
      %p448 = pneg %p47
      %p449 = pneg %p44
      %p450 = pneg %p68
      %p451 = pneg %p65
      %p452 = pneg %p89
      %p453 = pneg %p86
      %p454 = pneg %p110
      %p455 = pneg %p107
      %p456 = pneg %p131
      %p457 = pneg %p128
      %p458 = pneg %p152
      %p459 = pneg %p149
      %p460 = pneg %p173
      %p461 = pneg %p170
      %p462 = pneg %p194
      %p463 = pneg %p191
      %p464 = pneg %p215
      %p465 = pneg %p212
      %p466 = pneg %p236
      %p467 = pneg %p233
      %p468 = pneg %p257
      %p469 = pneg %p254
      %p470 = pneg %p278
      %p471 = pneg %p275
      %p472 = pneg %p299
      %p473 = pneg %p296
      %p474 = pneg %p320
      %p475 = pneg %p317
      %p476 = pneg %p341
      %p477 = pneg %p338
      %p478 = pneg %p367
      %p479 = pneg %p364
      %p480 = scmp.lt.s32.totalorder %s26, 1
      %s481 = scalar_select %p480, %s26, 1
      %s482 = smul.addr %s481, 2
      %s483 = smul.addr %s482, 4
      %s484 = scalar_lea.vmem %s15, %s483
      %p485 = scmp.lt.s32.totalorder %s26, 1
      %s486 = scalar_select %p485, %s26, 1
      %s487 = smul.addr %s486, 2
      %s488 = smul.addr %s487, 4
      %s489 = scalar_lea.vmem %s0, %s488
      %p490 = scmp.lt.s32.totalorder %s26, 1
      %s491 = scalar_select %p490, %s26, 1
      %s492 = smul.addr %s491, 2
      %s493 = smul.addr %s492, 4
      %s494 = scalar_lea.vmem %s15, %s493
      %v496 = vld [vmem:[%s489] sm:$0xf]
      %v497 = vld [vmem:[%s489 + $0x4] sm:$0x1]
      %v498 = vunpack.c.l.bf16 %v496
      %v499 = vunpack.c.l.bf16 %v497
      %v500 = vld [vmem:[%s13] sm:$0x1]
      %v501 = vld [vmem:[%s14] sm:$0x1]
      %vm502 = vcmask 261120
      %v503 = vsel %vm502, %v498, 0.0
      %504 = vadd.xlane.f32.xlu0 %v503
      %v505 = vpop.xlane.xlu0 %504
      %vm506 = vcmask 253952
      %v507 = vsel %vm506, %v499, 0.0
      %508 = vadd.xlane.f32.xlu0 %v507
      %v509 = vpop.xlane.xlu0 %508
      %v510 = vrcp.pop 32.0
      %v511 = vmul.f32 %v505, %v510
      %v512 = vmul.f32 %v509, %v510
      %v513 = vsub.f32 %v498, %v511
      %v514 = vsub.f32 %v499, %v512
      %v515 = vmul.f32 %v513, %v513
      %v516 = vmul.f32 %v514, %v514
      %v517 = vsel %vm502, %v515, 0.0
      %518 = vadd.xlane.f32.xlu0 %v517
      %v519 = vpop.xlane.xlu0 %518
      %v520 = vsel %vm506, %v516, 0.0
      %521 = vadd.xlane.f32.xlu0 %v520
      %v522 = vpop.xlane.xlu0 %521
      %v523 = vmul.f32 %v519, %v510
      %v524 = vmul.f32 %v522, %v510
      %v525 = vadd.f32 %v523, 1e-05
      %v526 = vadd.f32 %v524, 1e-05
      %v527 = vrsqrt.pop %v525
      %v528 = vrsqrt.pop %v526
      %v529 = vmul.f32 %v513, %v527
      %v530 = vmul.f32 %v514, %v528
      %v532 = vlaneseq
      %v533 = vshrl.u32 %v532, 7
      %v534 = vsub.s32 0, %v533
      %v535 = vrot.slane %v500, %v534
      %v537 = vmul.f32 %v529, %v535
      %v538 = vmul.f32 %v530, %v535
      %v540 = vlaneseq
      %v541 = vshrl.u32 %v540, 7
      %v542 = vsub.s32 0, %v541
      %v543 = vrot.slane %v501, %v542
      %v545 = vadd.f32 %v537, %v543
      %v546 = vadd.f32 %v538, %v543
      %v547 = vld [vmem:[%s1] sm:$0x1]
      %v548 = vld [vmem:[%s2] sm:$0x1]
      %v549 = vsel %vm502, %v545, 0.0
      %550 = vadd.xlane.f32.xlu0 %v549
      %v551 = vpop.xlane.xlu0 %550
      %v552 = vsel %vm506, %v546, 0.0
      %553 = vadd.xlane.f32.xlu0 %v552
      %v554 = vpop.xlane.xlu0 %553
      %v555 = vmul.f32 %v551, %v510
      %v556 = vmul.f32 %v554, %v510
      %v557 = vsub.f32 %v545, %v555
      %v558 = vsub.f32 %v546, %v556
      %v559 = vmul.f32 %v557, %v557
      %v560 = vmul.f32 %v558, %v558
      %v561 = vsel %vm502, %v559, 0.0
      %562 = vadd.xlane.f32.xlu0 %v561
      %v563 = vpop.xlane.xlu0 %562
      %v564 = vsel %vm506, %v560, 0.0
      %565 = vadd.xlane.f32.xlu0 %v564
      %v566 = vpop.xlane.xlu0 %565
      %v567 = vmul.f32 %v563, %v510
      %v568 = vmul.f32 %v566, %v510
      %v569 = vadd.f32 %v567, 1e-05
      %v570 = vadd.f32 %v568, 1e-05
      %v571 = vrsqrt.pop %v569
      %v572 = vrsqrt.pop %v570
      %v573 = vmul.f32 %v557, %v571
      %v574 = vmul.f32 %v558, %v572
      %v576 = vlaneseq
      %v577 = vshrl.u32 %v576, 7
      %v578 = vsub.s32 0, %v577
      %v579 = vrot.slane %v547, %v578
      %v581 = vmul.f32 %v573, %v579
      %v582 = vmul.f32 %v574, %v579
      %v584 = vlaneseq
      %v585 = vshrl.u32 %v584, 7
      %v586 = vsub.s32 0, %v585
      %v587 = vrot.slane %v548, %v586
      %v589 = vadd.f32 %v581, %v587
      %v590 = vadd.f32 %v582, %v587
      %v591 = vpack.c.bf16 %v590, %v589
      %v592 = vld [vmem:[%s3] sm:$0xf]
      %v593 = vld [vmem:[%s3 + $0x4] sm:$0xf]
      %v594 = vld [vmem:[%s3 + $0x8] sm:$0xf]
      %v595 = vld [vmem:[%s3 + $0xc] sm:$0xf]
      %v596 = vld [vmem:[%s4] sm:$0x1]
      %v598 = vlaneseq
      %v599 = vshrl.u32 %v598, 7
      %v600 = vsub.s32 0, %v599
      %v601 = vrot.slane %v596, %v600
      %v607 = vunpack.c.l.b16 %v592
      %v608 = vunpack.c.l.b16 %v593
      %v609 = vunpack.c.l.b16 %v594
      %v610 = vunpack.c.l.b16 %v595
      %v611 = vpack.c.b16 %v608, %v607
      %v612 = vpack.c.b16 %v610, %v609
      %v616 = vsel %vm502, %v591, 0
      %618 = vmatprep.subr.bf16.mxu0 0
      %619 = vmatpush1.bf16.msra.mxu0 %v611
      %620 = vmatprep.subr.bf16.mxu0 0
      %621 = vmatpush1.bf16.msra.mxu0 %v612
      %622 = vmatprep.subr.bf16.mxu0 0
      %623 = vmatpush1.bf16.msra.mxu0 0
      %624 = vmatprep.subr.bf16.mxu0 0
      %625 = vmatpush1.bf16.msra.mxu0 0
      %626 = vmatprep.subr.bf16.mxu0 0
      %627 = vmatpush1.bf16.msra.mxu0 0
      %628 = vmatprep.subr.bf16.mxu0 0
      %629 = vmatpush1.bf16.msra.mxu0 0
      %630 = vmatprep.subr.bf16.mxu0 0
      %631 = vmatpush1.bf16.msra.mxu0 0
      %632 = vmatprep.subr.bf16.mxu0 0
      %633 = vmatpush1.bf16.msra.mxu0 0
      %634 = vmatprep.subr.bf16.mxu0 0
      %635 = vmatpush1.bf16.msra.mxu0 0
      %636 = vmatprep.subr.bf16.mxu0 0
      %637 = vmatpush1.bf16.msra.mxu0 0
      %638 = vmatprep.subr.bf16.mxu0 0
      %639 = vmatpush1.bf16.msra.mxu0 0
      %640 = vmatprep.subr.bf16.mxu0 0
      %641 = vmatpush1.bf16.msra.mxu0 0
      %642 = vmatprep.subr.bf16.mxu0 0
      %643 = vmatpush1.bf16.msra.mxu0 0
      %644 = vmatprep.subr.bf16.mxu0 0
      %645 = vmatpush1.bf16.msra.mxu0 0
      %646 = vmatprep.subr.bf16.mxu0 0
      %647 = vmatpush1.bf16.msra.mxu0 0
      %648 = vmatprep.subr.bf16.mxu0 0
      %649 = vmatpush1.bf16.msra.mxu0 0
      %650 = vmatprep.mubr.bf16.mxu0 0
      %651 = vmatmul.mubr.bf16.gmra.mrb[0].mxu0 %v616
      %v652 = vpop.f32.mrb[0].mxu0
      %v653 = vadd.f32 %v601, %v652
      %v654 = vpop.f32.mrb[0].mxu0
      %v655 = vpop.f32.mrb[0].mxu0
      %v656 = vadd.f32 %v601, %v655
      %v657 = vpop.f32.mrb[0].mxu0
      %658 = vdwg.mxu0
      %v659 = vmul.f32 %v653, 0.35355338
      %v660 = vmul.f32 %v656, 0.35355338
      %v661 = vpack.c.bf16 %v660, %v659
      %v662 = vpack.c.bf16 %v656, %v653
      %664 = vrot.lane.b32.xlu0 %v662, 96
      %v665 = vpop.permute.xlu0 %664
      %vm666 = vcmask 64512
      %v668 = vsel %vm666, %v661, 0
      %v671 = vsel %vm666, %v665, 0
      %673 = vmatprep.subr.bf16.mxu0 0
      %674 = vmatpush1.bf16.xpose.msra.mxu0 %v671
      %675 = vmatprep.subr.bf16.mxu0 0
      %676 = vmatpush1.bf16.xpose.msra.mxu0 0
      %677 = vmatprep.subr.bf16.mxu0 0
      %678 = vmatpush1.bf16.xpose.msra.mxu0 0
      %679 = vmatprep.subr.bf16.mxu0 0
      %680 = vmatpush1.bf16.xpose.msra.mxu0 0
      %681 = vmatprep.subr.bf16.mxu0 0
      %682 = vmatpush1.bf16.xpose.msra.mxu0 0
      %683 = vmatprep.subr.bf16.mxu0 0
      %684 = vmatpush1.bf16.xpose.msra.mxu0 0
      %685 = vmatprep.subr.bf16.mxu0 0
      %686 = vmatpush1.bf16.xpose.msra.mxu0 0
      %687 = vmatprep.subr.bf16.mxu0 0
      %688 = vmatpush1.bf16.xpose.msra.mxu0 0
      %689 = vmatprep.subr.bf16.mxu0 0
      %690 = vmatpush1.bf16.xpose.msra.mxu0 0
      %691 = vmatprep.subr.bf16.mxu0 0
      %692 = vmatpush1.bf16.xpose.msra.mxu0 0
      %693 = vmatprep.subr.bf16.mxu0 0
      %694 = vmatpush1.bf16.xpose.msra.mxu0 0
      %695 = vmatprep.subr.bf16.mxu0 0
      %696 = vmatpush1.bf16.xpose.msra.mxu0 0
      %697 = vmatprep.subr.bf16.mxu0 0
      %698 = vmatpush1.bf16.xpose.msra.mxu0 0
      %699 = vmatprep.subr.bf16.mxu0 0
      %700 = vmatpush1.bf16.xpose.msra.mxu0 0
      %701 = vmatprep.subr.bf16.mxu0 0
      %702 = vmatpush1.bf16.xpose.msra.mxu0 0
      %703 = vmatprep.subr.bf16.mxu0 0
      %704 = vmatpush1.bf16.xpose.msra.mxu0 0
      %705 = vmatprep.mubr.bf16.mxu0 0
      %706 = vmatmul.mubr.bf16.gmra.mrb[0].mxu0 %v668
      %v707 = vpop.f32.mrb[0].mxu0
      %v708 = vadd.f32 0.0, %v707
      %v709 = vpop.f32.mrb[0].mxu0
      %v710 = vpop.f32.mrb[0].mxu0
      %v711 = vadd.f32 0.0, %v710
      %v712 = vpop.f32.mrb[0].mxu0
      %713 = vdwg.mxu0
      %vm714 = vcmask 72704
      %v715 = vsel %vm714, %v708, -inf
      %716 = vmax.xlane.f32.xlu0 %v715
      %v717 = vpop.xlane.xlu0 %716
      %vm718 = vcmask 65536
      %v719 = vsel %vm718, %v711, -inf
      %720 = vmax.xlane.f32.xlu0 %v719
      %v721 = vpop.xlane.xlu0 %720
      %v722 = vsub.f32 %v708, %v717
      %v723 = vsub.f32 %v711, %v721
      %v724 = vmul.f32 %v722, 1.442695
      %v725 = vpow.pop %v724
      %v726 = vmul.f32 %v723, 1.442695
      %v727 = vpow.pop %v726
      %v728 = vsel %vm714, %v725, 0.0
      %729 = vadd.xlane.f32.xlu0 %v728
      %v730 = vpop.xlane.xlu0 %729
      %v731 = vsel %vm718, %v727, 0.0
      %732 = vadd.xlane.f32.xlu0 %v731
      %v733 = vpop.xlane.xlu0 %732
      %v734 = vrcp.pop %v730
      %v735 = vrcp.pop %v733
      %v736 = vmul.f32 %v725, %v734
      %v737 = vmul.f32 %v727, %v735
      %v738 = vpack.c.bf16 %v737, %v736
      %739 = vrot.lane.b32.xlu0 %v662, 64
      %v740 = vpop.permute.xlu0 %739
      %v742 = vsel %vm714, %v738, 0
      %vm744 = vcmask 1043456
      %vm745 = vcmask 1044480
      %v746 = vsel %vm744, 4294967295, 65535
      %v747 = vsel %vm745, %v746, 0
      %v749 = vand.u32 %v740, %v747
      %751 = vmatprep.subr.bf16.mxu0 0
      %752 = vmatpush1.bf16.msra.mxu0 %v749
      %753 = vmatprep.subr.bf16.mxu0 0
      %754 = vmatpush1.bf16.msra.mxu0 0
      %755 = vmatprep.subr.bf16.mxu0 0
      %756 = vmatpush1.bf16.msra.mxu0 0
      %757 = vmatprep.subr.bf16.mxu0 0
      %758 = vmatpush1.bf16.msra.mxu0 0
      %759 = vmatprep.subr.bf16.mxu0 0
      %760 = vmatpush1.bf16.msra.mxu0 0
      %761 = vmatprep.subr.bf16.mxu0 0
      %762 = vmatpush1.bf16.msra.mxu0 0
      %763 = vmatprep.subr.bf16.mxu0 0
      %764 = vmatpush1.bf16.msra.mxu0 0
      %765 = vmatprep.subr.bf16.mxu0 0
      %766 = vmatpush1.bf16.msra.mxu0 0
      %767 = vmatprep.subr.bf16.mxu0 0
      %768 = vmatpush1.bf16.msra.mxu0 0
      %769 = vmatprep.subr.bf16.mxu0 0
      %770 = vmatpush1.bf16.msra.mxu0 0
      %771 = vmatprep.subr.bf16.mxu0 0
      %772 = vmatpush1.bf16.msra.mxu0 0
      %773 = vmatprep.subr.bf16.mxu0 0
      %774 = vmatpush1.bf16.msra.mxu0 0
      %775 = vmatprep.subr.bf16.mxu0 0
      %776 = vmatpush1.bf16.msra.mxu0 0
      %777 = vmatprep.subr.bf16.mxu0 0
      %778 = vmatpush1.bf16.msra.mxu0 0
      %779 = vmatprep.subr.bf16.mxu0 0
      %780 = vmatpush1.bf16.msra.mxu0 0
      %781 = vmatprep.subr.bf16.mxu0 0
      %782 = vmatpush1.bf16.msra.mxu0 0
      %783 = vmatprep.mubr.bf16.mxu0 0
      %784 = vmatmul.mubr.bf16.gmra.mrb[0].mxu0 %v742
      %v785 = vpop.f32.mrb[0].mxu0
      %v786 = vadd.f32 0.0, %v785
      %v787 = vpop.f32.mrb[0].mxu0
      %v788 = vpop.f32.mrb[0].mxu0
      %v789 = vadd.f32 0.0, %v788
      %v790 = vpop.f32.mrb[0].mxu0
      %791 = vdwg.mxu0
      %793 = vrot.lane.b32.xlu0 %v661, 120
      %v794 = vpop.permute.xlu0 %793
      %795 = vrot.lane.b32.xlu0 %v662, 88
      %v796 = vpop.permute.xlu0 %795
      %v798 = vsel %vm666, %v794, 0
      %v801 = vsel %vm666, %v796, 0
      %803 = vmatprep.subr.bf16.mxu0 0
      %804 = vmatpush1.bf16.xpose.msra.mxu0 %v801
      %805 = vmatprep.subr.bf16.mxu0 0
      %806 = vmatpush1.bf16.xpose.msra.mxu0 0
      %807 = vmatprep.subr.bf16.mxu0 0
      %808 = vmatpush1.bf16.xpose.msra.mxu0 0
      %809 = vmatprep.subr.bf16.mxu0 0
      %810 = vmatpush1.bf16.xpose.msra.mxu0 0
      %811 = vmatprep.subr.bf16.mxu0 0
      %812 = vmatpush1.bf16.xpose.msra.mxu0 0
      %813 = vmatprep.subr.bf16.mxu0 0
      %814 = vmatpush1.bf16.xpose.msra.mxu0 0
      %815 = vmatprep.subr.bf16.mxu0 0
      %816 = vmatpush1.bf16.xpose.msra.mxu0 0
      %817 = vmatprep.subr.bf16.mxu0 0
      %818 = vmatpush1.bf16.xpose.msra.mxu0 0
      %819 = vmatprep.subr.bf16.mxu0 0
      %820 = vmatpush1.bf16.xpose.msra.mxu0 0
      %821 = vmatprep.subr.bf16.mxu0 0
      %822 = vmatpush1.bf16.xpose.msra.mxu0 0
      %823 = vmatprep.subr.bf16.mxu0 0
      %824 = vmatpush1.bf16.xpose.msra.mxu0 0
      %825 = vmatprep.subr.bf16.mxu0 0
      %826 = vmatpush1.bf16.xpose.msra.mxu0 0
      %827 = vmatprep.subr.bf16.mxu0 0
      %828 = vmatpush1.bf16.xpose.msra.mxu0 0
      %829 = vmatprep.subr.bf16.mxu0 0
      %830 = vmatpush1.bf16.xpose.msra.mxu0 0
      %831 = vmatprep.subr.bf16.mxu0 0
      %832 = vmatpush1.bf16.xpose.msra.mxu0 0
      %833 = vmatprep.subr.bf16.mxu0 0
      %834 = vmatpush1.bf16.xpose.msra.mxu0 0
      %835 = vmatprep.mubr.bf16.mxu0 0
      %836 = vmatmul.mubr.bf16.gmra.mrb[0].mxu0 %v798
      %v837 = vpop.f32.mrb[0].mxu0
      %v838 = vadd.f32 0.0, %v837
      %v839 = vpop.f32.mrb[0].mxu0
      %v840 = vpop.f32.mrb[0].mxu0
      %v841 = vadd.f32 0.0, %v840
      %v842 = vpop.f32.mrb[0].mxu0
      %843 = vdwg.mxu0
      %v844 = vsel %vm714, %v838, -inf
      %845 = vmax.xlane.f32.xlu0 %v844
      %v846 = vpop.xlane.xlu0 %845
      %v847 = vsel %vm718, %v841, -inf
      %848 = vmax.xlane.f32.xlu0 %v847
      %v849 = vpop.xlane.xlu0 %848
      %v850 = vsub.f32 %v838, %v846
      %v851 = vsub.f32 %v841, %v849
      %v852 = vmul.f32 %v850, 1.442695
      %v853 = vpow.pop %v852
      %v854 = vmul.f32 %v851, 1.442695
      %v855 = vpow.pop %v854
      %v856 = vsel %vm714, %v853, 0.0
      %857 = vadd.xlane.f32.xlu0 %v856
      %v858 = vpop.xlane.xlu0 %857
      %v859 = vsel %vm718, %v855, 0.0
      %860 = vadd.xlane.f32.xlu0 %v859
      %v861 = vpop.xlane.xlu0 %860
      %v862 = vrcp.pop %v858
      %v863 = vrcp.pop %v861
      %v864 = vmul.f32 %v853, %v862
      %v865 = vmul.f32 %v855, %v863
      %v866 = vpack.c.bf16 %v865, %v864
      %867 = vrot.lane.b32.xlu0 %v662, 56
      %v868 = vpop.permute.xlu0 %867
      %v870 = vsel %vm714, %v866, 0
      %v873 = vand.u32 %v868, %v747
      %875 = vmatprep.subr.bf16.mxu0 0
      %876 = vmatpush1.bf16.msra.mxu0 %v873
      %877 = vmatprep.subr.bf16.mxu0 0
      %878 = vmatpush1.bf16.msra.mxu0 0
      %879 = vmatprep.subr.bf16.mxu0 0
      %880 = vmatpush1.bf16.msra.mxu0 0
      %881 = vmatprep.subr.bf16.mxu0 0
      %882 = vmatpush1.bf16.msra.mxu0 0
      %883 = vmatprep.subr.bf16.mxu0 0
      %884 = vmatpush1.bf16.msra.mxu0 0
      %885 = vmatprep.subr.bf16.mxu0 0
      %886 = vmatpush1.bf16.msra.mxu0 0
      %887 = vmatprep.subr.bf16.mxu0 0
      %888 = vmatpush1.bf16.msra.mxu0 0
      %889 = vmatprep.subr.bf16.mxu0 0
      %890 = vmatpush1.bf16.msra.mxu0 0
      %891 = vmatprep.subr.bf16.mxu0 0
      %892 = vmatpush1.bf16.msra.mxu0 0
      %893 = vmatprep.subr.bf16.mxu0 0
      %894 = vmatpush1.bf16.msra.mxu0 0
      %895 = vmatprep.subr.bf16.mxu0 0
      %896 = vmatpush1.bf16.msra.mxu0 0
      %897 = vmatprep.subr.bf16.mxu0 0
      %898 = vmatpush1.bf16.msra.mxu0 0
      %899 = vmatprep.subr.bf16.mxu0 0
      %900 = vmatpush1.bf16.msra.mxu0 0
      %901 = vmatprep.subr.bf16.mxu0 0
      %902 = vmatpush1.bf16.msra.mxu0 0
      %903 = vmatprep.subr.bf16.mxu0 0
      %904 = vmatpush1.bf16.msra.mxu0 0
      %905 = vmatprep.subr.bf16.mxu0 0
      %906 = vmatpush1.bf16.msra.mxu0 0
      %907 = vmatprep.mubr.bf16.mxu0 0
      %908 = vmatmul.mubr.bf16.gmra.mrb[0].mxu0 %v870
      %v909 = vpop.f32.mrb[0].mxu0
      %v910 = vadd.f32 0.0, %v909
      %v911 = vpop.f32.mrb[0].mxu0
      %v912 = vpop.f32.mrb[0].mxu0
      %v913 = vadd.f32 0.0, %v912
      %v914 = vpop.f32.mrb[0].mxu0
      %915 = vdwg.mxu0
      %916 = vrot.lane.b32.xlu0 %v661, 112
      %v917 = vpop.permute.xlu0 %916
      %918 = vrot.lane.b32.xlu0 %v662, 80
      %v919 = vpop.permute.xlu0 %918
      %v921 = vsel %vm666, %v917, 0
      %v924 = vsel %vm666, %v919, 0
      %926 = vmatprep.subr.bf16.mxu0 0
      %927 = vmatpush1.bf16.xpose.msra.mxu0 %v924
      %928 = vmatprep.subr.bf16.mxu0 0
      %929 = vmatpush1.bf16.xpose.msra.mxu0 0
      %930 = vmatprep.subr.bf16.mxu0 0
      %931 = vmatpush1.bf16.xpose.msra.mxu0 0
      %932 = vmatprep.subr.bf16.mxu0 0
      %933 = vmatpush1.bf16.xpose.msra.mxu0 0
      %934 = vmatprep.subr.bf16.mxu0 0
      %935 = vmatpush1.bf16.xpose.msra.mxu0 0
      %936 = vmatprep.subr.bf16.mxu0 0
      %937 = vmatpush1.bf16.xpose.msra.mxu0 0
      %938 = vmatprep.subr.bf16.mxu0 0
      %939 = vmatpush1.bf16.xpose.msra.mxu0 0
      %940 = vmatprep.subr.bf16.mxu0 0
      %941 = vmatpush1.bf16.xpose.msra.mxu0 0
      %942 = vmatprep.subr.bf16.mxu0 0
      %943 = vmatpush1.bf16.xpose.msra.mxu0 0
      %944 = vmatprep.subr.bf16.mxu0 0
      %945 = vmatpush1.bf16.xpose.msra.mxu0 0
      %946 = vmatprep.subr.bf16.mxu0 0
      %947 = vmatpush1.bf16.xpose.msra.mxu0 0
      %948 = vmatprep.subr.bf16.mxu0 0
      %949 = vmatpush1.bf16.xpose.msra.mxu0 0
      %950 = vmatprep.subr.bf16.mxu0 0
      %951 = vmatpush1.bf16.xpose.msra.mxu0 0
      %952 = vmatprep.subr.bf16.mxu0 0
      %953 = vmatpush1.bf16.xpose.msra.mxu0 0
      %954 = vmatprep.subr.bf16.mxu0 0
      %955 = vmatpush1.bf16.xpose.msra.mxu0 0
      %956 = vmatprep.subr.bf16.mxu0 0
      %957 = vmatpush1.bf16.xpose.msra.mxu0 0
      %958 = vmatprep.mubr.bf16.mxu0 0
      %959 = vmatmul.mubr.bf16.gmra.mrb[0].mxu0 %v921
      %v960 = vpop.f32.mrb[0].mxu0
      %v961 = vadd.f32 0.0, %v960
      %v962 = vpop.f32.mrb[0].mxu0
      %v963 = vpop.f32.mrb[0].mxu0
      %v964 = vadd.f32 0.0, %v963
      %v965 = vpop.f32.mrb[0].mxu0
      %966 = vdwg.mxu0
      %v967 = vsel %vm714, %v961, -inf
      %968 = vmax.xlane.f32.xlu0 %v967
      %v969 = vpop.xlane.xlu0 %968
      %v970 = vsel %vm718, %v964, -inf
      %971 = vmax.xlane.f32.xlu0 %v970
      %v972 = vpop.xlane.xlu0 %971
      %v973 = vsub.f32 %v961, %v969
      %v974 = vsub.f32 %v964, %v972
      %v975 = vmul.f32 %v973, 1.442695
      %v976 = vpow.pop %v975
      %v977 = vmul.f32 %v974, 1.442695
      %v978 = vpow.pop %v977
      %v979 = vsel %vm714, %v976, 0.0
      %980 = vadd.xlane.f32.xlu0 %v979
      %v981 = vpop.xlane.xlu0 %980
      %v982 = vsel %vm718, %v978, 0.0
      %983 = vadd.xlane.f32.xlu0 %v982
      %v984 = vpop.xlane.xlu0 %983
      %v985 = vrcp.pop %v981
      %v986 = vrcp.pop %v984
      %v987 = vmul.f32 %v976, %v985
      %v988 = vmul.f32 %v978, %v986
      %v989 = vpack.c.bf16 %v988, %v987
      %990 = vrot.lane.b32.xlu0 %v662, 48
      %v991 = vpop.permute.xlu0 %990
      %v993 = vsel %vm714, %v989, 0
      %v996 = vand.u32 %v991, %v747
      %998 = vmatprep.subr.bf16.mxu0 0
      %999 = vmatpush1.bf16.msra.mxu0 %v996
      %1000 = vmatprep.subr.bf16.mxu0 0
      %1001 = vmatpush1.bf16.msra.mxu0 0
      %1002 = vmatprep.subr.bf16.mxu0 0
      %1003 = vmatpush1.bf16.msra.mxu0 0
      %1004 = vmatprep.subr.bf16.mxu0 0
      %1005 = vmatpush1.bf16.msra.mxu0 0
      %1006 = vmatprep.subr.bf16.mxu0 0
      %1007 = vmatpush1.bf16.msra.mxu0 0
      %1008 = vmatprep.subr.bf16.mxu0 0
      %1009 = vmatpush1.bf16.msra.mxu0 0
      %1010 = vmatprep.subr.bf16.mxu0 0
      %1011 = vmatpush1.bf16.msra.mxu0 0
      %1012 = vmatprep.subr.bf16.mxu0 0
      %1013 = vmatpush1.bf16.msra.mxu0 0
      %1014 = vmatprep.subr.bf16.mxu0 0
      %1015 = vmatpush1.bf16.msra.mxu0 0
      %1016 = vmatprep.subr.bf16.mxu0 0
      %1017 = vmatpush1.bf16.msra.mxu0 0
      %1018 = vmatprep.subr.bf16.mxu0 0
      %1019 = vmatpush1.bf16.msra.mxu0 0
      %1020 = vmatprep.subr.bf16.mxu0 0
      %1021 = vmatpush1.bf16.msra.mxu0 0
      %1022 = vmatprep.subr.bf16.mxu0 0
      %1023 = vmatpush1.bf16.msra.mxu0 0
      %1024 = vmatprep.subr.bf16.mxu0 0
      %1025 = vmatpush1.bf16.msra.mxu0 0
      %1026 = vmatprep.subr.bf16.mxu0 0
      %1027 = vmatpush1.bf16.msra.mxu0 0
      %1028 = vmatprep.subr.bf16.mxu0 0
      %1029 = vmatpush1.bf16.msra.mxu0 0
      %1030 = vmatprep.mubr.bf16.mxu0 0
      %1031 = vmatmul.mubr.bf16.gmra.mrb[0].mxu0 %v993
      %v1032 = vpop.f32.mrb[0].mxu0
      %v1033 = vadd.f32 0.0, %v1032
      %v1034 = vpop.f32.mrb[0].mxu0
      %v1035 = vpop.f32.mrb[0].mxu0
      %v1036 = vadd.f32 0.0, %v1035
      %v1037 = vpop.f32.mrb[0].mxu0
      %1038 = vdwg.mxu0
      %1039 = vrot.lane.b32.xlu0 %v661, 104
      %v1040 = vpop.permute.xlu0 %1039
      %1041 = vrot.lane.b32.xlu0 %v662, 72
      %v1042 = vpop.permute.xlu0 %1041
      %v1044 = vsel %vm666, %v1040, 0
      %v1047 = vsel %vm666, %v1042, 0
      %1049 = vmatprep.subr.bf16.mxu0 0
      %1050 = vmatpush1.bf16.xpose.msra.mxu0 %v1047
      %1051 = vmatprep.subr.bf16.mxu0 0
      %1052 = vmatpush1.bf16.xpose.msra.mxu0 0
      %1053 = vmatprep.subr.bf16.mxu0 0
      %1054 = vmatpush1.bf16.xpose.msra.mxu0 0
      %1055 = vmatprep.subr.bf16.mxu0 0
      %1056 = vmatpush1.bf16.xpose.msra.mxu0 0
      %1057 = vmatprep.subr.bf16.mxu0 0
      %1058 = vmatpush1.bf16.xpose.msra.mxu0 0
      %1059 = vmatprep.subr.bf16.mxu0 0
      %1060 = vmatpush1.bf16.xpose.msra.mxu0 0
      %1061 = vmatprep.subr.bf16.mxu0 0
      %1062 = vmatpush1.bf16.xpose.msra.mxu0 0
      %1063 = vmatprep.subr.bf16.mxu0 0
      %1064 = vmatpush1.bf16.xpose.msra.mxu0 0
      %1065 = vmatprep.subr.bf16.mxu0 0
      %1066 = vmatpush1.bf16.xpose.msra.mxu0 0
      %1067 = vmatprep.subr.bf16.mxu0 0
      %1068 = vmatpush1.bf16.xpose.msra.mxu0 0
      %1069 = vmatprep.subr.bf16.mxu0 0
      %1070 = vmatpush1.bf16.xpose.msra.mxu0 0
      %1071 = vmatprep.subr.bf16.mxu0 0
      %1072 = vmatpush1.bf16.xpose.msra.mxu0 0
      %1073 = vmatprep.subr.bf16.mxu0 0
      %1074 = vmatpush1.bf16.xpose.msra.mxu0 0
      %1075 = vmatprep.subr.bf16.mxu0 0
      %1076 = vmatpush1.bf16.xpose.msra.mxu0 0
      %1077 = vmatprep.subr.bf16.mxu0 0
      %1078 = vmatpush1.bf16.xpose.msra.mxu0 0
      %1079 = vmatprep.subr.bf16.mxu0 0
      %1080 = vmatpush1.bf16.xpose.msra.mxu0 0
      %1081 = vmatprep.mubr.bf16.mxu0 0
      %1082 = vmatmul.mubr.bf16.gmra.mrb[0].mxu0 %v1044
      %v1083 = vpop.f32.mrb[0].mxu0
      %v1084 = vadd.f32 0.0, %v1083
      %v1085 = vpop.f32.mrb[0].mxu0
      %v1086 = vpop.f32.mrb[0].mxu0
      %v1087 = vadd.f32 0.0, %v1086
      %v1088 = vpop.f32.mrb[0].mxu0
      %1089 = vdwg.mxu0
      %v1090 = vsel %vm714, %v1084, -inf
      %1091 = vmax.xlane.f32.xlu0 %v1090
      %v1092 = vpop.xlane.xlu0 %1091
      %v1093 = vsel %vm718, %v1087, -inf
      %1094 = vmax.xlane.f32.xlu0 %v1093
      %v1095 = vpop.xlane.xlu0 %1094
      %v1096 = vsub.f32 %v1084, %v1092
      %v1097 = vsub.f32 %v1087, %v1095
      %v1098 = vmul.f32 %v1096, 1.442695
      %v1099 = vpow.pop %v1098
      %v1100 = vmul.f32 %v1097, 1.442695
      %v1101 = vpow.pop %v1100
      %v1102 = vsel %vm714, %v1099, 0.0
      %1103 = vadd.xlane.f32.xlu0 %v1102
      %v1104 = vpop.xlane.xlu0 %1103
      %v1105 = vsel %vm718, %v1101, 0.0
      %1106 = vadd.xlane.f32.xlu0 %v1105
      %v1107 = vpop.xlane.xlu0 %1106
      %v1108 = vrcp.pop %v1104
      %v1109 = vrcp.pop %v1107
      %v1110 = vmul.f32 %v1099, %v1108
      %v1111 = vmul.f32 %v1101, %v1109
      %v1112 = vpack.c.bf16 %v1111, %v1110
      %1113 = vrot.lane.b32.xlu0 %v662, 40
      %v1114 = vpop.permute.xlu0 %1113
      %v1116 = vsel %vm714, %v1112, 0
      %v1119 = vand.u32 %v1114, %v747
      %1121 = vmatprep.subr.bf16.mxu0 0
      %1122 = vmatpush1.bf16.msra.mxu0 %v1119
      %1123 = vmatprep.subr.bf16.mxu0 0
      %1124 = vmatpush1.bf16.msra.mxu0 0
      %1125 = vmatprep.subr.bf16.mxu0 0
      %1126 = vmatpush1.bf16.msra.mxu0 0
      %1127 = vmatprep.subr.bf16.mxu0 0
      %1128 = vmatpush1.bf16.msra.mxu0 0
      %1129 = vmatprep.subr.bf16.mxu0 0
      %1130 = vmatpush1.bf16.msra.mxu0 0
      %1131 = vmatprep.subr.bf16.mxu0 0
      %1132 = vmatpush1.bf16.msra.mxu0 0
      %1133 = vmatprep.subr.bf16.mxu0 0
      %1134 = vmatpush1.bf16.msra.mxu0 0
      %1135 = vmatprep.subr.bf16.mxu0 0
      %1136 = vmatpush1.bf16.msra.mxu0 0
      %1137 = vmatprep.subr.bf16.mxu0 0
      %1138 = vmatpush1.bf16.msra.mxu0 0
      %1139 = vmatprep.subr.bf16.mxu0 0
      %1140 = vmatpush1.bf16.msra.mxu0 0
      %1141 = vmatprep.subr.bf16.mxu0 0
      %1142 = vmatpush1.bf16.msra.mxu0 0
      %1143 = vmatprep.subr.bf16.mxu0 0
      %1144 = vmatpush1.bf16.msra.mxu0 0
      %1145 = vmatprep.subr.bf16.mxu0 0
      %1146 = vmatpush1.bf16.msra.mxu0 0
      %1147 = vmatprep.subr.bf16.mxu0 0
      %1148 = vmatpush1.bf16.msra.mxu0 0
      %1149 = vmatprep.subr.bf16.mxu0 0
      %1150 = vmatpush1.bf16.msra.mxu0 0
      %1151 = vmatprep.subr.bf16.mxu0 0
      %1152 = vmatpush1.bf16.msra.mxu0 0
      %1153 = vmatprep.mubr.bf16.mxu0 0
      %1154 = vmatmul.mubr.bf16.gmra.mrb[0].mxu0 %v1116
      %v1155 = vpop.f32.mrb[0].mxu0
      %v1156 = vadd.f32 0.0, %v1155
      %v1157 = vpop.f32.mrb[0].mxu0
      %v1158 = vpop.f32.mrb[0].mxu0
      %v1159 = vadd.f32 0.0, %v1158
      %v1160 = vpop.f32.mrb[0].mxu0
      %1161 = vdwg.mxu0
      %1164 = vrot.lane.b32.xlu0 %v910, 8
      %v1165 = vpop.permute.xlu0 %1164
      %1166 = vrot.lane.b32.xlu0 %v913, 8
      %v1167 = vpop.permute.xlu0 %1166
      %1172 = vrot.lane.b32.xlu0 %v1033, 16
      %v1173 = vpop.permute.xlu0 %1172
      %1174 = vrot.lane.b32.xlu0 %v1036, 16
      %v1175 = vpop.permute.xlu0 %1174
      %1180 = vrot.lane.b32.xlu0 %v1156, 24
      %v1181 = vpop.permute.xlu0 %1180
      %1182 = vrot.lane.b32.xlu0 %v1159, 24
      %v1183 = vpop.permute.xlu0 %1182
      %v1186 = vsel %vm666, %v786, %v1165
      %v1187 = vsel %vm666, %v789, %v1167
      %vm1188 = vcmask 130048
      %v1189 = vsel %vm1188, %v1186, %v1173
      %v1190 = vsel %vm1188, %v1187, %v1175
      %vm1191 = vcmask 195584
      %v1192 = vsel %vm1191, %v1189, %v1181
      %v1193 = vsel %vm1191, %v1190, %v1183
      %v1194 = vpack.c.bf16 %v1193, %v1192
      %v1195 = vld [vmem:[%s5] sm:$0xf]
      %v1196 = vld [vmem:[%s5 + $0x4] sm:$0xf]
      %v1197 = vld [vmem:[%s5 + $0x8] sm:$0xf]
      %v1198 = vld [vmem:[%s5 + $0xc] sm:$0xf]
      %v1203 = vunpack.c.l.b16 %v1195
      %v1204 = vunpack.c.l.b16 %v1196
      %v1205 = vunpack.c.l.b16 %v1197
      %v1206 = vunpack.c.l.b16 %v1198
      %v1207 = vpack.c.b16 %v1204, %v1203
      %v1208 = vpack.c.b16 %v1206, %v1205
      %v1212 = vsel %vm502, %v1194, 0
      %1214 = vmatprep.subr.bf16.mxu0 0
      %1215 = vmatpush1.bf16.msra.mxu0 %v1207
      %1216 = vmatprep.subr.bf16.mxu0 0
      %1217 = vmatpush1.bf16.msra.mxu0 %v1208
      %1218 = vmatprep.subr.bf16.mxu0 0
      %1219 = vmatpush1.bf16.msra.mxu0 0
      %1220 = vmatprep.subr.bf16.mxu0 0
      %1221 = vmatpush1.bf16.msra.mxu0 0
      %1222 = vmatprep.subr.bf16.mxu0 0
      %1223 = vmatpush1.bf16.msra.mxu0 0
      %1224 = vmatprep.subr.bf16.mxu0 0
      %1225 = vmatpush1.bf16.msra.mxu0 0
      %1226 = vmatprep.subr.bf16.mxu0 0
      %1227 = vmatpush1.bf16.msra.mxu0 0
      %1228 = vmatprep.subr.bf16.mxu0 0
      %1229 = vmatpush1.bf16.msra.mxu0 0
      %1230 = vmatprep.subr.bf16.mxu0 0
      %1231 = vmatpush1.bf16.msra.mxu0 0
      %1232 = vmatprep.subr.bf16.mxu0 0
      %1233 = vmatpush1.bf16.msra.mxu0 0
      %1234 = vmatprep.subr.bf16.mxu0 0
      %1235 = vmatpush1.bf16.msra.mxu0 0
      %1236 = vmatprep.subr.bf16.mxu0 0
      %1237 = vmatpush1.bf16.msra.mxu0 0
      %1238 = vmatprep.subr.bf16.mxu0 0
      %1239 = vmatpush1.bf16.msra.mxu0 0
      %1240 = vmatprep.subr.bf16.mxu0 0
      %1241 = vmatpush1.bf16.msra.mxu0 0
      %1242 = vmatprep.subr.bf16.mxu0 0
      %1243 = vmatpush1.bf16.msra.mxu0 0
      %1244 = vmatprep.subr.bf16.mxu0 0
      %1245 = vmatpush1.bf16.msra.mxu0 0
      %1246 = vmatprep.mubr.bf16.mxu0 0
      %1247 = vmatmul.mubr.bf16.gmra.mrb[0].mxu0 %v1212
      %v1248 = vpop.f32.mrb[0].mxu0
      %v1249 = vadd.f32 0.0, %v1248
      %v1250 = vpop.f32.mrb[0].mxu0
      %v1251 = vpop.f32.mrb[0].mxu0
      %v1252 = vadd.f32 0.0, %v1251
      %v1253 = vpop.f32.mrb[0].mxu0
      %1254 = vdwg.mxu0
      %v1255 = vadd.f32 %v545, %v1249
      %v1256 = vadd.f32 %v546, %v1252
      %v1257 = vld [vmem:[%s6] sm:$0x1]
      %v1259 = vlaneseq
      %v1260 = vshrl.u32 %v1259, 7
      %v1261 = vsub.s32 0, %v1260
      %v1262 = vrot.slane %v1257, %v1261
      %v1264 = vadd.f32 %v1255, %v1262
      %v1265 = vadd.f32 %v1256, %v1262
      %v1266 = vld [vmem:[%s7] sm:$0x1]
      %v1267 = vld [vmem:[%s8] sm:$0x1]
      %v1268 = vsel %vm502, %v1264, 0.0
      %1269 = vadd.xlane.f32.xlu0 %v1268
      %v1270 = vpop.xlane.xlu0 %1269
      %v1271 = vsel %vm506, %v1265, 0.0
      %1272 = vadd.xlane.f32.xlu0 %v1271
      %v1273 = vpop.xlane.xlu0 %1272
      %v1274 = vmul.f32 %v1270, %v510
      %v1275 = vmul.f32 %v1273, %v510
      %v1276 = vsub.f32 %v1264, %v1274
      %v1277 = vsub.f32 %v1265, %v1275
      %v1278 = vmul.f32 %v1276, %v1276
      %v1279 = vmul.f32 %v1277, %v1277
      %v1280 = vsel %vm502, %v1278, 0.0
      %1281 = vadd.xlane.f32.xlu0 %v1280
      %v1282 = vpop.xlane.xlu0 %1281
      %v1283 = vsel %vm506, %v1279, 0.0
      %1284 = vadd.xlane.f32.xlu0 %v1283
      %v1285 = vpop.xlane.xlu0 %1284
      %v1286 = vmul.f32 %v1282, %v510
      %v1287 = vmul.f32 %v1285, %v510
      %v1288 = vadd.f32 %v1286, 1e-05
      %v1289 = vadd.f32 %v1287, 1e-05
      %v1290 = vrsqrt.pop %v1288
      %v1291 = vrsqrt.pop %v1289
      %v1292 = vmul.f32 %v1276, %v1290
      %v1293 = vmul.f32 %v1277, %v1291
      %v1295 = vlaneseq
      %v1296 = vshrl.u32 %v1295, 7
      %v1297 = vsub.s32 0, %v1296
      %v1298 = vrot.slane %v1266, %v1297
      %v1300 = vmul.f32 %v1292, %v1298
      %v1301 = vmul.f32 %v1293, %v1298
      %v1303 = vlaneseq
      %v1304 = vshrl.u32 %v1303, 7
      %v1305 = vsub.s32 0, %v1304
      %v1306 = vrot.slane %v1267, %v1305
      %v1308 = vadd.f32 %v1300, %v1306
      %v1309 = vadd.f32 %v1301, %v1306
      %v1310 = vpack.c.bf16 %v1309, %v1308
      %v1311 = vld [vmem:[%s9] sm:$0xf]
      %v1312 = vld [vmem:[%s9 + $0x4] sm:$0xf]
      %v1313 = vld [vmem:[%s9 + $0x8] sm:$0xf]
      %v1314 = vld [vmem:[%s9 + $0xc] sm:$0xf]
      %v1315 = vld [vmem:[%s10] sm:$0x1]
      %v1317 = vlaneseq
      %v1318 = vshrl.u32 %v1317, 7
      %v1319 = vsub.s32 0, %v1318
      %v1320 = vrot.slane %v1315, %v1319
      %v1326 = vunpack.c.l.b16 %v1311
      %v1327 = vunpack.c.l.b16 %v1312
      %v1328 = vunpack.c.l.b16 %v1313
      %v1329 = vunpack.c.l.b16 %v1314
      %v1330 = vpack.c.b16 %v1327, %v1326
      %v1331 = vpack.c.b16 %v1329, %v1328
      %v1335 = vsel %vm502, %v1310, 0
      %1337 = vmatprep.subr.bf16.mxu0 0
      %1338 = vmatpush1.bf16.msra.mxu0 %v1330
      %1339 = vmatprep.subr.bf16.mxu0 0
      %1340 = vmatpush1.bf16.msra.mxu0 %v1331
      %1341 = vmatprep.subr.bf16.mxu0 0
      %1342 = vmatpush1.bf16.msra.mxu0 0
      %1343 = vmatprep.subr.bf16.mxu0 0
      %1344 = vmatpush1.bf16.msra.mxu0 0
      %1345 = vmatprep.subr.bf16.mxu0 0
      %1346 = vmatpush1.bf16.msra.mxu0 0
      %1347 = vmatprep.subr.bf16.mxu0 0
      %1348 = vmatpush1.bf16.msra.mxu0 0
      %1349 = vmatprep.subr.bf16.mxu0 0
      %1350 = vmatpush1.bf16.msra.mxu0 0
      %1351 = vmatprep.subr.bf16.mxu0 0
      %1352 = vmatpush1.bf16.msra.mxu0 0
      %1353 = vmatprep.subr.bf16.mxu0 0
      %1354 = vmatpush1.bf16.msra.mxu0 0
      %1355 = vmatprep.subr.bf16.mxu0 0
      %1356 = vmatpush1.bf16.msra.mxu0 0
      %1357 = vmatprep.subr.bf16.mxu0 0
      %1358 = vmatpush1.bf16.msra.mxu0 0
      %1359 = vmatprep.subr.bf16.mxu0 0
      %1360 = vmatpush1.bf16.msra.mxu0 0
      %1361 = vmatprep.subr.bf16.mxu0 0
      %1362 = vmatpush1.bf16.msra.mxu0 0
      %1363 = vmatprep.subr.bf16.mxu0 0
      %1364 = vmatpush1.bf16.msra.mxu0 0
      %1365 = vmatprep.subr.bf16.mxu0 0
      %1366 = vmatpush1.bf16.msra.mxu0 0
      %1367 = vmatprep.subr.bf16.mxu0 0
      %1368 = vmatpush1.bf16.msra.mxu0 0
      %1369 = vmatprep.mubr.bf16.mxu0 0
      %1370 = vmatmul.mubr.bf16.gmra.mrb[0].mxu0 %v1335
      %v1371 = vpop.f32.mrb[0].mxu0
      %v1372 = vadd.f32 %v1320, %v1371
      %v1373 = vpop.f32.mrb[0].mxu0
      %v1374 = vpop.f32.mrb[0].mxu0
      %v1375 = vadd.f32 %v1320, %v1374
      %v1376 = vpop.f32.mrb[0].mxu0
      %1377 = vdwg.mxu0
      %v1378 = vmul.f32 %v1372, 1.702
      %v1379 = vmul.f32 %v1375, 1.702
      %v1380 = vxor.u32 %v1378, 2147483648
      %v1381 = vxor.u32 %v1379, 2147483648
      %v1382 = vmul.f32 %v1380, 1.442695
      %v1383 = vpow.pop %v1382
      %v1384 = vmul.f32 %v1381, 1.442695
      %v1385 = vpow.pop %v1384
      %v1386 = vadd.f32 %v1383, 1.0
      %v1387 = vadd.f32 %v1385, 1.0
      %v1388 = vrcp.pop %v1386
      %v1389 = vmul.f32 1.0, %v1388
      %v1390 = vrcp.pop %v1387
      %v1391 = vmul.f32 1.0, %v1390
      %v1392 = vmul.f32 %v1372, %v1389
      %v1393 = vmul.f32 %v1375, %v1391
      %v1394 = vpack.c.bf16 %v1393, %v1392
      %v1395 = vld [vmem:[%s11] sm:$0xf]
      %v1396 = vld [vmem:[%s11 + $0x4] sm:$0xf]
      %v1397 = vld [vmem:[%s11 + $0x8] sm:$0xf]
      %v1398 = vld [vmem:[%s11 + $0xc] sm:$0xf]
      %v1399 = vld [vmem:[%s11 + $0x10] sm:$0xf]
      %v1400 = vld [vmem:[%s11 + $0x14] sm:$0xf]
      %v1401 = vld [vmem:[%s11 + $0x18] sm:$0xf]
      %v1402 = vld [vmem:[%s11 + $0x1c] sm:$0xf]
      %v1403 = vld [vmem:[%s11 + $0x20] sm:$0xf]
      %v1404 = vld [vmem:[%s11 + $0x24] sm:$0xf]
      %v1405 = vld [vmem:[%s11 + $0x28] sm:$0xf]
      %v1406 = vld [vmem:[%s11 + $0x2c] sm:$0xf]
      %v1407 = vld [vmem:[%s11 + $0x30] sm:$0xf]
      %v1408 = vld [vmem:[%s11 + $0x34] sm:$0xf]
      %v1409 = vld [vmem:[%s11 + $0x38] sm:$0xf]
      %v1410 = vld [vmem:[%s11 + $0x3c] sm:$0xf]
      %v1427 = vunpack.c.l.b16 %v1395
      %v1428 = vunpack.c.l.b16 %v1396
      %v1429 = vunpack.c.l.b16 %v1397
      %v1430 = vunpack.c.l.b16 %v1398
      %v1431 = vunpack.c.l.b16 %v1399
      %v1432 = vunpack.c.l.b16 %v1400
      %v1433 = vunpack.c.l.b16 %v1401
      %v1434 = vunpack.c.l.b16 %v1402
      %v1435 = vunpack.c.l.b16 %v1403
      %v1436 = vunpack.c.l.b16 %v1404
      %v1437 = vunpack.c.l.b16 %v1405
      %v1438 = vunpack.c.l.b16 %v1406
      %v1439 = vunpack.c.l.b16 %v1407
      %v1440 = vunpack.c.l.b16 %v1408
      %v1441 = vunpack.c.l.b16 %v1409
      %v1442 = vunpack.c.l.b16 %v1410
      %v1443 = vpack.c.b16 %v1428, %v1427
      %v1444 = vpack.c.b16 %v1430, %v1429
      %v1445 = vpack.c.b16 %v1432, %v1431
      %v1446 = vpack.c.b16 %v1434, %v1433
      %v1447 = vpack.c.b16 %v1436, %v1435
      %v1448 = vpack.c.b16 %v1438, %v1437
      %v1449 = vpack.c.b16 %v1440, %v1439
      %v1450 = vpack.c.b16 %v1442, %v1441
      %1459 = vmatprep.subr.bf16.mxu0 0
      %1460 = vmatpush1.bf16.msra.mxu0 %v1443
      %1461 = vmatprep.subr.bf16.mxu0 0
      %1462 = vmatpush1.bf16.msra.mxu0 %v1444
      %1463 = vmatprep.subr.bf16.mxu0 0
      %1464 = vmatpush1.bf16.msra.mxu0 %v1445
      %1465 = vmatprep.subr.bf16.mxu0 0
      %1466 = vmatpush1.bf16.msra.mxu0 %v1446
      %1467 = vmatprep.subr.bf16.mxu0 0
      %1468 = vmatpush1.bf16.msra.mxu0 %v1447
      %1469 = vmatprep.subr.bf16.mxu0 0
      %1470 = vmatpush1.bf16.msra.mxu0 %v1448
      %1471 = vmatprep.subr.bf16.mxu0 0
      %1472 = vmatpush1.bf16.msra.mxu0 %v1449
      %1473 = vmatprep.subr.bf16.mxu0 0
      %1474 = vmatpush1.bf16.msra.mxu0 %v1450
      %1475 = vmatprep.subr.bf16.mxu0 0
      %1476 = vmatpush1.bf16.msra.mxu0 0
      %1477 = vmatprep.subr.bf16.mxu0 0
      %1478 = vmatpush1.bf16.msra.mxu0 0
      %1479 = vmatprep.subr.bf16.mxu0 0
      %1480 = vmatpush1.bf16.msra.mxu0 0
      %1481 = vmatprep.subr.bf16.mxu0 0
      %1482 = vmatpush1.bf16.msra.mxu0 0
      %1483 = vmatprep.subr.bf16.mxu0 0
      %1484 = vmatpush1.bf16.msra.mxu0 0
      %1485 = vmatprep.subr.bf16.mxu0 0
      %1486 = vmatpush1.bf16.msra.mxu0 0
      %1487 = vmatprep.subr.bf16.mxu0 0
      %1488 = vmatpush1.bf16.msra.mxu0 0
      %1489 = vmatprep.subr.bf16.mxu0 0
      %1490 = vmatpush1.bf16.msra.mxu0 0
      %1491 = vmatprep.mubr.bf16.mxu0 0
      %1492 = vmatmul.mubr.bf16.gmra.mrb[0].mxu0 %v1394
      %v1493 = vpop.f32.mrb[0].mxu0
      %v1494 = vadd.f32 0.0, %v1493
      %v1495 = vpop.f32.mrb[0].mxu0
      %v1496 = vpop.f32.mrb[0].mxu0
      %v1497 = vadd.f32 0.0, %v1496
      %v1498 = vpop.f32.mrb[0].mxu0
      %1499 = vdwg.mxu0
      %v1500 = vadd.f32 %v1264, %v1494
      %v1501 = vadd.f32 %v1265, %v1497
      %v1502 = vld [vmem:[%s12] sm:$0x1]
      %v1504 = vlaneseq
      %v1505 = vshrl.u32 %v1504, 7
      %v1506 = vsub.s32 0, %v1505
      %v1507 = vrot.slane %v1502, %v1506
      %v1509 = vadd.f32 %v1500, %v1507
      %v1510 = vadd.f32 %v1501, %v1507
      %v1511 = vpack.c.bf16 %v1510, %v1509
      %v1513 = vunpack.c.l.b16 %v1511
      %v1514 = vunpack.c.h.b16 %v1511
      %v1515 = vpack.c.b16 %v1513, %v1513
      %v1516 = vpack.c.b16 %v1514, %v1514
      %vm1519 = vcmask 257024
      %1520 = vst.msk [vmem:[%s494] sm:$0xf] %vm1519, %v1515
      %vm1521 = vcmask 253952
      %vm1522 = vsmask.f32 256
      %vm1523 = vmand %vm1521, %vm1522
      %v1524 = vld [vmem:[%s494 + $0x4] sm:$0x1]
      %v1525 = vsel %vm1523, %v1516, %v1524
      %1526 = vst [vmem:[%s494 + $0x4] sm:$0x1] %v1525
      %p1527 = scmp.lt.s32.totalorder %s26, 1
      %s1528 = scalar_select %p1527, %s26, 1
      %s1529 = smul.addr %s1528, 2
      %s1530 = smul.addr %s1529, 4
      %s1531 = scalar_lea.vmem %s15, %s1530
      // Predicated region
      $region81: #{vision_transformer_forward.5} parent=79 // pred_check
        %p1532 = pneg %p364
      $region82: #{vision_transformer_forward.5} parent=79 // pred_check_branch
        %1534 = sbr.rel (%p1532) target = $region84
      $region83: #{vision_transformer_forward.5} parent=79 // pred_region
        _
      $region84: #{vision_transformer_forward.5} parent=79 // pred_fallthru
        _
    $region80: #{vision_transformer_forward.5} parent=5 // pred_fallthru
      _
    %p1535 = scmp.le.s32.totalorder 2, %s21
    // Predicated region
    $region85: #{vision_transformer_forward.5} parent=5 // pred_check
      %p1536 = pneg %p1535
    $region86: #{vision_transformer_forward.5} parent=5 // pred_check_branch
      %1538 = sbr.rel (%p1536) target = $region88
    $region87: #{vision_transformer_forward.5} parent=5 // pred_region
      %s1539 = ssub.s32 %s21, 2
      // Predicated region
      $region89: #{vision_transformer_forward.5} parent=87 // pred_check
        %p1540 = pneg %p370
      $region90: #{vision_transformer_forward.5} parent=87 // pred_check_branch
        %1542 = sbr.rel (%p1540) target = $region92
      $region91: #{vision_transformer_forward.5} parent=87 // pred_region
        %p1543 = scmp.lt.s32.totalorder %s27, 1
        %s1544 = scalar_select %p1543, %s27, 1
        %s1545 = smul.addr %s1544, 2
        %s1546 = smul.addr %s1545, 4
        %s1547 = scalar_lea.vmem %s15, %s1546
      $region92: #{vision_transformer_forward.5} parent=87 // pred_fallthru
        _
    $region88: #{vision_transformer_forward.5} parent=5 // pred_fallthru
      _
  $region6: #{vision_transformer_forward.5} parent=0 // loop_footer
    %s25 = sadd.s32 1, %s21
  $region7: #{vision_transformer_forward.5} parent=0 // loop_footer_branch
    %20 = sbr.rel target = $region3
  $region8: #{vision_transformer_forward.5} parent=0 // loop_exit
    _

</llo_original>
